<compile_context>
chip_gen: v7x
topology: tpu7x:2x2x1
jax: 0.10.0
libtpu: 0.0.40
codegen_flags: <defaults>
</compile_context>

<pallas_src>
import math
import jax
import jax.numpy as jnp
from jax import lax
from jax.experimental import pallas as pl
from jax.experimental.pallas import tpu as pltpu

# ----- model hyperparameters (small, consistent with the module) -----
B = 2           # batch
S = 8           # sequence length
D = 32          # d_model
H = 4           # num_heads
DK = D // H     # d_k
DFF = 64        # d_ff
EPS = 1e-5      # nn.LayerNorm default eps
BS = B * S      # tokens
HBS = H * BS    # head-stacked rows

_PREC = lax.Precision.HIGHEST


def _mm(a, b):
    """a @ b on the MXU, f32 accumulation, full-precision passes."""
    return jnp.dot(a, b, preferred_element_type=jnp.float32, precision=_PREC)


def _mm_t(a, b):
    """a @ b.T without an explicit host-side transpose."""
    return lax.dot_general(a, b, dimension_numbers=(((1,), (1,)), ((), ())),
                           preferred_element_type=jnp.float32, precision=_PREC)


def _layernorm(x, gamma, beta):
    mu = jnp.mean(x, axis=-1, keepdims=True)
    var = jnp.mean((x - mu) ** 2, axis=-1, keepdims=True)
    return (x - mu) * lax.rsqrt(var + EPS) * gamma + beta


def encoder_layer_kernel(x_ref, bias_ref, wqkv_ref, wo_ref, w1_ref, w2_ref,
                         vecs_ref, out_ref):
    x = x_ref[...]                          # (BS, D) f32

    # ---- unpack the fused small-vector parameter slab (8, 3D) ----
    vecs = vecs_ref[...]
    bqkv = vecs[0:1, :]                     # (1, 3D)
    bo   = vecs[1:2, :D]
    b1   = vecs[2:3, :DFF]
    b2   = vecs[3:4, :D]
    g1   = vecs[4:5, :D]
    be1  = vecs[5:6, :D]
    g2   = vecs[6:7, :D]
    be2  = vecs[7:8, :D]

    # ---- fused QKV projection: one (BS, D) @ (D, 3D) MXU op ----
    qkv = _mm(x, wqkv_ref[...]) + bqkv      # (BS, 3D): [0:D]=Q [D:2D]=K [2D:3D]=V

    # ---- head-stack Q/K/V once (sublane concat): rows ordered (head, batch, seq) ----
    qs = jnp.concatenate([qkv[:, h * DK:(h + 1) * DK] for h in range(H)], axis=0)
    ks = jnp.concatenate([qkv[:, D + h * DK:D + (h + 1) * DK] for h in range(H)], axis=0)
    vs = jnp.concatenate([qkv[:, 2 * D + h * DK:2 * D + (h + 1) * DK] for h in range(H)], axis=0)

    # ---- single block-diagonal score matmul; precomputed additive bias kills
    #      off-diagonal (cross-head / cross-batch) blocks and applies the user mask ----
    scores = _mm_t(qs, ks) * (1.0 / math.sqrt(DK)) + bias_ref[...]   # (HBS, HBS)

    # ---- one wide softmax over all (head, batch) rows; exact divide for parity ----
    m = jnp.max(scores, axis=-1, keepdims=True)
    e = jnp.exp(scores - m)
    probs = e / jnp.sum(e, axis=-1, keepdims=True)

    # ---- single PV matmul ----
    hv = _mm(probs, vs)                     # (HBS, DK)

    # ---- combine heads with one lane relayout, then ONE W_o matmul ----
    attn_cat = jnp.concatenate([hv[h * BS:(h + 1) * BS, :] for h in range(H)], axis=1)
    attn = _mm(attn_cat, wo_ref[...]) + bo  # (BS, D)

    # ---- residual + LayerNorm 1 ----
    x1 = _layernorm(x + attn, g1, be1)

    # ---- position-wise feed-forward + residual + LayerNorm 2 ----
    hdn = jnp.maximum(_mm(x1, w1_ref[...]) + b1, 0.0)
    ff = _mm(hdn, w2_ref[...]) + b2
    out_ref[...] = _layernorm(x1 + ff, g2, be2).astype(out_ref.dtype)


def pack_params(params):
    """One-time, host-side parameter fusion (hoisted out of the per-call path)."""
    (wq, bq, wk, bk, wv, bv, wo, bo, w1, b1, w2, b2, g1, be1, g2, be2) = params
    wqkv = jnp.concatenate([wq, wk, wv], axis=1)             # (D, 3D)
    bqkv = jnp.concatenate([bq, bk, bv], axis=1)             # (1, 3D)
    pad = lambda v: jnp.pad(v, ((0, 0), (0, 3 * D - v.shape[1])))
    vecs = jnp.concatenate(
        [bqkv, pad(bo), pad(b1), pad(b2), pad(g1), pad(be1), pad(g2), pad(be2)],
        axis=0)                                              # (8, 3D)
    return (wqkv, wo, w1, w2, vecs)


def _attn_bias(mask):
    """(B,S,S) {0,1} mask -> (HBS, HBS) additive bias for the block-diag layout."""
    userb = jnp.where(mask == 0.0, -1.0e9, 0.0).astype(jnp.float32)       # (B,S,S)
    ub = jnp.broadcast_to(userb[None], (H, B, S, S)).reshape(H * B, S, S)
    blk = jnp.eye(H * B, dtype=bool)                                      # block-diag
    bias = jnp.where(blk[:, None, :, None], ub[:, :, None, :], -1.0e9)    # (HB,S,HB,S)
    return bias.reshape(HBS, HBS)


@jax.jit
def encoder_layer(x, mask, packed):
    """x: (B,S,D) f32, mask: (B,S,S) {0,1} f32. Returns (B,S,D) f32."""
    wqkv, wo, w1, w2, vecs = packed
    Bx, Sx, Dx = x.shape
    x2 = x.reshape(Bx * Sx, Dx)             # batch folded into matmul rows
    bias = _attn_bias(mask)                 # only per-call prep (input-dependent)

    vmem = pl.BlockSpec(memory_space=pltpu.MemorySpace.VMEM)
    out = pl.pallas_call(
        encoder_layer_kernel,
        out_shape=jax.ShapeDtypeStruct((Bx * Sx, Dx), jnp.float32),
        in_specs=[vmem] * 7,
        out_specs=vmem,
    )(x2, bias, wqkv, wo, w1, w2, vecs)
    return out.reshape(Bx, Sx, Dx)


def init_params(key):
    ks = jax.random.split(key, 6)

    def lin(k, fan_in, fan_out):
        bound = 1.0 / math.sqrt(fan_in)
        kw, kb = jax.random.split(k)
        w = jax.random.uniform(kw, (fan_in, fan_out), jnp.float32, -bound, bound)
        b = jax.random.uniform(kb, (1, fan_out), jnp.float32, -bound, bound)
        return w, b

    wq, bq = lin(ks[0], D, D)
    wk, bk = lin(ks[1], D, D)
    wv, bv = lin(ks[2], D, D)
    wo, bo = lin(ks[3], D, D)
    w1, b1 = lin(ks[4], D, DFF)
    w2, b2 = lin(ks[5], DFF, D)
    g1 = jnp.ones((1, D), jnp.float32)
    be1 = jnp.zeros((1, D), jnp.float32)
    g2 = jnp.ones((1, D), jnp.float32)
    be2 = jnp.zeros((1, D), jnp.float32)
    return (wq, bq, wk, bk, wv, bv, wo, bo, w1, b1, w2, b2, g1, be1, g2, be2)


def encoder_layer_ref(x, mask, params):
    """Pure-JAX reference matching the PyTorch EncoderLayer (eval mode)."""
    (wq, bq, wk, bk, wv, bv, wo, bo, w1, b1, w2, b2, g1, be1, g2, be2) = params

    def split(y):  # (B,S,D) -> (B,H,S,DK)
        return y.reshape(B, S, H, DK).transpose(0, 2, 1, 3)

    q = split(x @ wq + bq)
    k = split(x @ wk + bk)
    v = split(x @ wv + bv)
    sc = jnp.einsum('bhqd,bhkd->bhqk', q, k) / math.sqrt(DK)
    sc = jnp.where(mask[:, None, :, :] == 0.0, -1.0e9, sc)
    p = jax.nn.softmax(sc, axis=-1)
    o = jnp.einsum('bhqk,bhkd->bhqd', p, v)
    o = o.transpose(0, 2, 1, 3).reshape(B, S, D)
    attn = o @ wo + bo

    def ln(z, g, bb):
        mu = z.mean(-1, keepdims=True)
        var = ((z - mu) ** 2).mean(-1, keepdims=True)
        return (z - mu) / jnp.sqrt(var + EPS) * g + bb

    x1 = ln(x + attn, g1, be1)
    ff = jnp.maximum(x1 @ w1 + b1, 0.0) @ w2 + b2
    return ln(x1 + ff, g2, be2)


if __name__ == "__main__":
    key = jax.random.PRNGKey(0)
    kx, kp = jax.random.split(key)
    x = jax.random.normal(kx, (B, S, D), jnp.float32)
    # causal-style mask, broadcast over heads (1 = attend, 0 = masked out)
    mask = jnp.broadcast_to(jnp.tril(jnp.ones((S, S), jnp.float32)), (B, S, S))
    params = init_params(kp)
    packed = pack_params(params)     # one-time packing, hoisted out of the call

    out = encoder_layer(x, mask, packed)
    jax.block_until_ready(out)

    assert out.shape == (B, S, D)
    assert bool(jnp.all(jnp.isfinite(out)))

    with jax.default_matmul_precision("highest"):
        ref = encoder_layer_ref(x, mask, params)
    assert bool(jnp.allclose(out, ref, atol=1e-3, rtol=1e-3)), \
        float(jnp.max(jnp.abs(out - ref)))

    print("KERNEL_OK")
</pallas_src>

<mosaic_0001>
module attributes {stable_mosaic.version = 11 : i64} {
  func.func @encoder_layer_kernel(%arg0: memref<16x32xf32, #tpu.memory_space<vmem>>, %arg1: memref<64x64xf32, #tpu.memory_space<vmem>>, %arg2: memref<32x96xf32, #tpu.memory_space<vmem>>, %arg3: memref<32x32xf32, #tpu.memory_space<vmem>>, %arg4: memref<32x64xf32, #tpu.memory_space<vmem>>, %arg5: memref<64x32xf32, #tpu.memory_space<vmem>>, %arg6: memref<8x96xf32, #tpu.memory_space<vmem>>, %arg7: memref<16x32xf32, #tpu.memory_space<vmem>>) attributes {dimension_semantics = [], scalar_prefetch = 0 : i64, scratch_operands = 0 : i64, tpu.core_type = #tpu.core_type<tc>} {
    %c0 = arith.constant 0 : index
    %c0_0 = arith.constant 0 : index
    %0 = vector.load %arg0[%c0, %c0_0] : memref<16x32xf32, #tpu.memory_space<vmem>>, vector<16x32xf32>
    %c0_1 = arith.constant 0 : index
    %c0_2 = arith.constant 0 : index
    %1 = vector.load %arg6[%c0_1, %c0_2] : memref<8x96xf32, #tpu.memory_space<vmem>>, vector<8x96xf32>
    %2 = vector.extract_strided_slice %1 {offsets = [0, 0], sizes = [1, 96], strides = [1, 1]} : vector<8x96xf32> to vector<1x96xf32>
    %3 = vector.extract_strided_slice %1 {offsets = [1, 0], sizes = [1, 32], strides = [1, 1]} : vector<8x96xf32> to vector<1x32xf32>
    %4 = vector.extract_strided_slice %1 {offsets = [2, 0], sizes = [1, 64], strides = [1, 1]} : vector<8x96xf32> to vector<1x64xf32>
    %5 = vector.extract_strided_slice %1 {offsets = [3, 0], sizes = [1, 32], strides = [1, 1]} : vector<8x96xf32> to vector<1x32xf32>
    %6 = vector.extract_strided_slice %1 {offsets = [4, 0], sizes = [1, 32], strides = [1, 1]} : vector<8x96xf32> to vector<1x32xf32>
    %7 = vector.extract_strided_slice %1 {offsets = [5, 0], sizes = [1, 32], strides = [1, 1]} : vector<8x96xf32> to vector<1x32xf32>
    %8 = vector.extract_strided_slice %1 {offsets = [6, 0], sizes = [1, 32], strides = [1, 1]} : vector<8x96xf32> to vector<1x32xf32>
    %9 = vector.extract_strided_slice %1 {offsets = [7, 0], sizes = [1, 32], strides = [1, 1]} : vector<8x96xf32> to vector<1x32xf32>
    %c0_3 = arith.constant 0 : index
    %c0_4 = arith.constant 0 : index
    %10 = vector.load %arg2[%c0_3, %c0_4] : memref<32x96xf32, #tpu.memory_space<vmem>>, vector<32x96xf32>
    %cst = arith.constant dense<0.000000e+00> : vector<16x96xf32>
    %11 = tpu.matmul %0, %10, %cst {dimension_numbers = #tpu.dot_dimension_numbers<[1], [0], [0], [1], [0, 0, 1, 1], [], []>, precision = #tpu.contract_precision<fp32>} : vector<16x32xf32>, vector<32x96xf32>, vector<16x96xf32> -> vector<16x96xf32>
    %12 = vector.broadcast %2 : vector<1x96xf32> to vector<16x96xf32>
    %13 = arith.addf %11, %12 : vector<16x96xf32>
    %14 = vector.extract_strided_slice %13 {offsets = [0, 0], sizes = [16, 8], strides = [1, 1]} : vector<16x96xf32> to vector<16x8xf32>
    %15 = vector.extract_strided_slice %13 {offsets = [0, 8], sizes = [16, 8], strides = [1, 1]} : vector<16x96xf32> to vector<16x8xf32>
    %16 = vector.extract_strided_slice %13 {offsets = [0, 16], sizes = [16, 8], strides = [1, 1]} : vector<16x96xf32> to vector<16x8xf32>
    %17 = vector.extract_strided_slice %13 {offsets = [0, 24], sizes = [16, 8], strides = [1, 1]} : vector<16x96xf32> to vector<16x8xf32>
    %18 = tpu.concatenate %14, %15, %16, %17 in 0 : vector<16x8xf32>, vector<16x8xf32>, vector<16x8xf32>, vector<16x8xf32> -> vector<64x8xf32>
    %19 = vector.extract_strided_slice %13 {offsets = [0, 32], sizes = [16, 8], strides = [1, 1]} : vector<16x96xf32> to vector<16x8xf32>
    %20 = vector.extract_strided_slice %13 {offsets = [0, 40], sizes = [16, 8], strides = [1, 1]} : vector<16x96xf32> to vector<16x8xf32>
    %21 = vector.extract_strided_slice %13 {offsets = [0, 48], sizes = [16, 8], strides = [1, 1]} : vector<16x96xf32> to vector<16x8xf32>
    %22 = vector.extract_strided_slice %13 {offsets = [0, 56], sizes = [16, 8], strides = [1, 1]} : vector<16x96xf32> to vector<16x8xf32>
    %23 = tpu.concatenate %19, %20, %21, %22 in 0 : vector<16x8xf32>, vector<16x8xf32>, vector<16x8xf32>, vector<16x8xf32> -> vector<64x8xf32>
    %24 = vector.extract_strided_slice %13 {offsets = [0, 64], sizes = [16, 8], strides = [1, 1]} : vector<16x96xf32> to vector<16x8xf32>
    %25 = vector.extract_strided_slice %13 {offsets = [0, 72], sizes = [16, 8], strides = [1, 1]} : vector<16x96xf32> to vector<16x8xf32>
    %26 = vector.extract_strided_slice %13 {offsets = [0, 80], sizes = [16, 8], strides = [1, 1]} : vector<16x96xf32> to vector<16x8xf32>
    %27 = vector.extract_strided_slice %13 {offsets = [0, 88], sizes = [16, 8], strides = [1, 1]} : vector<16x96xf32> to vector<16x8xf32>
    %28 = tpu.concatenate %24, %25, %26, %27 in 0 : vector<16x8xf32>, vector<16x8xf32>, vector<16x8xf32>, vector<16x8xf32> -> vector<64x8xf32>
    %cst_5 = arith.constant dense<0.000000e+00> : vector<64x64xf32>
    %29 = tpu.matmul %18, %23, %cst_5 {dimension_numbers = #tpu.dot_dimension_numbers<[1], [1], [0], [0], [0, 0, 1, 0], [], []>, precision = #tpu.contract_precision<fp32>} : vector<64x8xf32>, vector<64x8xf32>, vector<64x64xf32> -> vector<64x64xf32>
    %cst_6 = arith.constant 0.353553385 : f32
    %30 = vector.broadcast %cst_6 : f32 to vector<64x64xf32>
    %31 = arith.mulf %29, %30 : vector<64x64xf32>
    %c0_7 = arith.constant 0 : index
    %c0_8 = arith.constant 0 : index
    %32 = vector.load %arg1[%c0_7, %c0_8] : memref<64x64xf32, #tpu.memory_space<vmem>>, vector<64x64xf32>
    %33 = arith.addf %31, %32 : vector<64x64xf32>
    %cst_9 = arith.constant dense<0xFF800000> : vector<64xf32>
    %34 = vector.multi_reduction <maximumf>, %33, %cst_9 [1] : vector<64x64xf32> to vector<64xf32>
    %35 = vector.shape_cast %34 : vector<64xf32> to vector<64x1xf32>
    %36 = vector.broadcast %35 : vector<64x1xf32> to vector<64x64xf32>
    %37 = arith.subf %33, %36 : vector<64x64xf32>
    %38 = math.exp %37 : vector<64x64xf32>
    %cst_10 = arith.constant dense<0.000000e+00> : vector<64xf32>
    %39 = vector.multi_reduction <add>, %38, %cst_10 [1] : vector<64x64xf32> to vector<64xf32>
    %40 = vector.shape_cast %39 : vector<64xf32> to vector<64x1xf32>
    %41 = vector.broadcast %40 : vector<64x1xf32> to vector<64x64xf32>
    %42 = arith.divf %38, %41 : vector<64x64xf32>
    %cst_11 = arith.constant dense<0.000000e+00> : vector<64x8xf32>
    %43 = tpu.matmul %42, %28, %cst_11 {dimension_numbers = #tpu.dot_dimension_numbers<[1], [0], [0], [1], [0, 0, 1, 1], [], []>, precision = #tpu.contract_precision<fp32>} : vector<64x64xf32>, vector<64x8xf32>, vector<64x8xf32> -> vector<64x8xf32>
    %44 = vector.extract_strided_slice %43 {offsets = [0, 0], sizes = [16, 8], strides = [1, 1]} : vector<64x8xf32> to vector<16x8xf32>
    %45 = vector.extract_strided_slice %43 {offsets = [16, 0], sizes = [16, 8], strides = [1, 1]} : vector<64x8xf32> to vector<16x8xf32>
    %46 = vector.extract_strided_slice %43 {offsets = [32, 0], sizes = [16, 8], strides = [1, 1]} : vector<64x8xf32> to vector<16x8xf32>
    %47 = vector.extract_strided_slice %43 {offsets = [48, 0], sizes = [16, 8], strides = [1, 1]} : vector<64x8xf32> to vector<16x8xf32>
    %48 = tpu.concatenate %44, %45, %46, %47 in 1 : vector<16x8xf32>, vector<16x8xf32>, vector<16x8xf32>, vector<16x8xf32> -> vector<16x32xf32>
    %c0_12 = arith.constant 0 : index
    %c0_13 = arith.constant 0 : index
    %49 = vector.load %arg3[%c0_12, %c0_13] : memref<32x32xf32, #tpu.memory_space<vmem>>, vector<32x32xf32>
    %cst_14 = arith.constant dense<0.000000e+00> : vector<16x32xf32>
    %50 = tpu.matmul %48, %49, %cst_14 {dimension_numbers = #tpu.dot_dimension_numbers<[1], [0], [0], [1], [0, 0, 1, 1], [], []>, precision = #tpu.contract_precision<fp32>} : vector<16x32xf32>, vector<32x32xf32>, vector<16x32xf32> -> vector<16x32xf32>
    %51 = vector.broadcast %3 : vector<1x32xf32> to vector<16x32xf32>
    %52 = arith.addf %50, %51 : vector<16x32xf32>
    %53 = arith.addf %0, %52 : vector<16x32xf32>
    %cst_15 = arith.constant dense<0.000000e+00> : vector<16xf32>
    %54 = vector.multi_reduction <add>, %53, %cst_15 [1] : vector<16x32xf32> to vector<16xf32>
    %55 = vector.shape_cast %54 : vector<16xf32> to vector<16x1xf32>
    %cst_16 = arith.constant 3.200000e+01 : f32
    %56 = vector.broadcast %cst_16 : f32 to vector<16x1xf32>
    %57 = arith.divf %55, %56 : vector<16x1xf32>
    %58 = vector.broadcast %57 : vector<16x1xf32> to vector<16x32xf32>
    %59 = arith.subf %53, %58 : vector<16x32xf32>
    %60 = arith.mulf %59, %59 : vector<16x32xf32>
    %cst_17 = arith.constant dense<0.000000e+00> : vector<16xf32>
    %61 = vector.multi_reduction <add>, %60, %cst_17 [1] : vector<16x32xf32> to vector<16xf32>
    %62 = vector.shape_cast %61 : vector<16xf32> to vector<16x1xf32>
    %cst_18 = arith.constant 3.200000e+01 : f32
    %63 = vector.broadcast %cst_18 : f32 to vector<16x1xf32>
    %64 = arith.divf %62, %63 : vector<16x1xf32>
    %65 = vector.broadcast %57 : vector<16x1xf32> to vector<16x32xf32>
    %66 = arith.subf %53, %65 : vector<16x32xf32>
    %cst_19 = arith.constant 9.99999974E-6 : f32
    %67 = vector.broadcast %cst_19 : f32 to vector<16x1xf32>
    %68 = arith.addf %64, %67 : vector<16x1xf32>
    %69 = math.rsqrt %68 : vector<16x1xf32>
    %70 = vector.broadcast %69 : vector<16x1xf32> to vector<16x32xf32>
    %71 = arith.mulf %66, %70 : vector<16x32xf32>
    %72 = vector.broadcast %6 : vector<1x32xf32> to vector<16x32xf32>
    %73 = arith.mulf %71, %72 : vector<16x32xf32>
    %74 = vector.broadcast %7 : vector<1x32xf32> to vector<16x32xf32>
    %75 = arith.addf %73, %74 : vector<16x32xf32>
    %c0_20 = arith.constant 0 : index
    %c0_21 = arith.constant 0 : index
    %76 = vector.load %arg4[%c0_20, %c0_21] : memref<32x64xf32, #tpu.memory_space<vmem>>, vector<32x64xf32>
    %cst_22 = arith.constant dense<0.000000e+00> : vector<16x64xf32>
    %77 = tpu.matmul %75, %76, %cst_22 {dimension_numbers = #tpu.dot_dimension_numbers<[1], [0], [0], [1], [0, 0, 1, 1], [], []>, precision = #tpu.contract_precision<fp32>} : vector<16x32xf32>, vector<32x64xf32>, vector<16x64xf32> -> vector<16x64xf32>
    %78 = vector.broadcast %4 : vector<1x64xf32> to vector<16x64xf32>
    %79 = arith.addf %77, %78 : vector<16x64xf32>
    %cst_23 = arith.constant 0.000000e+00 : f32
    %80 = vector.broadcast %cst_23 : f32 to vector<16x64xf32>
    %81 = arith.maximumf %79, %80 : vector<16x64xf32>
    %c0_24 = arith.constant 0 : index
    %c0_25 = arith.constant 0 : index
    %82 = vector.load %arg5[%c0_24, %c0_25] : memref<64x32xf32, #tpu.memory_space<vmem>>, vector<64x32xf32>
    %cst_26 = arith.constant dense<0.000000e+00> : vector<16x32xf32>
    %83 = tpu.matmul %81, %82, %cst_26 {dimension_numbers = #tpu.dot_dimension_numbers<[1], [0], [0], [1], [0, 0, 1, 1], [], []>, precision = #tpu.contract_precision<fp32>} : vector<16x64xf32>, vector<64x32xf32>, vector<16x32xf32> -> vector<16x32xf32>
    %84 = vector.broadcast %5 : vector<1x32xf32> to vector<16x32xf32>
    %85 = arith.addf %83, %84 : vector<16x32xf32>
    %86 = arith.addf %75, %85 : vector<16x32xf32>
    %cst_27 = arith.constant dense<0.000000e+00> : vector<16xf32>
    %87 = vector.multi_reduction <add>, %86, %cst_27 [1] : vector<16x32xf32> to vector<16xf32>
    %88 = vector.shape_cast %87 : vector<16xf32> to vector<16x1xf32>
    %cst_28 = arith.constant 3.200000e+01 : f32
    %89 = vector.broadcast %cst_28 : f32 to vector<16x1xf32>
    %90 = arith.divf %88, %89 : vector<16x1xf32>
    %91 = vector.broadcast %90 : vector<16x1xf32> to vector<16x32xf32>
    %92 = arith.subf %86, %91 : vector<16x32xf32>
    %93 = arith.mulf %92, %92 : vector<16x32xf32>
    %cst_29 = arith.constant dense<0.000000e+00> : vector<16xf32>
    %94 = vector.multi_reduction <add>, %93, %cst_29 [1] : vector<16x32xf32> to vector<16xf32>
    %95 = vector.shape_cast %94 : vector<16xf32> to vector<16x1xf32>
    %cst_30 = arith.constant 3.200000e+01 : f32
    %96 = vector.broadcast %cst_30 : f32 to vector<16x1xf32>
    %97 = arith.divf %95, %96 : vector<16x1xf32>
    %98 = vector.broadcast %90 : vector<16x1xf32> to vector<16x32xf32>
    %99 = arith.subf %86, %98 : vector<16x32xf32>
    %cst_31 = arith.constant 9.99999974E-6 : f32
    %100 = vector.broadcast %cst_31 : f32 to vector<16x1xf32>
    %101 = arith.addf %97, %100 : vector<16x1xf32>
    %102 = math.rsqrt %101 : vector<16x1xf32>
    %103 = vector.broadcast %102 : vector<16x1xf32> to vector<16x32xf32>
    %104 = arith.mulf %99, %103 : vector<16x32xf32>
    %105 = vector.broadcast %8 : vector<1x32xf32> to vector<16x32xf32>
    %106 = arith.mulf %104, %105 : vector<16x32xf32>
    %107 = vector.broadcast %9 : vector<1x32xf32> to vector<16x32xf32>
    %108 = arith.addf %106, %107 : vector<16x32xf32>
    %c0_32 = arith.constant 0 : index
    %c0_33 = arith.constant 0 : index
    %109 = vector.load %arg7[%c0_32, %c0_33] : memref<16x32xf32, #tpu.memory_space<vmem>>, vector<16x32xf32>
    tpu.vector_store %arg7[%c0_32, %c0_33], %108 {strides = array<i32>} : memref<16x32xf32, #tpu.memory_space<vmem>>, vector<16x32xf32>,
    return
  }
}

</mosaic_0001>

<llo_original>
// kernel: encoder_layer.1
$region0: #{encoder_layer.1}
  #allocation0 [shape = 'u32[]', space=smem, size = 0x4, offset = 0x4, fixed_abs, tag = 'smem constant byte address 0x4 - core index']
  #allocation1 [shape = 'u32[144,128]{1,0:T(1,128)}', space=vmem, size = 0x12000, scoped, tag = 'internal scratch']
  %s0 = inlined_call_operand.vmem [shape: f32[16,32], index: 0, kind: input, shape index: {}]
  %s1 = inlined_call_operand.vmem [shape: f32[64,64], index: 1, kind: input, shape index: {}]
  %s2 = inlined_call_operand.vmem [shape: f32[32,96], index: 2, kind: input, shape index: {}]
  %s3 = inlined_call_operand.vmem [shape: f32[32,32], index: 3, kind: input, shape index: {}]
  %s4 = inlined_call_operand.vmem [shape: f32[32,64], index: 4, kind: input, shape index: {}]
  %s5 = inlined_call_operand.vmem [shape: f32[64,32], index: 5, kind: input, shape index: {}]
  %s6 = inlined_call_operand.vmem [shape: f32[8,96], index: 6, kind: input, shape index: {}]
  %s7 = inlined_call_operand.hbm [shape: f32[16,32], index: 7, kind: output, shape index: {}]
  %s8 = sld [smem:[#allocation0]]
  $region38: #{encoder_layer.1} parent=0
    _
  %s10 = ssub.s32 1, %s8
  %s11 = scalar_select 0, %s10, %s8
  $region1: #{encoder_layer.1} parent=0
    #allocation2 [shape = 'u8[8192]{0}', space=vmem, size = 0x2000, scoped, tag = 'output window, operand 0, single buffered']
    #allocation3 [shape = 's32[1]{0}', space=sflag, size = 0x4, scoped, tag = 'scoped memory for encoder_layer.1']
    %12 = vsyncpa [#allocation3], 0
    // Predicated region
    $region2: #{encoder_layer.1} parent=1 // pred_check
      _
    $region3: #{encoder_layer.1} parent=1 // pred_check_branch
      %14 = sbr.rel (0) target = $region5
    $region4: #{encoder_layer.1} parent=1 // pred_region
      _
    $region5: #{encoder_layer.1} parent=1 // pred_fallthru
      _
    // Predicated region
    $region6: #{encoder_layer.1} parent=1 // pred_check
      _
    $region7: #{encoder_layer.1} parent=1 // pred_check_branch
      %16 = sbr.rel (0) target = $region9
    $region8: #{encoder_layer.1} parent=1 // pred_region
      _
    $region9: #{encoder_layer.1} parent=1 // pred_fallthru
      _
    // Predicated region
    $region10: #{encoder_layer.1} parent=1 // pred_check
      _
    $region11: #{encoder_layer.1} parent=1 // pred_check_branch
      %18 = sbr.rel (0) target = $region13
    $region12: #{encoder_layer.1} parent=1 // pred_region
      _
    $region13: #{encoder_layer.1} parent=1 // pred_fallthru
      _
    // Predicated region
    $region14: #{encoder_layer.1} parent=1 // pred_check
      _
    $region15: #{encoder_layer.1} parent=1 // pred_check_branch
      %20 = sbr.rel (0) target = $region17
    $region16: #{encoder_layer.1} parent=1 // pred_region
      _
    $region17: #{encoder_layer.1} parent=1 // pred_fallthru
      _
    // Predicated region
    $region18: #{encoder_layer.1} parent=1 // pred_check
      _
    $region19: #{encoder_layer.1} parent=1 // pred_check_branch
      %22 = sbr.rel (0) target = $region21
    $region20: #{encoder_layer.1} parent=1 // pred_region
      _
    $region21: #{encoder_layer.1} parent=1 // pred_fallthru
      _
    // Predicated region
    $region22: #{encoder_layer.1} parent=1 // pred_check
      _
    $region23: #{encoder_layer.1} parent=1 // pred_check_branch
      %24 = sbr.rel (0) target = $region25
    $region24: #{encoder_layer.1} parent=1 // pred_region
      _
    $region25: #{encoder_layer.1} parent=1 // pred_fallthru
      _
    // Predicated region
    $region26: #{encoder_layer.1} parent=1 // pred_check
      _
    $region27: #{encoder_layer.1} parent=1 // pred_check_branch
      %26 = sbr.rel (0) target = $region29
    $region28: #{encoder_layer.1} parent=1 // pred_region
      _
    $region29: #{encoder_layer.1} parent=1 // pred_fallthru
      _
    %v27 = vld [vmem:[%s0] sm:$0xff]
    %v28 = vld [vmem:[%s0 + $0x8] sm:$0xff]
    %v29 = vld [vmem:[%s6] sm:$0xff]
    %v30 = vld [vmem:[%s2] sm:$0xff]
    %v31 = vld [vmem:[%s2 + $0x8] sm:$0xff]
    %v32 = vld [vmem:[%s2 + $0x10] sm:$0xff]
    %v33 = vld [vmem:[%s2 + $0x18] sm:$0xff]
    %v34 = vlaneseq
    %v35 = vshrl.u32 %v34, 7
    %v36 = vsub.s32 0, %v35
    %v37 = vrot.slane %v29, %v36
    %vm38 = vcmask 261120
    %v40 = vsel %vm38, %v27, 0
    %v43 = vsel %vm38, %v28, 0
    %45 = vmatprep.subr.mxu0 0.0
    %v46 = vand.u32 %v30, 4294901760
    %47 = vmatpush1.msra.mxu0 %v46
    %48 = vmatprep.subr.mxu0 0.0
    %v49 = vand.u32 %v31, 4294901760
    %50 = vmatpush1.msra.mxu0 %v49
    %51 = vmatprep.subr.mxu0 0.0
    %v52 = vand.u32 %v32, 4294901760
    %53 = vmatpush1.msra.mxu0 %v52
    %54 = vmatprep.subr.mxu0 0.0
    %v55 = vand.u32 %v33, 4294901760
    %56 = vmatpush1.msra.mxu0 %v55
    %57 = vmatprep.subr.mxu0 0.0
    %58 = vmatpush1.msra.mxu0 0.0
    %59 = vmatprep.subr.mxu0 0.0
    %60 = vmatpush1.msra.mxu0 0.0
    %61 = vmatprep.subr.mxu0 0.0
    %62 = vmatpush1.msra.mxu0 0.0
    %63 = vmatprep.subr.mxu0 0.0
    %64 = vmatpush1.msra.mxu0 0.0
    %65 = vmatprep.subr.mxu0 0.0
    %66 = vmatpush1.msra.mxu0 0.0
    %67 = vmatprep.subr.mxu0 0.0
    %68 = vmatpush1.msra.mxu0 0.0
    %69 = vmatprep.subr.mxu0 0.0
    %70 = vmatpush1.msra.mxu0 0.0
    %71 = vmatprep.subr.mxu0 0.0
    %72 = vmatpush1.msra.mxu0 0.0
    %73 = vmatprep.subr.mxu0 0.0
    %74 = vmatpush1.msra.mxu0 0.0
    %75 = vmatprep.subr.mxu0 0.0
    %76 = vmatpush1.msra.mxu0 0.0
    %77 = vmatprep.subr.mxu0 0.0
    %78 = vmatpush1.msra.mxu0 0.0
    %79 = vmatprep.subr.mxu0 0.0
    %80 = vmatpush1.msra.mxu0 0.0
    %81 = vmatprep.subr.mxu0 0.0
    %82 = vmatpush1.msra.mxu0 0.0
    %83 = vmatprep.subr.mxu0 0.0
    %84 = vmatpush1.msra.mxu0 0.0
    %85 = vmatprep.subr.mxu0 0.0
    %86 = vmatpush1.msra.mxu0 0.0
    %87 = vmatprep.subr.mxu0 0.0
    %88 = vmatpush1.msra.mxu0 0.0
    %89 = vmatprep.subr.mxu0 0.0
    %90 = vmatpush1.msra.mxu0 0.0
    %91 = vmatprep.subr.mxu0 0.0
    %92 = vmatpush1.msra.mxu0 0.0
    %93 = vmatprep.subr.mxu0 0.0
    %94 = vmatpush1.msra.mxu0 0.0
    %95 = vmatprep.subr.mxu0 0.0
    %96 = vmatpush1.msra.mxu0 0.0
    %97 = vmatprep.subr.mxu0 0.0
    %98 = vmatpush1.msra.mxu0 0.0
    %99 = vmatprep.subr.mxu0 0.0
    %100 = vmatpush1.msra.mxu0 0.0
    %101 = vmatprep.subr.mxu0 0.0
    %102 = vmatpush1.msra.mxu0 0.0
    %103 = vmatprep.subr.mxu0 0.0
    %104 = vmatpush1.msra.mxu0 0.0
    %105 = vmatprep.subr.mxu0 0.0
    %106 = vmatpush1.msra.mxu0 0.0
    %107 = vmatprep.subr.mxu0 0.0
    %108 = vmatpush1.msra.mxu0 0.0
    %109 = vmatprep.subr.mxu0 0.0
    %110 = vmatpush1.msra.mxu0 0.0
    %111 = vmatprep.subr.mxu0 0.0
    %112 = vmatpush1.msra.mxu0 0.0
    %113 = vmatprep.mubr.f32.mxu0 0.0
    %v114 = vand.u32 %v40, 4294901760
    %v115 = vsub.f32 %v40, %v114
    %v116 = vand.u32 %v115, 4294901760
    %v117 = vsub.f32 %v115, %v116
    %v118 = vand.u32 %v117, 4294901760
    %119 = vmatmul.mubr.f32.gmra.mrb[0].mxu0 %v118
    %v120 = vpop.f32.mrb[0].mxu0
    %v121 = vadd.f32 %v37, %v120
    %v122 = vpop.f32.mrb[0].mxu0
    %123 = vmatprep.mubr.f32.mxu0 0.0
    %v124 = vand.u32 %v43, 4294901760
    %v125 = vsub.f32 %v43, %v124
    %v126 = vand.u32 %v125, 4294901760
    %v127 = vsub.f32 %v125, %v126
    %v128 = vand.u32 %v127, 4294901760
    %129 = vmatmul.mubr.f32.gmra.mrb[0].mxu0 %v128
    %v130 = vpop.f32.mrb[0].mxu0
    %v131 = vadd.f32 %v37, %v130
    %v132 = vpop.f32.mrb[0].mxu0
    %133 = vdwg.mxu0
    %134 = vmatprep.subr.mxu0 0.0
    %v135 = vand.u32 %v30, 4294901760
    %v136 = vsub.f32 %v30, %v135
    %v137 = vand.u32 %v136, 4294901760
    %v138 = vsub.f32 %v136, %v137
    %v139 = vand.u32 %v138, 4294901760
    %140 = vmatpush1.msra.mxu0 %v139
    %141 = vmatprep.subr.mxu0 0.0
    %v142 = vand.u32 %v31, 4294901760
    %v143 = vsub.f32 %v31, %v142
    %v144 = vand.u32 %v143, 4294901760
    %v145 = vsub.f32 %v143, %v144
    %v146 = vand.u32 %v145, 4294901760
    %147 = vmatpush1.msra.mxu0 %v146
    %148 = vmatprep.subr.mxu0 0.0
    %v149 = vand.u32 %v32, 4294901760
    %v150 = vsub.f32 %v32, %v149
    %v151 = vand.u32 %v150, 4294901760
    %v152 = vsub.f32 %v150, %v151
    %v153 = vand.u32 %v152, 4294901760
    %154 = vmatpush1.msra.mxu0 %v153
    %155 = vmatprep.subr.mxu0 0.0
    %v156 = vand.u32 %v33, 4294901760
    %v157 = vsub.f32 %v33, %v156
    %v158 = vand.u32 %v157, 4294901760
    %v159 = vsub.f32 %v157, %v158
    %v160 = vand.u32 %v159, 4294901760
    %161 = vmatpush1.msra.mxu0 %v160
    %162 = vmatprep.subr.mxu0 0.0
    %163 = vmatpush1.msra.mxu0 0.0
    %164 = vmatprep.subr.mxu0 0.0
    %165 = vmatpush1.msra.mxu0 0.0
    %166 = vmatprep.subr.mxu0 0.0
    %167 = vmatpush1.msra.mxu0 0.0
    %168 = vmatprep.subr.mxu0 0.0
    %169 = vmatpush1.msra.mxu0 0.0
    %170 = vmatprep.subr.mxu0 0.0
    %171 = vmatpush1.msra.mxu0 0.0
    %172 = vmatprep.subr.mxu0 0.0
    %173 = vmatpush1.msra.mxu0 0.0
    %174 = vmatprep.subr.mxu0 0.0
    %175 = vmatpush1.msra.mxu0 0.0
    %176 = vmatprep.subr.mxu0 0.0
    %177 = vmatpush1.msra.mxu0 0.0
    %178 = vmatprep.subr.mxu0 0.0
    %179 = vmatpush1.msra.mxu0 0.0
    %180 = vmatprep.subr.mxu0 0.0
    %181 = vmatpush1.msra.mxu0 0.0
    %182 = vmatprep.subr.mxu0 0.0
    %183 = vmatpush1.msra.mxu0 0.0
    %184 = vmatprep.subr.mxu0 0.0
    %185 = vmatpush1.msra.mxu0 0.0
    %186 = vmatprep.subr.mxu0 0.0
    %187 = vmatpush1.msra.mxu0 0.0
    %188 = vmatprep.subr.mxu0 0.0
    %189 = vmatpush1.msra.mxu0 0.0
    %190 = vmatprep.subr.mxu0 0.0
    %191 = vmatpush1.msra.mxu0 0.0
    %192 = vmatprep.subr.mxu0 0.0
    %193 = vmatpush1.msra.mxu0 0.0
    %194 = vmatprep.subr.mxu0 0.0
    %195 = vmatpush1.msra.mxu0 0.0
    %196 = vmatprep.subr.mxu0 0.0
    %197 = vmatpush1.msra.mxu0 0.0
    %198 = vmatprep.subr.mxu0 0.0
    %199 = vmatpush1.msra.mxu0 0.0
    %200 = vmatprep.subr.mxu0 0.0
    %201 = vmatpush1.msra.mxu0 0.0
    %202 = vmatprep.subr.mxu0 0.0
    %203 = vmatpush1.msra.mxu0 0.0
    %204 = vmatprep.subr.mxu0 0.0
    %205 = vmatpush1.msra.mxu0 0.0
    %206 = vmatprep.subr.mxu0 0.0
    %207 = vmatpush1.msra.mxu0 0.0
    %208 = vmatprep.subr.mxu0 0.0
    %209 = vmatpush1.msra.mxu0 0.0
    %210 = vmatprep.subr.mxu0 0.0
    %211 = vmatpush1.msra.mxu0 0.0
    %212 = vmatprep.subr.mxu0 0.0
    %213 = vmatpush1.msra.mxu0 0.0
    %214 = vmatprep.subr.mxu0 0.0
    %215 = vmatpush1.msra.mxu0 0.0
    %216 = vmatprep.subr.mxu0 0.0
    %217 = vmatpush1.msra.mxu0 0.0
    %218 = vmatprep.mubr.f32.mxu0 0.0
    %v219 = vand.u32 %v40, 4294901760
    %220 = vmatmul.mubr.f32.gmra.mrb[0].mxu0 %v219
    %v221 = vpop.f32.mrb[0].mxu0
    %v222 = vadd.f32 %v121, %v221
    %v223 = vpop.f32.mrb[0].mxu0
    %224 = vmatprep.mubr.f32.mxu0 0.0
    %v225 = vand.u32 %v43, 4294901760
    %226 = vmatmul.mubr.f32.gmra.mrb[0].mxu0 %v225
    %v227 = vpop.f32.mrb[0].mxu0
    %v228 = vadd.f32 %v131, %v227
    %v229 = vpop.f32.mrb[0].mxu0
    %230 = vdwg.mxu0
    %231 = vmatprep.subr.mxu0 0.0
    %v232 = vand.u32 %v30, 4294901760
    %v233 = vsub.f32 %v30, %v232
    %234 = vmatpush1.msra.mxu0 %v233
    %235 = vmatprep.subr.mxu0 0.0
    %v236 = vand.u32 %v31, 4294901760
    %v237 = vsub.f32 %v31, %v236
    %238 = vmatpush1.msra.mxu0 %v237
    %239 = vmatprep.subr.mxu0 0.0
    %v240 = vand.u32 %v32, 4294901760
    %v241 = vsub.f32 %v32, %v240
    %242 = vmatpush1.msra.mxu0 %v241
    %243 = vmatprep.subr.mxu0 0.0
    %v244 = vand.u32 %v33, 4294901760
    %v245 = vsub.f32 %v33, %v244
    %246 = vmatpush1.msra.mxu0 %v245
    %247 = vmatprep.subr.mxu0 0.0
    %248 = vmatpush1.msra.mxu0 0.0
    %249 = vmatprep.subr.mxu0 0.0
    %250 = vmatpush1.msra.mxu0 0.0
    %251 = vmatprep.subr.mxu0 0.0
    %252 = vmatpush1.msra.mxu0 0.0
    %253 = vmatprep.subr.mxu0 0.0
    %254 = vmatpush1.msra.mxu0 0.0
    %255 = vmatprep.subr.mxu0 0.0
    %256 = vmatpush1.msra.mxu0 0.0
    %257 = vmatprep.subr.mxu0 0.0
    %258 = vmatpush1.msra.mxu0 0.0
    %259 = vmatprep.subr.mxu0 0.0
    %260 = vmatpush1.msra.mxu0 0.0
    %261 = vmatprep.subr.mxu0 0.0
    %262 = vmatpush1.msra.mxu0 0.0
    %263 = vmatprep.subr.mxu0 0.0
    %264 = vmatpush1.msra.mxu0 0.0
    %265 = vmatprep.subr.mxu0 0.0
    %266 = vmatpush1.msra.mxu0 0.0
    %267 = vmatprep.subr.mxu0 0.0
    %268 = vmatpush1.msra.mxu0 0.0
    %269 = vmatprep.subr.mxu0 0.0
    %270 = vmatpush1.msra.mxu0 0.0
    %271 = vmatprep.subr.mxu0 0.0
    %272 = vmatpush1.msra.mxu0 0.0
    %273 = vmatprep.subr.mxu0 0.0
    %274 = vmatpush1.msra.mxu0 0.0
    %275 = vmatprep.subr.mxu0 0.0
    %276 = vmatpush1.msra.mxu0 0.0
    %277 = vmatprep.subr.mxu0 0.0
    %278 = vmatpush1.msra.mxu0 0.0
    %279 = vmatprep.subr.mxu0 0.0
    %280 = vmatpush1.msra.mxu0 0.0
    %281 = vmatprep.subr.mxu0 0.0
    %282 = vmatpush1.msra.mxu0 0.0
    %283 = vmatprep.subr.mxu0 0.0
    %284 = vmatpush1.msra.mxu0 0.0
    %285 = vmatprep.subr.mxu0 0.0
    %286 = vmatpush1.msra.mxu0 0.0
    %287 = vmatprep.subr.mxu0 0.0
    %288 = vmatpush1.msra.mxu0 0.0
    %289 = vmatprep.subr.mxu0 0.0
    %290 = vmatpush1.msra.mxu0 0.0
    %291 = vmatprep.subr.mxu0 0.0
    %292 = vmatpush1.msra.mxu0 0.0
    %293 = vmatprep.subr.mxu0 0.0
    %294 = vmatpush1.msra.mxu0 0.0
    %295 = vmatprep.subr.mxu0 0.0
    %296 = vmatpush1.msra.mxu0 0.0
    %297 = vmatprep.subr.mxu0 0.0
    %298 = vmatpush1.msra.mxu0 0.0
    %299 = vmatprep.subr.mxu0 0.0
    %300 = vmatpush1.msra.mxu0 0.0
    %301 = vmatprep.subr.mxu0 0.0
    %302 = vmatpush1.msra.mxu0 0.0
    %303 = vmatprep.mubr.f32.mxu0 0.0
    %v304 = vand.u32 %v40, 4294901760
    %v305 = vsub.f32 %v40, %v304
    %306 = vmatmul.mubr.f32.gmra.mrb[0].mxu0 %v305
    %v307 = vpop.f32.mrb[0].mxu0
    %v308 = vadd.f32 %v222, %v307
    %v309 = vpop.f32.mrb[0].mxu0
    %310 = vmatprep.mubr.f32.mxu0 0.0
    %v311 = vand.u32 %v43, 4294901760
    %v312 = vsub.f32 %v43, %v311
    %313 = vmatmul.mubr.f32.gmra.mrb[0].mxu0 %v312
    %v314 = vpop.f32.mrb[0].mxu0
    %v315 = vadd.f32 %v228, %v314
    %v316 = vpop.f32.mrb[0].mxu0
    %317 = vdwg.mxu0
    %318 = vmatprep.subr.mxu0 0.0
    %v319 = vand.u32 %v30, 4294901760
    %320 = vmatpush1.msra.mxu0 %v319
    %321 = vmatprep.subr.mxu0 0.0
    %v322 = vand.u32 %v31, 4294901760
    %323 = vmatpush1.msra.mxu0 %v322
    %324 = vmatprep.subr.mxu0 0.0
    %v325 = vand.u32 %v32, 4294901760
    %326 = vmatpush1.msra.mxu0 %v325
    %327 = vmatprep.subr.mxu0 0.0
    %v328 = vand.u32 %v33, 4294901760
    %329 = vmatpush1.msra.mxu0 %v328
    %330 = vmatprep.subr.mxu0 0.0
    %331 = vmatpush1.msra.mxu0 0.0
    %332 = vmatprep.subr.mxu0 0.0
    %333 = vmatpush1.msra.mxu0 0.0
    %334 = vmatprep.subr.mxu0 0.0
    %335 = vmatpush1.msra.mxu0 0.0
    %336 = vmatprep.subr.mxu0 0.0
    %337 = vmatpush1.msra.mxu0 0.0
    %338 = vmatprep.subr.mxu0 0.0
    %339 = vmatpush1.msra.mxu0 0.0
    %340 = vmatprep.subr.mxu0 0.0
    %341 = vmatpush1.msra.mxu0 0.0
    %342 = vmatprep.subr.mxu0 0.0
    %343 = vmatpush1.msra.mxu0 0.0
    %344 = vmatprep.subr.mxu0 0.0
    %345 = vmatpush1.msra.mxu0 0.0
    %346 = vmatprep.subr.mxu0 0.0
    %347 = vmatpush1.msra.mxu0 0.0
    %348 = vmatprep.subr.mxu0 0.0
    %349 = vmatpush1.msra.mxu0 0.0
    %350 = vmatprep.subr.mxu0 0.0
    %351 = vmatpush1.msra.mxu0 0.0
    %352 = vmatprep.subr.mxu0 0.0
    %353 = vmatpush1.msra.mxu0 0.0
    %354 = vmatprep.subr.mxu0 0.0
    %355 = vmatpush1.msra.mxu0 0.0
    %356 = vmatprep.subr.mxu0 0.0
    %357 = vmatpush1.msra.mxu0 0.0
    %358 = vmatprep.subr.mxu0 0.0
    %359 = vmatpush1.msra.mxu0 0.0
    %360 = vmatprep.subr.mxu0 0.0
    %361 = vmatpush1.msra.mxu0 0.0
    %362 = vmatprep.subr.mxu0 0.0
    %363 = vmatpush1.msra.mxu0 0.0
    %364 = vmatprep.subr.mxu0 0.0
    %365 = vmatpush1.msra.mxu0 0.0
    %366 = vmatprep.subr.mxu0 0.0
    %367 = vmatpush1.msra.mxu0 0.0
    %368 = vmatprep.subr.mxu0 0.0
    %369 = vmatpush1.msra.mxu0 0.0
    %370 = vmatprep.subr.mxu0 0.0
    %371 = vmatpush1.msra.mxu0 0.0
    %372 = vmatprep.subr.mxu0 0.0
    %373 = vmatpush1.msra.mxu0 0.0
    %374 = vmatprep.subr.mxu0 0.0
    %375 = vmatpush1.msra.mxu0 0.0
    %376 = vmatprep.subr.mxu0 0.0
    %377 = vmatpush1.msra.mxu0 0.0
    %378 = vmatprep.subr.mxu0 0.0
    %379 = vmatpush1.msra.mxu0 0.0
    %380 = vmatprep.subr.mxu0 0.0
    %381 = vmatpush1.msra.mxu0 0.0
    %382 = vmatprep.subr.mxu0 0.0
    %383 = vmatpush1.msra.mxu0 0.0
    %384 = vmatprep.subr.mxu0 0.0
    %385 = vmatpush1.msra.mxu0 0.0
    %386 = vmatprep.mubr.f32.mxu0 0.0
    %v387 = vand.u32 %v40, 4294901760
    %v388 = vsub.f32 %v40, %v387
    %v389 = vand.u32 %v388, 4294901760
    %390 = vmatmul.mubr.f32.gmra.mrb[0].mxu0 %v389
    %v391 = vpop.f32.mrb[0].mxu0
    %v392 = vadd.f32 %v308, %v391
    %v393 = vpop.f32.mrb[0].mxu0
    %394 = vmatprep.mubr.f32.mxu0 0.0
    %v395 = vand.u32 %v43, 4294901760
    %v396 = vsub.f32 %v43, %v395
    %v397 = vand.u32 %v396, 4294901760
    %398 = vmatmul.mubr.f32.gmra.mrb[0].mxu0 %v397
    %v399 = vpop.f32.mrb[0].mxu0
    %v400 = vadd.f32 %v315, %v399
    %v401 = vpop.f32.mrb[0].mxu0
    %402 = vdwg.mxu0
    %403 = vmatprep.subr.mxu0 0.0
    %v404 = vand.u32 %v30, 4294901760
    %v405 = vsub.f32 %v30, %v404
    %v406 = vand.u32 %v405, 4294901760
    %407 = vmatpush1.msra.mxu0 %v406
    %408 = vmatprep.subr.mxu0 0.0
    %v409 = vand.u32 %v31, 4294901760
    %v410 = vsub.f32 %v31, %v409
    %v411 = vand.u32 %v410, 4294901760
    %412 = vmatpush1.msra.mxu0 %v411
    %413 = vmatprep.subr.mxu0 0.0
    %v414 = vand.u32 %v32, 4294901760
    %v415 = vsub.f32 %v32, %v414
    %v416 = vand.u32 %v415, 4294901760
    %417 = vmatpush1.msra.mxu0 %v416
    %418 = vmatprep.subr.mxu0 0.0
    %v419 = vand.u32 %v33, 4294901760
    %v420 = vsub.f32 %v33, %v419
    %v421 = vand.u32 %v420, 4294901760
    %422 = vmatpush1.msra.mxu0 %v421
    %423 = vmatprep.subr.mxu0 0.0
    %424 = vmatpush1.msra.mxu0 0.0
    %425 = vmatprep.subr.mxu0 0.0
    %426 = vmatpush1.msra.mxu0 0.0
    %427 = vmatprep.subr.mxu0 0.0
    %428 = vmatpush1.msra.mxu0 0.0
    %429 = vmatprep.subr.mxu0 0.0
    %430 = vmatpush1.msra.mxu0 0.0
    %431 = vmatprep.subr.mxu0 0.0
    %432 = vmatpush1.msra.mxu0 0.0
    %433 = vmatprep.subr.mxu0 0.0
    %434 = vmatpush1.msra.mxu0 0.0
    %435 = vmatprep.subr.mxu0 0.0
    %436 = vmatpush1.msra.mxu0 0.0
    %437 = vmatprep.subr.mxu0 0.0
    %438 = vmatpush1.msra.mxu0 0.0
    %439 = vmatprep.subr.mxu0 0.0
    %440 = vmatpush1.msra.mxu0 0.0
    %441 = vmatprep.subr.mxu0 0.0
    %442 = vmatpush1.msra.mxu0 0.0
    %443 = vmatprep.subr.mxu0 0.0
    %444 = vmatpush1.msra.mxu0 0.0
    %445 = vmatprep.subr.mxu0 0.0
    %446 = vmatpush1.msra.mxu0 0.0
    %447 = vmatprep.subr.mxu0 0.0
    %448 = vmatpush1.msra.mxu0 0.0
    %449 = vmatprep.subr.mxu0 0.0
    %450 = vmatpush1.msra.mxu0 0.0
    %451 = vmatprep.subr.mxu0 0.0
    %452 = vmatpush1.msra.mxu0 0.0
    %453 = vmatprep.subr.mxu0 0.0
    %454 = vmatpush1.msra.mxu0 0.0
    %455 = vmatprep.subr.mxu0 0.0
    %456 = vmatpush1.msra.mxu0 0.0
    %457 = vmatprep.subr.mxu0 0.0
    %458 = vmatpush1.msra.mxu0 0.0
    %459 = vmatprep.subr.mxu0 0.0
    %460 = vmatpush1.msra.mxu0 0.0
    %461 = vmatprep.subr.mxu0 0.0
    %462 = vmatpush1.msra.mxu0 0.0
    %463 = vmatprep.subr.mxu0 0.0
    %464 = vmatpush1.msra.mxu0 0.0
    %465 = vmatprep.subr.mxu0 0.0
    %466 = vmatpush1.msra.mxu0 0.0
    %467 = vmatprep.subr.mxu0 0.0
    %468 = vmatpush1.msra.mxu0 0.0
    %469 = vmatprep.subr.mxu0 0.0
    %470 = vmatpush1.msra.mxu0 0.0
    %471 = vmatprep.subr.mxu0 0.0
    %472 = vmatpush1.msra.mxu0 0.0
    %473 = vmatprep.subr.mxu0 0.0
    %474 = vmatpush1.msra.mxu0 0.0
    %475 = vmatprep.subr.mxu0 0.0
    %476 = vmatpush1.msra.mxu0 0.0
    %477 = vmatprep.subr.mxu0 0.0
    %478 = vmatpush1.msra.mxu0 0.0
    %479 = vmatprep.mubr.f32.mxu0 0.0
    %v480 = vand.u32 %v40, 4294901760
    %481 = vmatmul.mubr.f32.gmra.mrb[0].mxu0 %v480
    %v482 = vpop.f32.mrb[0].mxu0
    %v483 = vadd.f32 %v392, %v482
    %v484 = vpop.f32.mrb[0].mxu0
    %485 = vmatprep.mubr.f32.mxu0 0.0
    %v486 = vand.u32 %v43, 4294901760
    %487 = vmatmul.mubr.f32.gmra.mrb[0].mxu0 %v486
    %v488 = vpop.f32.mrb[0].mxu0
    %v489 = vadd.f32 %v400, %v488
    %v490 = vpop.f32.mrb[0].mxu0
    %491 = vdwg.mxu0
    %492 = vmatprep.subr.mxu0 0.0
    %v493 = vand.u32 %v30, 4294901760
    %494 = vmatpush1.msra.mxu0 %v493
    %495 = vmatprep.subr.mxu0 0.0
    %v496 = vand.u32 %v31, 4294901760
    %497 = vmatpush1.msra.mxu0 %v496
    %498 = vmatprep.subr.mxu0 0.0
    %v499 = vand.u32 %v32, 4294901760
    %500 = vmatpush1.msra.mxu0 %v499
    %501 = vmatprep.subr.mxu0 0.0
    %v502 = vand.u32 %v33, 4294901760
    %503 = vmatpush1.msra.mxu0 %v502
    %504 = vmatprep.subr.mxu0 0.0
    %505 = vmatpush1.msra.mxu0 0.0
    %506 = vmatprep.subr.mxu0 0.0
    %507 = vmatpush1.msra.mxu0 0.0
    %508 = vmatprep.subr.mxu0 0.0
    %509 = vmatpush1.msra.mxu0 0.0
    %510 = vmatprep.subr.mxu0 0.0
    %511 = vmatpush1.msra.mxu0 0.0
    %512 = vmatprep.subr.mxu0 0.0
    %513 = vmatpush1.msra.mxu0 0.0
    %514 = vmatprep.subr.mxu0 0.0
    %515 = vmatpush1.msra.mxu0 0.0
    %516 = vmatprep.subr.mxu0 0.0
    %517 = vmatpush1.msra.mxu0 0.0
    %518 = vmatprep.subr.mxu0 0.0
    %519 = vmatpush1.msra.mxu0 0.0
    %520 = vmatprep.subr.mxu0 0.0
    %521 = vmatpush1.msra.mxu0 0.0
    %522 = vmatprep.subr.mxu0 0.0
    %523 = vmatpush1.msra.mxu0 0.0
    %524 = vmatprep.subr.mxu0 0.0
    %525 = vmatpush1.msra.mxu0 0.0
    %526 = vmatprep.subr.mxu0 0.0
    %527 = vmatpush1.msra.mxu0 0.0
    %528 = vmatprep.subr.mxu0 0.0
    %529 = vmatpush1.msra.mxu0 0.0
    %530 = vmatprep.subr.mxu0 0.0
    %531 = vmatpush1.msra.mxu0 0.0
    %532 = vmatprep.subr.mxu0 0.0
    %533 = vmatpush1.msra.mxu0 0.0
    %534 = vmatprep.subr.mxu0 0.0
    %535 = vmatpush1.msra.mxu0 0.0
    %536 = vmatprep.subr.mxu0 0.0
    %537 = vmatpush1.msra.mxu0 0.0
    %538 = vmatprep.subr.mxu0 0.0
    %539 = vmatpush1.msra.mxu0 0.0
    %540 = vmatprep.subr.mxu0 0.0
    %541 = vmatpush1.msra.mxu0 0.0
    %542 = vmatprep.subr.mxu0 0.0
    %543 = vmatpush1.msra.mxu0 0.0
    %544 = vmatprep.subr.mxu0 0.0
    %545 = vmatpush1.msra.mxu0 0.0
    %546 = vmatprep.subr.mxu0 0.0
    %547 = vmatpush1.msra.mxu0 0.0
    %548 = vmatprep.subr.mxu0 0.0
    %549 = vmatpush1.msra.mxu0 0.0
    %550 = vmatprep.subr.mxu0 0.0
    %551 = vmatpush1.msra.mxu0 0.0
    %552 = vmatprep.subr.mxu0 0.0
    %553 = vmatpush1.msra.mxu0 0.0
    %554 = vmatprep.subr.mxu0 0.0
    %555 = vmatpush1.msra.mxu0 0.0
    %556 = vmatprep.subr.mxu0 0.0
    %557 = vmatpush1.msra.mxu0 0.0
    %558 = vmatprep.subr.mxu0 0.0
    %559 = vmatpush1.msra.mxu0 0.0
    %560 = vmatprep.mubr.f32.mxu0 0.0
    %v561 = vand.u32 %v40, 4294901760
    %562 = vmatmul.mubr.f32.gmra.mrb[0].mxu0 %v561
    %v563 = vpop.f32.mrb[0].mxu0
    %v564 = vadd.f32 %v483, %v563
    %v565 = vpop.f32.mrb[0].mxu0
    %566 = vmatprep.mubr.f32.mxu0 0.0
    %v567 = vand.u32 %v43, 4294901760
    %568 = vmatmul.mubr.f32.gmra.mrb[0].mxu0 %v567
    %v569 = vpop.f32.mrb[0].mxu0
    %v570 = vadd.f32 %v489, %v569
    %v571 = vpop.f32.mrb[0].mxu0
    %572 = vdwg.mxu0
    %575 = vrot.lane.b32.xlu0 %v564, 120
    %v576 = vpop.permute.xlu0 %575
    %577 = vrot.lane.b32.xlu0 %v570, 120
    %v578 = vpop.permute.xlu0 %577
    %579 = vrot.lane.b32.xlu0 %v564, 112
    %v580 = vpop.permute.xlu0 %579
    %581 = vrot.lane.b32.xlu0 %v570, 112
    %v582 = vpop.permute.xlu0 %581
    %583 = vrot.lane.b32.xlu0 %v564, 104
    %v584 = vpop.permute.xlu0 %583
    %585 = vrot.lane.b32.xlu0 %v570, 104
    %v586 = vpop.permute.xlu0 %585
    %587 = vrot.lane.b32.xlu0 %v564, 96
    %v588 = vpop.permute.xlu0 %587
    %589 = vrot.lane.b32.xlu0 %v570, 96
    %v590 = vpop.permute.xlu0 %589
    %591 = vrot.lane.b32.xlu0 %v576, 96
    %v592 = vpop.permute.xlu0 %591
    %593 = vrot.lane.b32.xlu0 %v578, 96
    %v594 = vpop.permute.xlu0 %593
    %595 = vrot.lane.b32.xlu0 %v580, 96
    %v596 = vpop.permute.xlu0 %595
    %597 = vrot.lane.b32.xlu0 %v582, 96
    %v598 = vpop.permute.xlu0 %597
    %599 = vrot.lane.b32.xlu0 %v584, 96
    %v600 = vpop.permute.xlu0 %599
    %601 = vrot.lane.b32.xlu0 %v586, 96
    %v602 = vpop.permute.xlu0 %601
    %vm603 = vcmask 64512
    %v604 = vsel %vm603, %v564, 0
    %v606 = vsel %vm603, %v570, 0
    %v608 = vsel %vm603, %v576, 0
    %v610 = vsel %vm603, %v578, 0
    %v612 = vsel %vm603, %v580, 0
    %v614 = vsel %vm603, %v582, 0
    %v616 = vsel %vm603, %v584, 0
    %v618 = vsel %vm603, %v586, 0
    %v620 = vsel %vm603, %v588, 0
    %v622 = vsel %vm603, %v590, 0
    %v624 = vsel %vm603, %v592, 0
    %v626 = vsel %vm603, %v594, 0
    %v628 = vsel %vm603, %v596, 0
    %v630 = vsel %vm603, %v598, 0
    %v632 = vsel %vm603, %v600, 0
    %v634 = vsel %vm603, %v602, 0
    %636 = vmatprep.subr.mxu0 0.0
    %v637 = vand.u32 %v620, 4294901760
    %638 = vmatpush1.xpose.msra.mxu0 %v637
    %639 = vmatprep.subr.mxu0 0.0
    %v640 = vand.u32 %v622, 4294901760
    %641 = vmatpush1.xpose.msra.mxu0 %v640
    %642 = vmatprep.subr.mxu0 0.0
    %v643 = vand.u32 %v624, 4294901760
    %644 = vmatpush1.xpose.msra.mxu0 %v643
    %645 = vmatprep.subr.mxu0 0.0
    %v646 = vand.u32 %v626, 4294901760
    %647 = vmatpush1.xpose.msra.mxu0 %v646
    %648 = vmatprep.subr.mxu0 0.0
    %v649 = vand.u32 %v628, 4294901760
    %650 = vmatpush1.xpose.msra.mxu0 %v649
    %651 = vmatprep.subr.mxu0 0.0
    %v652 = vand.u32 %v630, 4294901760
    %653 = vmatpush1.xpose.msra.mxu0 %v652
    %654 = vmatprep.subr.mxu0 0.0
    %v655 = vand.u32 %v632, 4294901760
    %656 = vmatpush1.xpose.msra.mxu0 %v655
    %657 = vmatprep.subr.mxu0 0.0
    %v658 = vand.u32 %v634, 4294901760
    %659 = vmatpush1.xpose.msra.mxu0 %v658
    %660 = vmatprep.subr.mxu0 0.0
    %661 = vmatpush1.xpose.msra.mxu0 0.0
    %662 = vmatprep.subr.mxu0 0.0
    %663 = vmatpush1.xpose.msra.mxu0 0.0
    %664 = vmatprep.subr.mxu0 0.0
    %665 = vmatpush1.xpose.msra.mxu0 0.0
    %666 = vmatprep.subr.mxu0 0.0
    %667 = vmatpush1.xpose.msra.mxu0 0.0
    %668 = vmatprep.subr.mxu0 0.0
    %669 = vmatpush1.xpose.msra.mxu0 0.0
    %670 = vmatprep.subr.mxu0 0.0
    %671 = vmatpush1.xpose.msra.mxu0 0.0
    %672 = vmatprep.subr.mxu0 0.0
    %673 = vmatpush1.xpose.msra.mxu0 0.0
    %674 = vmatprep.subr.mxu0 0.0
    %675 = vmatpush1.xpose.msra.mxu0 0.0
    %676 = vmatprep.subr.mxu0 0.0
    %677 = vmatpush1.xpose.msra.mxu0 0.0
    %678 = vmatprep.subr.mxu0 0.0
    %679 = vmatpush1.xpose.msra.mxu0 0.0
    %680 = vmatprep.subr.mxu0 0.0
    %681 = vmatpush1.xpose.msra.mxu0 0.0
    %682 = vmatprep.subr.mxu0 0.0
    %683 = vmatpush1.xpose.msra.mxu0 0.0
    %684 = vmatprep.subr.mxu0 0.0
    %685 = vmatpush1.xpose.msra.mxu0 0.0
    %686 = vmatprep.subr.mxu0 0.0
    %687 = vmatpush1.xpose.msra.mxu0 0.0
    %688 = vmatprep.subr.mxu0 0.0
    %689 = vmatpush1.xpose.msra.mxu0 0.0
    %690 = vmatprep.subr.mxu0 0.0
    %691 = vmatpush1.xpose.msra.mxu0 0.0
    %692 = vmatprep.subr.mxu0 0.0
    %693 = vmatpush1.xpose.msra.mxu0 0.0
    %694 = vmatprep.subr.mxu0 0.0
    %695 = vmatpush1.xpose.msra.mxu0 0.0
    %696 = vmatprep.subr.mxu0 0.0
    %697 = vmatpush1.xpose.msra.mxu0 0.0
    %698 = vmatprep.subr.mxu0 0.0
    %699 = vmatpush1.xpose.msra.mxu0 0.0
    %700 = vmatprep.subr.mxu0 0.0
    %701 = vmatpush1.xpose.msra.mxu0 0.0
    %702 = vmatprep.subr.mxu0 0.0
    %703 = vmatpush1.xpose.msra.mxu0 0.0
    %704 = vmatprep.subr.mxu0 0.0
    %705 = vmatpush1.xpose.msra.mxu0 0.0
    %706 = vmatprep.subr.mxu0 0.0
    %707 = vmatpush1.xpose.msra.mxu0 0.0
    %708 = vmatprep.mubr.f32.mxu0 0.0
    %v709 = vand.u32 %v604, 4294901760
    %v710 = vsub.f32 %v604, %v709
    %v711 = vand.u32 %v710, 4294901760
    %v712 = vsub.f32 %v710, %v711
    %v713 = vand.u32 %v712, 4294901760
    %714 = vmatmul.mubr.f32.gmra.mrb[0].mxu0 %v713
    %v715 = vpop.f32.mrb[0].mxu0
    %v716 = vadd.f32 0.0, %v715
    %v717 = vpop.f32.mrb[0].mxu0
    %718 = vmatprep.mubr.f32.mxu0 0.0
    %v719 = vand.u32 %v606, 4294901760
    %v720 = vsub.f32 %v606, %v719
    %v721 = vand.u32 %v720, 4294901760
    %v722 = vsub.f32 %v720, %v721
    %v723 = vand.u32 %v722, 4294901760
    %724 = vmatmul.mubr.f32.gmra.mrb[0].mxu0 %v723
    %v725 = vpop.f32.mrb[0].mxu0
    %v726 = vadd.f32 0.0, %v725
    %v727 = vpop.f32.mrb[0].mxu0
    %728 = vmatprep.mubr.f32.mxu0 0.0
    %v729 = vand.u32 %v608, 4294901760
    %v730 = vsub.f32 %v608, %v729
    %v731 = vand.u32 %v730, 4294901760
    %v732 = vsub.f32 %v730, %v731
    %v733 = vand.u32 %v732, 4294901760
    %734 = vmatmul.mubr.f32.gmra.mrb[0].mxu0 %v733
    %v735 = vpop.f32.mrb[0].mxu0
    %v736 = vadd.f32 0.0, %v735
    %v737 = vpop.f32.mrb[0].mxu0
    %738 = vmatprep.mubr.f32.mxu0 0.0
    %v739 = vand.u32 %v610, 4294901760
    %v740 = vsub.f32 %v610, %v739
    %v741 = vand.u32 %v740, 4294901760
    %v742 = vsub.f32 %v740, %v741
    %v743 = vand.u32 %v742, 4294901760
    %744 = vmatmul.mubr.f32.gmra.mrb[0].mxu0 %v743
    %v745 = vpop.f32.mrb[0].mxu0
    %v746 = vadd.f32 0.0, %v745
    %v747 = vpop.f32.mrb[0].mxu0
    %748 = vmatprep.mubr.f32.mxu0 0.0
    %v749 = vand.u32 %v612, 4294901760
    %v750 = vsub.f32 %v612, %v749
    %v751 = vand.u32 %v750, 4294901760
    %v752 = vsub.f32 %v750, %v751
    %v753 = vand.u32 %v752, 4294901760
    %754 = vmatmul.mubr.f32.gmra.mrb[0].mxu0 %v753
    %v755 = vpop.f32.mrb[0].mxu0
    %v756 = vadd.f32 0.0, %v755
    %v757 = vpop.f32.mrb[0].mxu0
    %758 = vmatprep.mubr.f32.mxu0 0.0
    %v759 = vand.u32 %v614, 4294901760
    %v760 = vsub.f32 %v614, %v759
    %v761 = vand.u32 %v760, 4294901760
    %v762 = vsub.f32 %v760, %v761
    %v763 = vand.u32 %v762, 4294901760
    %764 = vmatmul.mubr.f32.gmra.mrb[0].mxu0 %v763
    %v765 = vpop.f32.mrb[0].mxu0
    %v766 = vadd.f32 0.0, %v765
    %v767 = vpop.f32.mrb[0].mxu0
    %768 = vmatprep.mubr.f32.mxu0 0.0
    %v769 = vand.u32 %v616, 4294901760
    %v770 = vsub.f32 %v616, %v769
    %v771 = vand.u32 %v770, 4294901760
    %v772 = vsub.f32 %v770, %v771
    %v773 = vand.u32 %v772, 4294901760
    %774 = vmatmul.mubr.f32.gmra.mrb[0].mxu0 %v773
    %v775 = vpop.f32.mrb[0].mxu0
    %v776 = vadd.f32 0.0, %v775
    %v777 = vpop.f32.mrb[0].mxu0
    %778 = vmatprep.mubr.f32.mxu0 0.0
    %v779 = vand.u32 %v618, 4294901760
    %v780 = vsub.f32 %v618, %v779
    %v781 = vand.u32 %v780, 4294901760
    %v782 = vsub.f32 %v780, %v781
    %v783 = vand.u32 %v782, 4294901760
    %784 = vmatmul.mubr.f32.gmra.mrb[0].mxu0 %v783
    %v785 = vpop.f32.mrb[0].mxu0
    %v786 = vadd.f32 0.0, %v785
    %v787 = vpop.f32.mrb[0].mxu0
    %788 = vdwg.mxu0
    %789 = vmatprep.subr.mxu0 0.0
    %v790 = vand.u32 %v620, 4294901760
    %v791 = vsub.f32 %v620, %v790
    %v792 = vand.u32 %v791, 4294901760
    %v793 = vsub.f32 %v791, %v792
    %v794 = vand.u32 %v793, 4294901760
    %795 = vmatpush1.xpose.msra.mxu0 %v794
    %796 = vmatprep.subr.mxu0 0.0
    %v797 = vand.u32 %v622, 4294901760
    %v798 = vsub.f32 %v622, %v797
    %v799 = vand.u32 %v798, 4294901760
    %v800 = vsub.f32 %v798, %v799
    %v801 = vand.u32 %v800, 4294901760
    %802 = vmatpush1.xpose.msra.mxu0 %v801
    %803 = vmatprep.subr.mxu0 0.0
    %v804 = vand.u32 %v624, 4294901760
    %v805 = vsub.f32 %v624, %v804
    %v806 = vand.u32 %v805, 4294901760
    %v807 = vsub.f32 %v805, %v806
    %v808 = vand.u32 %v807, 4294901760
    %809 = vmatpush1.xpose.msra.mxu0 %v808
    %810 = vmatprep.subr.mxu0 0.0
    %v811 = vand.u32 %v626, 4294901760
    %v812 = vsub.f32 %v626, %v811
    %v813 = vand.u32 %v812, 4294901760
    %v814 = vsub.f32 %v812, %v813
    %v815 = vand.u32 %v814, 4294901760
    %816 = vmatpush1.xpose.msra.mxu0 %v815
    %817 = vmatprep.subr.mxu0 0.0
    %v818 = vand.u32 %v628, 4294901760
    %v819 = vsub.f32 %v628, %v818
    %v820 = vand.u32 %v819, 4294901760
    %v821 = vsub.f32 %v819, %v820
    %v822 = vand.u32 %v821, 4294901760
    %823 = vmatpush1.xpose.msra.mxu0 %v822
    %824 = vmatprep.subr.mxu0 0.0
    %v825 = vand.u32 %v630, 4294901760
    %v826 = vsub.f32 %v630, %v825
    %v827 = vand.u32 %v826, 4294901760
    %v828 = vsub.f32 %v826, %v827
    %v829 = vand.u32 %v828, 4294901760
    %830 = vmatpush1.xpose.msra.mxu0 %v829
    %831 = vmatprep.subr.mxu0 0.0
    %v832 = vand.u32 %v632, 4294901760
    %v833 = vsub.f32 %v632, %v832
    %v834 = vand.u32 %v833, 4294901760
    %v835 = vsub.f32 %v833, %v834
    %v836 = vand.u32 %v835, 4294901760
    %837 = vmatpush1.xpose.msra.mxu0 %v836
    %838 = vmatprep.subr.mxu0 0.0
    %v839 = vand.u32 %v634, 4294901760
    %v840 = vsub.f32 %v634, %v839
    %v841 = vand.u32 %v840, 4294901760
    %v842 = vsub.f32 %v840, %v841
    %v843 = vand.u32 %v842, 4294901760
    %844 = vmatpush1.xpose.msra.mxu0 %v843
    %845 = vmatprep.subr.mxu0 0.0
    %846 = vmatpush1.xpose.msra.mxu0 0.0
    %847 = vmatprep.subr.mxu0 0.0
    %848 = vmatpush1.xpose.msra.mxu0 0.0
    %849 = vmatprep.subr.mxu0 0.0
    %850 = vmatpush1.xpose.msra.mxu0 0.0
    %851 = vmatprep.subr.mxu0 0.0
    %852 = vmatpush1.xpose.msra.mxu0 0.0
    %853 = vmatprep.subr.mxu0 0.0
    %854 = vmatpush1.xpose.msra.mxu0 0.0
    %855 = vmatprep.subr.mxu0 0.0
    %856 = vmatpush1.xpose.msra.mxu0 0.0
    %857 = vmatprep.subr.mxu0 0.0
    %858 = vmatpush1.xpose.msra.mxu0 0.0
    %859 = vmatprep.subr.mxu0 0.0
    %860 = vmatpush1.xpose.msra.mxu0 0.0
    %861 = vmatprep.subr.mxu0 0.0
    %862 = vmatpush1.xpose.msra.mxu0 0.0
    %863 = vmatprep.subr.mxu0 0.0
    %864 = vmatpush1.xpose.msra.mxu0 0.0
    %865 = vmatprep.subr.mxu0 0.0
    %866 = vmatpush1.xpose.msra.mxu0 0.0
    %867 = vmatprep.subr.mxu0 0.0
    %868 = vmatpush1.xpose.msra.mxu0 0.0
    %869 = vmatprep.subr.mxu0 0.0
    %870 = vmatpush1.xpose.msra.mxu0 0.0
    %871 = vmatprep.subr.mxu0 0.0
    %872 = vmatpush1.xpose.msra.mxu0 0.0
    %873 = vmatprep.subr.mxu0 0.0
    %874 = vmatpush1.xpose.msra.mxu0 0.0
    %875 = vmatprep.subr.mxu0 0.0
    %876 = vmatpush1.xpose.msra.mxu0 0.0
    %877 = vmatprep.subr.mxu0 0.0
    %878 = vmatpush1.xpose.msra.mxu0 0.0
    %879 = vmatprep.subr.mxu0 0.0
    %880 = vmatpush1.xpose.msra.mxu0 0.0
    %881 = vmatprep.subr.mxu0 0.0
    %882 = vmatpush1.xpose.msra.mxu0 0.0
    %883 = vmatprep.subr.mxu0 0.0
    %884 = vmatpush1.xpose.msra.mxu0 0.0
    %885 = vmatprep.subr.mxu0 0.0
    %886 = vmatpush1.xpose.msra.mxu0 0.0
    %887 = vmatprep.subr.mxu0 0.0
    %888 = vmatpush1.xpose.msra.mxu0 0.0
    %889 = vmatprep.subr.mxu0 0.0
    %890 = vmatpush1.xpose.msra.mxu0 0.0
    %891 = vmatprep.subr.mxu0 0.0
    %892 = vmatpush1.xpose.msra.mxu0 0.0
    %893 = vmatprep.mubr.f32.mxu0 0.0
    %v894 = vand.u32 %v604, 4294901760
    %895 = vmatmul.mubr.f32.gmra.mrb[0].mxu0 %v894
    %v896 = vpop.f32.mrb[0].mxu0
    %v897 = vadd.f32 %v716, %v896
    %v898 = vpop.f32.mrb[0].mxu0
    %899 = vmatprep.mubr.f32.mxu0 0.0
    %v900 = vand.u32 %v606, 4294901760
    %901 = vmatmul.mubr.f32.gmra.mrb[0].mxu0 %v900
    %v902 = vpop.f32.mrb[0].mxu0
    %v903 = vadd.f32 %v726, %v902
    %v904 = vpop.f32.mrb[0].mxu0
    %905 = vmatprep.mubr.f32.mxu0 0.0
    %v906 = vand.u32 %v608, 4294901760
    %907 = vmatmul.mubr.f32.gmra.mrb[0].mxu0 %v906
    %v908 = vpop.f32.mrb[0].mxu0
    %v909 = vadd.f32 %v736, %v908
    %v910 = vpop.f32.mrb[0].mxu0
    %911 = vmatprep.mubr.f32.mxu0 0.0
    %v912 = vand.u32 %v610, 4294901760
    %913 = vmatmul.mubr.f32.gmra.mrb[0].mxu0 %v912
    %v914 = vpop.f32.mrb[0].mxu0
    %v915 = vadd.f32 %v746, %v914
    %v916 = vpop.f32.mrb[0].mxu0
    %917 = vmatprep.mubr.f32.mxu0 0.0
    %v918 = vand.u32 %v612, 4294901760
    %919 = vmatmul.mubr.f32.gmra.mrb[0].mxu0 %v918
    %v920 = vpop.f32.mrb[0].mxu0
    %v921 = vadd.f32 %v756, %v920
    %v922 = vpop.f32.mrb[0].mxu0
    %923 = vmatprep.mubr.f32.mxu0 0.0
    %v924 = vand.u32 %v614, 4294901760
    %925 = vmatmul.mubr.f32.gmra.mrb[0].mxu0 %v924
    %v926 = vpop.f32.mrb[0].mxu0
    %v927 = vadd.f32 %v766, %v926
    %v928 = vpop.f32.mrb[0].mxu0
    %929 = vmatprep.mubr.f32.mxu0 0.0
    %v930 = vand.u32 %v616, 4294901760
    %931 = vmatmul.mubr.f32.gmra.mrb[0].mxu0 %v930
    %v932 = vpop.f32.mrb[0].mxu0
    %v933 = vadd.f32 %v776, %v932
    %v934 = vpop.f32.mrb[0].mxu0
    %935 = vmatprep.mubr.f32.mxu0 0.0
    %v936 = vand.u32 %v618, 4294901760
    %937 = vmatmul.mubr.f32.gmra.mrb[0].mxu0 %v936
    %v938 = vpop.f32.mrb[0].mxu0
    %v939 = vadd.f32 %v786, %v938
    %v940 = vpop.f32.mrb[0].mxu0
    %941 = vdwg.mxu0
    %942 = vmatprep.subr.mxu0 0.0
    %v943 = vand.u32 %v620, 4294901760
    %v944 = vsub.f32 %v620, %v943
    %945 = vmatpush1.xpose.msra.mxu0 %v944
    %946 = vmatprep.subr.mxu0 0.0
    %v947 = vand.u32 %v622, 4294901760
    %v948 = vsub.f32 %v622, %v947
    %949 = vmatpush1.xpose.msra.mxu0 %v948
    %950 = vmatprep.subr.mxu0 0.0
    %v951 = vand.u32 %v624, 4294901760
    %v952 = vsub.f32 %v624, %v951
    %953 = vmatpush1.xpose.msra.mxu0 %v952
    %954 = vmatprep.subr.mxu0 0.0
    %v955 = vand.u32 %v626, 4294901760
    %v956 = vsub.f32 %v626, %v955
    %957 = vmatpush1.xpose.msra.mxu0 %v956
    %958 = vmatprep.subr.mxu0 0.0
    %v959 = vand.u32 %v628, 4294901760
    %v960 = vsub.f32 %v628, %v959
    %961 = vmatpush1.xpose.msra.mxu0 %v960
    %962 = vmatprep.subr.mxu0 0.0
    %v963 = vand.u32 %v630, 4294901760
    %v964 = vsub.f32 %v630, %v963
    %965 = vmatpush1.xpose.msra.mxu0 %v964
    %966 = vmatprep.subr.mxu0 0.0
    %v967 = vand.u32 %v632, 4294901760
    %v968 = vsub.f32 %v632, %v967
    %969 = vmatpush1.xpose.msra.mxu0 %v968
    %970 = vmatprep.subr.mxu0 0.0
    %v971 = vand.u32 %v634, 4294901760
    %v972 = vsub.f32 %v634, %v971
    %973 = vmatpush1.xpose.msra.mxu0 %v972
    %974 = vmatprep.subr.mxu0 0.0
    %975 = vmatpush1.xpose.msra.mxu0 0.0
    %976 = vmatprep.subr.mxu0 0.0
    %977 = vmatpush1.xpose.msra.mxu0 0.0
    %978 = vmatprep.subr.mxu0 0.0
    %979 = vmatpush1.xpose.msra.mxu0 0.0
    %980 = vmatprep.subr.mxu0 0.0
    %981 = vmatpush1.xpose.msra.mxu0 0.0
    %982 = vmatprep.subr.mxu0 0.0
    %983 = vmatpush1.xpose.msra.mxu0 0.0
    %984 = vmatprep.subr.mxu0 0.0
    %985 = vmatpush1.xpose.msra.mxu0 0.0
    %986 = vmatprep.subr.mxu0 0.0
    %987 = vmatpush1.xpose.msra.mxu0 0.0
    %988 = vmatprep.subr.mxu0 0.0
    %989 = vmatpush1.xpose.msra.mxu0 0.0
    %990 = vmatprep.subr.mxu0 0.0
    %991 = vmatpush1.xpose.msra.mxu0 0.0
    %992 = vmatprep.subr.mxu0 0.0
    %993 = vmatpush1.xpose.msra.mxu0 0.0
    %994 = vmatprep.subr.mxu0 0.0
    %995 = vmatpush1.xpose.msra.mxu0 0.0
    %996 = vmatprep.subr.mxu0 0.0
    %997 = vmatpush1.xpose.msra.mxu0 0.0
    %998 = vmatprep.subr.mxu0 0.0
    %999 = vmatpush1.xpose.msra.mxu0 0.0
    %1000 = vmatprep.subr.mxu0 0.0
    %1001 = vmatpush1.xpose.msra.mxu0 0.0
    %1002 = vmatprep.subr.mxu0 0.0
    %1003 = vmatpush1.xpose.msra.mxu0 0.0
    %1004 = vmatprep.subr.mxu0 0.0
    %1005 = vmatpush1.xpose.msra.mxu0 0.0
    %1006 = vmatprep.subr.mxu0 0.0
    %1007 = vmatpush1.xpose.msra.mxu0 0.0
    %1008 = vmatprep.subr.mxu0 0.0
    %1009 = vmatpush1.xpose.msra.mxu0 0.0
    %1010 = vmatprep.subr.mxu0 0.0
    %1011 = vmatpush1.xpose.msra.mxu0 0.0
    %1012 = vmatprep.subr.mxu0 0.0
    %1013 = vmatpush1.xpose.msra.mxu0 0.0
    %1014 = vmatprep.subr.mxu0 0.0
    %1015 = vmatpush1.xpose.msra.mxu0 0.0
    %1016 = vmatprep.subr.mxu0 0.0
    %1017 = vmatpush1.xpose.msra.mxu0 0.0
    %1018 = vmatprep.subr.mxu0 0.0
    %1019 = vmatpush1.xpose.msra.mxu0 0.0
    %1020 = vmatprep.subr.mxu0 0.0
    %1021 = vmatpush1.xpose.msra.mxu0 0.0
    %1022 = vmatprep.mubr.f32.mxu0 0.0
    %v1023 = vand.u32 %v604, 4294901760
    %v1024 = vsub.f32 %v604, %v1023
    %1025 = vmatmul.mubr.f32.gmra.mrb[0].mxu0 %v1024
    %v1026 = vpop.f32.mrb[0].mxu0
    %v1027 = vadd.f32 %v897, %v1026
    %v1028 = vpop.f32.mrb[0].mxu0
    %1029 = vmatprep.mubr.f32.mxu0 0.0
    %v1030 = vand.u32 %v606, 4294901760
    %v1031 = vsub.f32 %v606, %v1030
    %1032 = vmatmul.mubr.f32.gmra.mrb[0].mxu0 %v1031
    %v1033 = vpop.f32.mrb[0].mxu0
    %v1034 = vadd.f32 %v903, %v1033
    %v1035 = vpop.f32.mrb[0].mxu0
    %1036 = vmatprep.mubr.f32.mxu0 0.0
    %v1037 = vand.u32 %v608, 4294901760
    %v1038 = vsub.f32 %v608, %v1037
    %1039 = vmatmul.mubr.f32.gmra.mrb[0].mxu0 %v1038
    %v1040 = vpop.f32.mrb[0].mxu0
    %v1041 = vadd.f32 %v909, %v1040
    %v1042 = vpop.f32.mrb[0].mxu0
    %1043 = vmatprep.mubr.f32.mxu0 0.0
    %v1044 = vand.u32 %v610, 4294901760
    %v1045 = vsub.f32 %v610, %v1044
    %1046 = vmatmul.mubr.f32.gmra.mrb[0].mxu0 %v1045
    %v1047 = vpop.f32.mrb[0].mxu0
    %v1048 = vadd.f32 %v915, %v1047
    %v1049 = vpop.f32.mrb[0].mxu0
    %1050 = vmatprep.mubr.f32.mxu0 0.0
    %v1051 = vand.u32 %v612, 4294901760
    %v1052 = vsub.f32 %v612, %v1051
    %1053 = vmatmul.mubr.f32.gmra.mrb[0].mxu0 %v1052
    %v1054 = vpop.f32.mrb[0].mxu0
    %v1055 = vadd.f32 %v921, %v1054
    %v1056 = vpop.f32.mrb[0].mxu0
    %1057 = vmatprep.mubr.f32.mxu0 0.0
    %v1058 = vand.u32 %v614, 4294901760
    %v1059 = vsub.f32 %v614, %v1058
    %1060 = vmatmul.mubr.f32.gmra.mrb[0].mxu0 %v1059
    %v1061 = vpop.f32.mrb[0].mxu0
    %v1062 = vadd.f32 %v927, %v1061
    %v1063 = vpop.f32.mrb[0].mxu0
    %1064 = vmatprep.mubr.f32.mxu0 0.0
    %v1065 = vand.u32 %v616, 4294901760
    %v1066 = vsub.f32 %v616, %v1065
    %1067 = vmatmul.mubr.f32.gmra.mrb[0].mxu0 %v1066
    %v1068 = vpop.f32.mrb[0].mxu0
    %v1069 = vadd.f32 %v933, %v1068
    %v1070 = vpop.f32.mrb[0].mxu0
    %1071 = vmatprep.mubr.f32.mxu0 0.0
    %v1072 = vand.u32 %v618, 4294901760
    %v1073 = vsub.f32 %v618, %v1072
    %1074 = vmatmul.mubr.f32.gmra.mrb[0].mxu0 %v1073
    %v1075 = vpop.f32.mrb[0].mxu0
    %v1076 = vadd.f32 %v939, %v1075
    %v1077 = vpop.f32.mrb[0].mxu0
    %1078 = vdwg.mxu0
    %1079 = vmatprep.subr.mxu0 0.0
    %v1080 = vand.u32 %v620, 4294901760
    %1081 = vmatpush1.xpose.msra.mxu0 %v1080
    %1082 = vmatprep.subr.mxu0 0.0
    %v1083 = vand.u32 %v622, 4294901760
    %1084 = vmatpush1.xpose.msra.mxu0 %v1083
    %1085 = vmatprep.subr.mxu0 0.0
    %v1086 = vand.u32 %v624, 4294901760
    %1087 = vmatpush1.xpose.msra.mxu0 %v1086
    %1088 = vmatprep.subr.mxu0 0.0
    %v1089 = vand.u32 %v626, 4294901760
    %1090 = vmatpush1.xpose.msra.mxu0 %v1089
    %1091 = vmatprep.subr.mxu0 0.0
    %v1092 = vand.u32 %v628, 4294901760
    %1093 = vmatpush1.xpose.msra.mxu0 %v1092
    %1094 = vmatprep.subr.mxu0 0.0
    %v1095 = vand.u32 %v630, 4294901760
    %1096 = vmatpush1.xpose.msra.mxu0 %v1095
    %1097 = vmatprep.subr.mxu0 0.0
    %v1098 = vand.u32 %v632, 4294901760
    %1099 = vmatpush1.xpose.msra.mxu0 %v1098
    %1100 = vmatprep.subr.mxu0 0.0
    %v1101 = vand.u32 %v634, 4294901760
    %1102 = vmatpush1.xpose.msra.mxu0 %v1101
    %1103 = vmatprep.subr.mxu0 0.0
    %1104 = vmatpush1.xpose.msra.mxu0 0.0
    %1105 = vmatprep.subr.mxu0 0.0
    %1106 = vmatpush1.xpose.msra.mxu0 0.0
    %1107 = vmatprep.subr.mxu0 0.0
    %1108 = vmatpush1.xpose.msra.mxu0 0.0
    %1109 = vmatprep.subr.mxu0 0.0
    %1110 = vmatpush1.xpose.msra.mxu0 0.0
    %1111 = vmatprep.subr.mxu0 0.0
    %1112 = vmatpush1.xpose.msra.mxu0 0.0
    %1113 = vmatprep.subr.mxu0 0.0
    %1114 = vmatpush1.xpose.msra.mxu0 0.0
    %1115 = vmatprep.subr.mxu0 0.0
    %1116 = vmatpush1.xpose.msra.mxu0 0.0
    %1117 = vmatprep.subr.mxu0 0.0
    %1118 = vmatpush1.xpose.msra.mxu0 0.0
    %1119 = vmatprep.subr.mxu0 0.0
    %1120 = vmatpush1.xpose.msra.mxu0 0.0
    %1121 = vmatprep.subr.mxu0 0.0
    %1122 = vmatpush1.xpose.msra.mxu0 0.0
    %1123 = vmatprep.subr.mxu0 0.0
    %1124 = vmatpush1.xpose.msra.mxu0 0.0
    %1125 = vmatprep.subr.mxu0 0.0
    %1126 = vmatpush1.xpose.msra.mxu0 0.0
    %1127 = vmatprep.subr.mxu0 0.0
    %1128 = vmatpush1.xpose.msra.mxu0 0.0
    %1129 = vmatprep.subr.mxu0 0.0
    %1130 = vmatpush1.xpose.msra.mxu0 0.0
    %1131 = vmatprep.subr.mxu0 0.0
    %1132 = vmatpush1.xpose.msra.mxu0 0.0
    %1133 = vmatprep.subr.mxu0 0.0
    %1134 = vmatpush1.xpose.msra.mxu0 0.0
    %1135 = vmatprep.subr.mxu0 0.0
    %1136 = vmatpush1.xpose.msra.mxu0 0.0
    %1137 = vmatprep.subr.mxu0 0.0
    %1138 = vmatpush1.xpose.msra.mxu0 0.0
    %1139 = vmatprep.subr.mxu0 0.0
    %1140 = vmatpush1.xpose.msra.mxu0 0.0
    %1141 = vmatprep.subr.mxu0 0.0
    %1142 = vmatpush1.xpose.msra.mxu0 0.0
    %1143 = vmatprep.subr.mxu0 0.0
    %1144 = vmatpush1.xpose.msra.mxu0 0.0
    %1145 = vmatprep.subr.mxu0 0.0
    %1146 = vmatpush1.xpose.msra.mxu0 0.0
    %1147 = vmatprep.subr.mxu0 0.0
    %1148 = vmatpush1.xpose.msra.mxu0 0.0
    %1149 = vmatprep.subr.mxu0 0.0
    %1150 = vmatpush1.xpose.msra.mxu0 0.0
    %1151 = vmatprep.mubr.f32.mxu0 0.0
    %v1152 = vand.u32 %v604, 4294901760
    %v1153 = vsub.f32 %v604, %v1152
    %v1154 = vand.u32 %v1153, 4294901760
    %1155 = vmatmul.mubr.f32.gmra.mrb[0].mxu0 %v1154
    %v1156 = vpop.f32.mrb[0].mxu0
    %v1157 = vadd.f32 %v1027, %v1156
    %v1158 = vpop.f32.mrb[0].mxu0
    %1159 = vmatprep.mubr.f32.mxu0 0.0
    %v1160 = vand.u32 %v606, 4294901760
    %v1161 = vsub.f32 %v606, %v1160
    %v1162 = vand.u32 %v1161, 4294901760
    %1163 = vmatmul.mubr.f32.gmra.mrb[0].mxu0 %v1162
    %v1164 = vpop.f32.mrb[0].mxu0
    %v1165 = vadd.f32 %v1034, %v1164
    %v1166 = vpop.f32.mrb[0].mxu0
    %1167 = vmatprep.mubr.f32.mxu0 0.0
    %v1168 = vand.u32 %v608, 4294901760
    %v1169 = vsub.f32 %v608, %v1168
    %v1170 = vand.u32 %v1169, 4294901760
    %1171 = vmatmul.mubr.f32.gmra.mrb[0].mxu0 %v1170
    %v1172 = vpop.f32.mrb[0].mxu0
    %v1173 = vadd.f32 %v1041, %v1172
    %v1174 = vpop.f32.mrb[0].mxu0
    %1175 = vmatprep.mubr.f32.mxu0 0.0
    %v1176 = vand.u32 %v610, 4294901760
    %v1177 = vsub.f32 %v610, %v1176
    %v1178 = vand.u32 %v1177, 4294901760
    %1179 = vmatmul.mubr.f32.gmra.mrb[0].mxu0 %v1178
    %v1180 = vpop.f32.mrb[0].mxu0
    %v1181 = vadd.f32 %v1048, %v1180
    %v1182 = vpop.f32.mrb[0].mxu0
    %1183 = vmatprep.mubr.f32.mxu0 0.0
    %v1184 = vand.u32 %v612, 4294901760
    %v1185 = vsub.f32 %v612, %v1184
    %v1186 = vand.u32 %v1185, 4294901760
    %1187 = vmatmul.mubr.f32.gmra.mrb[0].mxu0 %v1186
    %v1188 = vpop.f32.mrb[0].mxu0
    %v1189 = vadd.f32 %v1055, %v1188
    %v1190 = vpop.f32.mrb[0].mxu0
    %1191 = vmatprep.mubr.f32.mxu0 0.0
    %v1192 = vand.u32 %v614, 4294901760
    %v1193 = vsub.f32 %v614, %v1192
    %v1194 = vand.u32 %v1193, 4294901760
    %1195 = vmatmul.mubr.f32.gmra.mrb[0].mxu0 %v1194
    %v1196 = vpop.f32.mrb[0].mxu0
    %v1197 = vadd.f32 %v1062, %v1196
    %v1198 = vpop.f32.mrb[0].mxu0
    %1199 = vmatprep.mubr.f32.mxu0 0.0
    %v1200 = vand.u32 %v616, 4294901760
    %v1201 = vsub.f32 %v616, %v1200
    %v1202 = vand.u32 %v1201, 4294901760
    %1203 = vmatmul.mubr.f32.gmra.mrb[0].mxu0 %v1202
    %v1204 = vpop.f32.mrb[0].mxu0
    %v1205 = vadd.f32 %v1069, %v1204
    %v1206 = vpop.f32.mrb[0].mxu0
    %1207 = vmatprep.mubr.f32.mxu0 0.0
    %v1208 = vand.u32 %v618, 4294901760
    %v1209 = vsub.f32 %v618, %v1208
    %v1210 = vand.u32 %v1209, 4294901760
    %1211 = vmatmul.mubr.f32.gmra.mrb[0].mxu0 %v1210
    %v1212 = vpop.f32.mrb[0].mxu0
    %v1213 = vadd.f32 %v1076, %v1212
    %v1214 = vpop.f32.mrb[0].mxu0
    %1215 = vdwg.mxu0
    %1216 = vmatprep.subr.mxu0 0.0
    %v1217 = vand.u32 %v620, 4294901760
    %v1218 = vsub.f32 %v620, %v1217
    %v1219 = vand.u32 %v1218, 4294901760
    %1220 = vmatpush1.xpose.msra.mxu0 %v1219
    %1221 = vmatprep.subr.mxu0 0.0
    %v1222 = vand.u32 %v622, 4294901760
    %v1223 = vsub.f32 %v622, %v1222
    %v1224 = vand.u32 %v1223, 4294901760
    %1225 = vmatpush1.xpose.msra.mxu0 %v1224
    %1226 = vmatprep.subr.mxu0 0.0
    %v1227 = vand.u32 %v624, 4294901760
    %v1228 = vsub.f32 %v624, %v1227
    %v1229 = vand.u32 %v1228, 4294901760
    %1230 = vmatpush1.xpose.msra.mxu0 %v1229
    %1231 = vmatprep.subr.mxu0 0.0
    %v1232 = vand.u32 %v626, 4294901760
    %v1233 = vsub.f32 %v626, %v1232
    %v1234 = vand.u32 %v1233, 4294901760
    %1235 = vmatpush1.xpose.msra.mxu0 %v1234
    %1236 = vmatprep.subr.mxu0 0.0
    %v1237 = vand.u32 %v628, 4294901760
    %v1238 = vsub.f32 %v628, %v1237
    %v1239 = vand.u32 %v1238, 4294901760
    %1240 = vmatpush1.xpose.msra.mxu0 %v1239
    %1241 = vmatprep.subr.mxu0 0.0
    %v1242 = vand.u32 %v630, 4294901760
    %v1243 = vsub.f32 %v630, %v1242
    %v1244 = vand.u32 %v1243, 4294901760
    %1245 = vmatpush1.xpose.msra.mxu0 %v1244
    %1246 = vmatprep.subr.mxu0 0.0
    %v1247 = vand.u32 %v632, 4294901760
    %v1248 = vsub.f32 %v632, %v1247
    %v1249 = vand.u32 %v1248, 4294901760
    %1250 = vmatpush1.xpose.msra.mxu0 %v1249
    %1251 = vmatprep.subr.mxu0 0.0
    %v1252 = vand.u32 %v634, 4294901760
    %v1253 = vsub.f32 %v634, %v1252
    %v1254 = vand.u32 %v1253, 4294901760
    %1255 = vmatpush1.xpose.msra.mxu0 %v1254
    %1256 = vmatprep.subr.mxu0 0.0
    %1257 = vmatpush1.xpose.msra.mxu0 0.0
    %1258 = vmatprep.subr.mxu0 0.0
    %1259 = vmatpush1.xpose.msra.mxu0 0.0
    %1260 = vmatprep.subr.mxu0 0.0
    %1261 = vmatpush1.xpose.msra.mxu0 0.0
    %1262 = vmatprep.subr.mxu0 0.0
    %1263 = vmatpush1.xpose.msra.mxu0 0.0
    %1264 = vmatprep.subr.mxu0 0.0
    %1265 = vmatpush1.xpose.msra.mxu0 0.0
    %1266 = vmatprep.subr.mxu0 0.0
    %1267 = vmatpush1.xpose.msra.mxu0 0.0
    %1268 = vmatprep.subr.mxu0 0.0
    %1269 = vmatpush1.xpose.msra.mxu0 0.0
    %1270 = vmatprep.subr.mxu0 0.0
    %1271 = vmatpush1.xpose.msra.mxu0 0.0
    %1272 = vmatprep.subr.mxu0 0.0
    %1273 = vmatpush1.xpose.msra.mxu0 0.0
    %1274 = vmatprep.subr.mxu0 0.0
    %1275 = vmatpush1.xpose.msra.mxu0 0.0
    %1276 = vmatprep.subr.mxu0 0.0
    %1277 = vmatpush1.xpose.msra.mxu0 0.0
    %1278 = vmatprep.subr.mxu0 0.0
    %1279 = vmatpush1.xpose.msra.mxu0 0.0
    %1280 = vmatprep.subr.mxu0 0.0
    %1281 = vmatpush1.xpose.msra.mxu0 0.0
    %1282 = vmatprep.subr.mxu0 0.0
    %1283 = vmatpush1.xpose.msra.mxu0 0.0
    %1284 = vmatprep.subr.mxu0 0.0
    %1285 = vmatpush1.xpose.msra.mxu0 0.0
    %1286 = vmatprep.subr.mxu0 0.0
    %1287 = vmatpush1.xpose.msra.mxu0 0.0
    %1288 = vmatprep.subr.mxu0 0.0
    %1289 = vmatpush1.xpose.msra.mxu0 0.0
    %1290 = vmatprep.subr.mxu0 0.0
    %1291 = vmatpush1.xpose.msra.mxu0 0.0
    %1292 = vmatprep.subr.mxu0 0.0
    %1293 = vmatpush1.xpose.msra.mxu0 0.0
    %1294 = vmatprep.subr.mxu0 0.0
    %1295 = vmatpush1.xpose.msra.mxu0 0.0
    %1296 = vmatprep.subr.mxu0 0.0
    %1297 = vmatpush1.xpose.msra.mxu0 0.0
    %1298 = vmatprep.subr.mxu0 0.0
    %1299 = vmatpush1.xpose.msra.mxu0 0.0
    %1300 = vmatprep.subr.mxu0 0.0
    %1301 = vmatpush1.xpose.msra.mxu0 0.0
    %1302 = vmatprep.subr.mxu0 0.0
    %1303 = vmatpush1.xpose.msra.mxu0 0.0
    %1304 = vmatprep.mubr.f32.mxu0 0.0
    %v1305 = vand.u32 %v604, 4294901760
    %1306 = vmatmul.mubr.f32.gmra.mrb[0].mxu0 %v1305
    %v1307 = vpop.f32.mrb[0].mxu0
    %v1308 = vadd.f32 %v1157, %v1307
    %v1309 = vpop.f32.mrb[0].mxu0
    %1310 = vmatprep.mubr.f32.mxu0 0.0
    %v1311 = vand.u32 %v606, 4294901760
    %1312 = vmatmul.mubr.f32.gmra.mrb[0].mxu0 %v1311
    %v1313 = vpop.f32.mrb[0].mxu0
    %v1314 = vadd.f32 %v1165, %v1313
    %v1315 = vpop.f32.mrb[0].mxu0
    %1316 = vmatprep.mubr.f32.mxu0 0.0
    %v1317 = vand.u32 %v608, 4294901760
    %1318 = vmatmul.mubr.f32.gmra.mrb[0].mxu0 %v1317
    %v1319 = vpop.f32.mrb[0].mxu0
    %v1320 = vadd.f32 %v1173, %v1319
    %v1321 = vpop.f32.mrb[0].mxu0
    %1322 = vmatprep.mubr.f32.mxu0 0.0
    %v1323 = vand.u32 %v610, 4294901760
    %1324 = vmatmul.mubr.f32.gmra.mrb[0].mxu0 %v1323
    %v1325 = vpop.f32.mrb[0].mxu0
    %v1326 = vadd.f32 %v1181, %v1325
    %v1327 = vpop.f32.mrb[0].mxu0
    %1328 = vmatprep.mubr.f32.mxu0 0.0
    %v1329 = vand.u32 %v612, 4294901760
    %1330 = vmatmul.mubr.f32.gmra.mrb[0].mxu0 %v1329
    %v1331 = vpop.f32.mrb[0].mxu0
    %v1332 = vadd.f32 %v1189, %v1331
    %v1333 = vpop.f32.mrb[0].mxu0
    %1334 = vmatprep.mubr.f32.mxu0 0.0
    %v1335 = vand.u32 %v614, 4294901760
    %1336 = vmatmul.mubr.f32.gmra.mrb[0].mxu0 %v1335
    %v1337 = vpop.f32.mrb[0].mxu0
    %v1338 = vadd.f32 %v1197, %v1337
    %v1339 = vpop.f32.mrb[0].mxu0
    %1340 = vmatprep.mubr.f32.mxu0 0.0
    %v1341 = vand.u32 %v616, 4294901760
    %1342 = vmatmul.mubr.f32.gmra.mrb[0].mxu0 %v1341
    %v1343 = vpop.f32.mrb[0].mxu0
    %v1344 = vadd.f32 %v1205, %v1343
    %v1345 = vpop.f32.mrb[0].mxu0
    %1346 = vmatprep.mubr.f32.mxu0 0.0
    %v1347 = vand.u32 %v618, 4294901760
    %1348 = vmatmul.mubr.f32.gmra.mrb[0].mxu0 %v1347
    %v1349 = vpop.f32.mrb[0].mxu0
    %v1350 = vadd.f32 %v1213, %v1349
    %v1351 = vpop.f32.mrb[0].mxu0
    %1352 = vdwg.mxu0
    %1353 = vmatprep.subr.mxu0 0.0
    %v1354 = vand.u32 %v620, 4294901760
    %1355 = vmatpush1.xpose.msra.mxu0 %v1354
    %1356 = vmatprep.subr.mxu0 0.0
    %v1357 = vand.u32 %v622, 4294901760
    %1358 = vmatpush1.xpose.msra.mxu0 %v1357
    %1359 = vmatprep.subr.mxu0 0.0
    %v1360 = vand.u32 %v624, 4294901760
    %1361 = vmatpush1.xpose.msra.mxu0 %v1360
    %1362 = vmatprep.subr.mxu0 0.0
    %v1363 = vand.u32 %v626, 4294901760
    %1364 = vmatpush1.xpose.msra.mxu0 %v1363
    %1365 = vmatprep.subr.mxu0 0.0
    %v1366 = vand.u32 %v628, 4294901760
    %1367 = vmatpush1.xpose.msra.mxu0 %v1366
    %1368 = vmatprep.subr.mxu0 0.0
    %v1369 = vand.u32 %v630, 4294901760
    %1370 = vmatpush1.xpose.msra.mxu0 %v1369
    %1371 = vmatprep.subr.mxu0 0.0
    %v1372 = vand.u32 %v632, 4294901760
    %1373 = vmatpush1.xpose.msra.mxu0 %v1372
    %1374 = vmatprep.subr.mxu0 0.0
    %v1375 = vand.u32 %v634, 4294901760
    %1376 = vmatpush1.xpose.msra.mxu0 %v1375
    %1377 = vmatprep.subr.mxu0 0.0
    %1378 = vmatpush1.xpose.msra.mxu0 0.0
    %1379 = vmatprep.subr.mxu0 0.0
    %1380 = vmatpush1.xpose.msra.mxu0 0.0
    %1381 = vmatprep.subr.mxu0 0.0
    %1382 = vmatpush1.xpose.msra.mxu0 0.0
    %1383 = vmatprep.subr.mxu0 0.0
    %1384 = vmatpush1.xpose.msra.mxu0 0.0
    %1385 = vmatprep.subr.mxu0 0.0
    %1386 = vmatpush1.xpose.msra.mxu0 0.0
    %1387 = vmatprep.subr.mxu0 0.0
    %1388 = vmatpush1.xpose.msra.mxu0 0.0
    %1389 = vmatprep.subr.mxu0 0.0
    %1390 = vmatpush1.xpose.msra.mxu0 0.0
    %1391 = vmatprep.subr.mxu0 0.0
    %1392 = vmatpush1.xpose.msra.mxu0 0.0
    %1393 = vmatprep.subr.mxu0 0.0
    %1394 = vmatpush1.xpose.msra.mxu0 0.0
    %1395 = vmatprep.subr.mxu0 0.0
    %1396 = vmatpush1.xpose.msra.mxu0 0.0
    %1397 = vmatprep.subr.mxu0 0.0
    %1398 = vmatpush1.xpose.msra.mxu0 0.0
    %1399 = vmatprep.subr.mxu0 0.0
    %1400 = vmatpush1.xpose.msra.mxu0 0.0
    %1401 = vmatprep.subr.mxu0 0.0
    %1402 = vmatpush1.xpose.msra.mxu0 0.0
    %1403 = vmatprep.subr.mxu0 0.0
    %1404 = vmatpush1.xpose.msra.mxu0 0.0
    %1405 = vmatprep.subr.mxu0 0.0
    %1406 = vmatpush1.xpose.msra.mxu0 0.0
    %1407 = vmatprep.subr.mxu0 0.0
    %1408 = vmatpush1.xpose.msra.mxu0 0.0
    %1409 = vmatprep.subr.mxu0 0.0
    %1410 = vmatpush1.xpose.msra.mxu0 0.0
    %1411 = vmatprep.subr.mxu0 0.0
    %1412 = vmatpush1.xpose.msra.mxu0 0.0
    %1413 = vmatprep.subr.mxu0 0.0
    %1414 = vmatpush1.xpose.msra.mxu0 0.0
    %1415 = vmatprep.subr.mxu0 0.0
    %1416 = vmatpush1.xpose.msra.mxu0 0.0
    %1417 = vmatprep.subr.mxu0 0.0
    %1418 = vmatpush1.xpose.msra.mxu0 0.0
    %1419 = vmatprep.subr.mxu0 0.0
    %1420 = vmatpush1.xpose.msra.mxu0 0.0
    %1421 = vmatprep.subr.mxu0 0.0
    %1422 = vmatpush1.xpose.msra.mxu0 0.0
    %1423 = vmatprep.subr.mxu0 0.0
    %1424 = vmatpush1.xpose.msra.mxu0 0.0
    %1425 = vmatprep.mubr.f32.mxu0 0.0
    %v1426 = vand.u32 %v604, 4294901760
    %1427 = vmatmul.mubr.f32.gmra.mrb[0].mxu0 %v1426
    %v1428 = vpop.f32.mrb[0].mxu0
    %v1429 = vadd.f32 %v1308, %v1428
    %v1430 = vpop.f32.mrb[0].mxu0
    %1431 = vmatprep.mubr.f32.mxu0 0.0
    %v1432 = vand.u32 %v606, 4294901760
    %1433 = vmatmul.mubr.f32.gmra.mrb[0].mxu0 %v1432
    %v1434 = vpop.f32.mrb[0].mxu0
    %v1435 = vadd.f32 %v1314, %v1434
    %v1436 = vpop.f32.mrb[0].mxu0
    %1437 = vmatprep.mubr.f32.mxu0 0.0
    %v1438 = vand.u32 %v608, 4294901760
    %1439 = vmatmul.mubr.f32.gmra.mrb[0].mxu0 %v1438
    %v1440 = vpop.f32.mrb[0].mxu0
    %v1441 = vadd.f32 %v1320, %v1440
    %v1442 = vpop.f32.mrb[0].mxu0
    %1443 = vmatprep.mubr.f32.mxu0 0.0
    %v1444 = vand.u32 %v610, 4294901760
    %1445 = vmatmul.mubr.f32.gmra.mrb[0].mxu0 %v1444
    %v1446 = vpop.f32.mrb[0].mxu0
    %v1447 = vadd.f32 %v1326, %v1446
    %v1448 = vpop.f32.mrb[0].mxu0
    %1449 = vmatprep.mubr.f32.mxu0 0.0
    %v1450 = vand.u32 %v612, 4294901760
    %1451 = vmatmul.mubr.f32.gmra.mrb[0].mxu0 %v1450
    %v1452 = vpop.f32.mrb[0].mxu0
    %v1453 = vadd.f32 %v1332, %v1452
    %v1454 = vpop.f32.mrb[0].mxu0
    %1455 = vmatprep.mubr.f32.mxu0 0.0
    %v1456 = vand.u32 %v614, 4294901760
    %1457 = vmatmul.mubr.f32.gmra.mrb[0].mxu0 %v1456
    %v1458 = vpop.f32.mrb[0].mxu0
    %v1459 = vadd.f32 %v1338, %v1458
    %v1460 = vpop.f32.mrb[0].mxu0
    %1461 = vmatprep.mubr.f32.mxu0 0.0
    %v1462 = vand.u32 %v616, 4294901760
    %1463 = vmatmul.mubr.f32.gmra.mrb[0].mxu0 %v1462
    %v1464 = vpop.f32.mrb[0].mxu0
    %v1465 = vadd.f32 %v1344, %v1464
    %v1466 = vpop.f32.mrb[0].mxu0
    %1467 = vmatprep.mubr.f32.mxu0 0.0
    %v1468 = vand.u32 %v618, 4294901760
    %1469 = vmatmul.mubr.f32.gmra.mrb[0].mxu0 %v1468
    %v1470 = vpop.f32.mrb[0].mxu0
    %v1471 = vadd.f32 %v1350, %v1470
    %v1472 = vpop.f32.mrb[0].mxu0
    %1473 = vdwg.mxu0
    %v1474 = vmul.f32 %v1429, 0.35355338
    %v1475 = vmul.f32 %v1435, 0.35355338
    %v1476 = vmul.f32 %v1441, 0.35355338
    %v1477 = vmul.f32 %v1447, 0.35355338
    %v1478 = vmul.f32 %v1453, 0.35355338
    %v1479 = vmul.f32 %v1459, 0.35355338
    %v1480 = vmul.f32 %v1465, 0.35355338
    %v1481 = vmul.f32 %v1471, 0.35355338
    %v1482 = vld [vmem:[%s1] sm:$0xff]
    %v1483 = vld [vmem:[%s1 + $0x8] sm:$0xff]
    %v1484 = vld [vmem:[%s1 + $0x10] sm:$0xff]
    %v1485 = vld [vmem:[%s1 + $0x18] sm:$0xff]
    %v1486 = vld [vmem:[%s1 + $0x20] sm:$0xff]
    %v1487 = vld [vmem:[%s1 + $0x28] sm:$0xff]
    %v1488 = vld [vmem:[%s1 + $0x30] sm:$0xff]
    %v1489 = vld [vmem:[%s1 + $0x38] sm:$0xff]
    %v1490 = vadd.f32 %v1474, %v1482
    %v1491 = vadd.f32 %v1475, %v1483
    %v1492 = vadd.f32 %v1476, %v1484
    %v1493 = vadd.f32 %v1477, %v1485
    %v1494 = vadd.f32 %v1478, %v1486
    %v1495 = vadd.f32 %v1479, %v1487
    %v1496 = vadd.f32 %v1480, %v1488
    %v1497 = vadd.f32 %v1481, %v1489
    %vm1498 = vcmask 523264
    %v1499 = vsel %vm1498, %v1490, -inf
    %1500 = vmax.xlane.f32.xlu0 %v1499
    %v1501 = vpop.xlane.xlu0 %1500
    %v1502 = vsel %vm1498, %v1491, -inf
    %1503 = vmax.xlane.f32.xlu0 %v1502
    %v1504 = vpop.xlane.xlu0 %1503
    %v1505 = vsel %vm1498, %v1492, -inf
    %1506 = vmax.xlane.f32.xlu0 %v1505
    %v1507 = vpop.xlane.xlu0 %1506
    %v1508 = vsel %vm1498, %v1493, -inf
    %1509 = vmax.xlane.f32.xlu0 %v1508
    %v1510 = vpop.xlane.xlu0 %1509
    %v1511 = vsel %vm1498, %v1494, -inf
    %1512 = vmax.xlane.f32.xlu0 %v1511
    %v1513 = vpop.xlane.xlu0 %1512
    %v1514 = vsel %vm1498, %v1495, -inf
    %1515 = vmax.xlane.f32.xlu0 %v1514
    %v1516 = vpop.xlane.xlu0 %1515
    %v1517 = vsel %vm1498, %v1496, -inf
    %1518 = vmax.xlane.f32.xlu0 %v1517
    %v1519 = vpop.xlane.xlu0 %1518
    %v1520 = vsel %vm1498, %v1497, -inf
    %1521 = vmax.xlane.f32.xlu0 %v1520
    %v1522 = vpop.xlane.xlu0 %1521
    %v1523 = vsub.f32 %v1490, %v1501
    %v1524 = vsub.f32 %v1491, %v1504
    %v1525 = vsub.f32 %v1492, %v1507
    %v1526 = vsub.f32 %v1493, %v1510
    %v1527 = vsub.f32 %v1494, %v1513
    %v1528 = vsub.f32 %v1495, %v1516
    %v1529 = vsub.f32 %v1496, %v1519
    %v1530 = vsub.f32 %v1497, %v1522
    %v1531 = vmul.f32 %v1523, 1.442695
    %v1532 = vpow.pop %v1531
    %v1533 = vmul.f32 %v1524, 1.442695
    %v1534 = vpow.pop %v1533
    %v1535 = vmul.f32 %v1525, 1.442695
    %v1536 = vpow.pop %v1535
    %v1537 = vmul.f32 %v1526, 1.442695
    %v1538 = vpow.pop %v1537
    %v1539 = vmul.f32 %v1527, 1.442695
    %v1540 = vpow.pop %v1539
    %v1541 = vmul.f32 %v1528, 1.442695
    %v1542 = vpow.pop %v1541
    %v1543 = vmul.f32 %v1529, 1.442695
    %v1544 = vpow.pop %v1543
    %v1545 = vmul.f32 %v1530, 1.442695
    %v1546 = vpow.pop %v1545
    %v1547 = vsel %vm1498, %v1532, 0.0
    %1548 = vadd.xlane.f32.xlu0 %v1547
    %v1549 = vpop.xlane.xlu0 %1548
    %v1550 = vsel %vm1498, %v1534, 0.0
    %1551 = vadd.xlane.f32.xlu0 %v1550
    %v1552 = vpop.xlane.xlu0 %1551
    %v1553 = vsel %vm1498, %v1536, 0.0
    %1554 = vadd.xlane.f32.xlu0 %v1553
    %v1555 = vpop.xlane.xlu0 %1554
    %v1556 = vsel %vm1498, %v1538, 0.0
    %1557 = vadd.xlane.f32.xlu0 %v1556
    %v1558 = vpop.xlane.xlu0 %1557
    %v1559 = vsel %vm1498, %v1540, 0.0
    %1560 = vadd.xlane.f32.xlu0 %v1559
    %v1561 = vpop.xlane.xlu0 %1560
    %v1562 = vsel %vm1498, %v1542, 0.0
    %1563 = vadd.xlane.f32.xlu0 %v1562
    %v1564 = vpop.xlane.xlu0 %1563
    %v1565 = vsel %vm1498, %v1544, 0.0
    %1566 = vadd.xlane.f32.xlu0 %v1565
    %v1567 = vpop.xlane.xlu0 %1566
    %v1568 = vsel %vm1498, %v1546, 0.0
    %1569 = vadd.xlane.f32.xlu0 %v1568
    %v1570 = vpop.xlane.xlu0 %1569
    %v1571 = vrcp.pop %v1549
    %v1572 = vmul.f32 %v1532, %v1571
    %v1573 = vrcp.pop %v1552
    %v1574 = vmul.f32 %v1534, %v1573
    %v1575 = vrcp.pop %v1555
    %v1576 = vmul.f32 %v1536, %v1575
    %v1577 = vrcp.pop %v1558
    %v1578 = vmul.f32 %v1538, %v1577
    %v1579 = vrcp.pop %v1561
    %v1580 = vmul.f32 %v1540, %v1579
    %v1581 = vrcp.pop %v1564
    %v1582 = vmul.f32 %v1542, %v1581
    %v1583 = vrcp.pop %v1567
    %v1584 = vmul.f32 %v1544, %v1583
    %v1585 = vrcp.pop %v1570
    %v1586 = vmul.f32 %v1546, %v1585
    %1587 = vrot.lane.b32.xlu0 %v564, 64
    %v1588 = vpop.permute.xlu0 %1587
    %1589 = vrot.lane.b32.xlu0 %v570, 64
    %v1590 = vpop.permute.xlu0 %1589
    %1591 = vrot.lane.b32.xlu0 %v576, 64
    %v1592 = vpop.permute.xlu0 %1591
    %1593 = vrot.lane.b32.xlu0 %v578, 64
    %v1594 = vpop.permute.xlu0 %1593
    %1595 = vrot.lane.b32.xlu0 %v580, 64
    %v1596 = vpop.permute.xlu0 %1595
    %1597 = vrot.lane.b32.xlu0 %v582, 64
    %v1598 = vpop.permute.xlu0 %1597
    %1599 = vrot.lane.b32.xlu0 %v584, 64
    %v1600 = vpop.permute.xlu0 %1599
    %1601 = vrot.lane.b32.xlu0 %v586, 64
    %v1602 = vpop.permute.xlu0 %1601
    %v1612 = vsel %vm1498, %v1572, 0
    %v1615 = vsel %vm1498, %v1574, 0
    %v1618 = vsel %vm1498, %v1576, 0
    %v1621 = vsel %vm1498, %v1578, 0
    %v1624 = vsel %vm1498, %v1580, 0
    %v1627 = vsel %vm1498, %v1582, 0
    %v1630 = vsel %vm1498, %v1584, 0
    %v1633 = vsel %vm1498, %v1586, 0
    %1635 = vmatprep.subr.mxu0 0.0
    %v1636 = vand.u32 %v1588, 4294901760
    %1637 = vmatpush1.msra.mxu0 %v1636
    %1638 = vmatprep.subr.mxu0 0.0
    %v1639 = vand.u32 %v1590, 4294901760
    %1640 = vmatpush1.msra.mxu0 %v1639
    %1641 = vmatprep.subr.mxu0 0.0
    %v1642 = vand.u32 %v1592, 4294901760
    %1643 = vmatpush1.msra.mxu0 %v1642
    %1644 = vmatprep.subr.mxu0 0.0
    %v1645 = vand.u32 %v1594, 4294901760
    %1646 = vmatpush1.msra.mxu0 %v1645
    %1647 = vmatprep.subr.mxu0 0.0
    %v1648 = vand.u32 %v1596, 4294901760
    %1649 = vmatpush1.msra.mxu0 %v1648
    %1650 = vmatprep.subr.mxu0 0.0
    %v1651 = vand.u32 %v1598, 4294901760
    %1652 = vmatpush1.msra.mxu0 %v1651
    %1653 = vmatprep.subr.mxu0 0.0
    %v1654 = vand.u32 %v1600, 4294901760
    %1655 = vmatpush1.msra.mxu0 %v1654
    %1656 = vmatprep.subr.mxu0 0.0
    %v1657 = vand.u32 %v1602, 4294901760
    %1658 = vmatpush1.msra.mxu0 %v1657
    %1659 = vmatprep.subr.mxu0 0.0
    %1660 = vmatpush1.msra.mxu0 0.0
    %1661 = vmatprep.subr.mxu0 0.0
    %1662 = vmatpush1.msra.mxu0 0.0
    %1663 = vmatprep.subr.mxu0 0.0
    %1664 = vmatpush1.msra.mxu0 0.0
    %1665 = vmatprep.subr.mxu0 0.0
    %1666 = vmatpush1.msra.mxu0 0.0
    %1667 = vmatprep.subr.mxu0 0.0
    %1668 = vmatpush1.msra.mxu0 0.0
    %1669 = vmatprep.subr.mxu0 0.0
    %1670 = vmatpush1.msra.mxu0 0.0
    %1671 = vmatprep.subr.mxu0 0.0
    %1672 = vmatpush1.msra.mxu0 0.0
    %1673 = vmatprep.subr.mxu0 0.0
    %1674 = vmatpush1.msra.mxu0 0.0
    %1675 = vmatprep.subr.mxu0 0.0
    %1676 = vmatpush1.msra.mxu0 0.0
    %1677 = vmatprep.subr.mxu0 0.0
    %1678 = vmatpush1.msra.mxu0 0.0
    %1679 = vmatprep.subr.mxu0 0.0
    %1680 = vmatpush1.msra.mxu0 0.0
    %1681 = vmatprep.subr.mxu0 0.0
    %1682 = vmatpush1.msra.mxu0 0.0
    %1683 = vmatprep.subr.mxu0 0.0
    %1684 = vmatpush1.msra.mxu0 0.0
    %1685 = vmatprep.subr.mxu0 0.0
    %1686 = vmatpush1.msra.mxu0 0.0
    %1687 = vmatprep.subr.mxu0 0.0
    %1688 = vmatpush1.msra.mxu0 0.0
    %1689 = vmatprep.subr.mxu0 0.0
    %1690 = vmatpush1.msra.mxu0 0.0
    %1691 = vmatprep.subr.mxu0 0.0
    %1692 = vmatpush1.msra.mxu0 0.0
    %1693 = vmatprep.subr.mxu0 0.0
    %1694 = vmatpush1.msra.mxu0 0.0
    %1695 = vmatprep.subr.mxu0 0.0
    %1696 = vmatpush1.msra.mxu0 0.0
    %1697 = vmatprep.subr.mxu0 0.0
    %1698 = vmatpush1.msra.mxu0 0.0
    %1699 = vmatprep.subr.mxu0 0.0
    %1700 = vmatpush1.msra.mxu0 0.0
    %1701 = vmatprep.subr.mxu0 0.0
    %1702 = vmatpush1.msra.mxu0 0.0
    %1703 = vmatprep.subr.mxu0 0.0
    %1704 = vmatpush1.msra.mxu0 0.0
    %1705 = vmatprep.subr.mxu0 0.0
    %1706 = vmatpush1.msra.mxu0 0.0
    %1707 = vmatprep.mubr.f32.mxu0 0.0
    %v1708 = vand.u32 %v1612, 4294901760
    %v1709 = vsub.f32 %v1612, %v1708
    %v1710 = vand.u32 %v1709, 4294901760
    %v1711 = vsub.f32 %v1709, %v1710
    %v1712 = vand.u32 %v1711, 4294901760
    %1713 = vmatmul.mubr.f32.gmra.mrb[0].mxu0 %v1712
    %v1714 = vpop.f32.mrb[0].mxu0
    %v1715 = vadd.f32 0.0, %v1714
    %v1716 = vpop.f32.mrb[0].mxu0
    %1717 = vmatprep.mubr.f32.mxu0 0.0
    %v1718 = vand.u32 %v1615, 4294901760
    %v1719 = vsub.f32 %v1615, %v1718
    %v1720 = vand.u32 %v1719, 4294901760
    %v1721 = vsub.f32 %v1719, %v1720
    %v1722 = vand.u32 %v1721, 4294901760
    %1723 = vmatmul.mubr.f32.gmra.mrb[0].mxu0 %v1722
    %v1724 = vpop.f32.mrb[0].mxu0
    %v1725 = vadd.f32 0.0, %v1724
    %v1726 = vpop.f32.mrb[0].mxu0
    %1727 = vmatprep.mubr.f32.mxu0 0.0
    %v1728 = vand.u32 %v1618, 4294901760
    %v1729 = vsub.f32 %v1618, %v1728
    %v1730 = vand.u32 %v1729, 4294901760
    %v1731 = vsub.f32 %v1729, %v1730
    %v1732 = vand.u32 %v1731, 4294901760
    %1733 = vmatmul.mubr.f32.gmra.mrb[0].mxu0 %v1732
    %v1734 = vpop.f32.mrb[0].mxu0
    %v1735 = vadd.f32 0.0, %v1734
    %v1736 = vpop.f32.mrb[0].mxu0
    %1737 = vmatprep.mubr.f32.mxu0 0.0
    %v1738 = vand.u32 %v1621, 4294901760
    %v1739 = vsub.f32 %v1621, %v1738
    %v1740 = vand.u32 %v1739, 4294901760
    %v1741 = vsub.f32 %v1739, %v1740
    %v1742 = vand.u32 %v1741, 4294901760
    %1743 = vmatmul.mubr.f32.gmra.mrb[0].mxu0 %v1742
    %v1744 = vpop.f32.mrb[0].mxu0
    %v1745 = vadd.f32 0.0, %v1744
    %v1746 = vpop.f32.mrb[0].mxu0
    %1747 = vmatprep.mubr.f32.mxu0 0.0
    %v1748 = vand.u32 %v1624, 4294901760
    %v1749 = vsub.f32 %v1624, %v1748
    %v1750 = vand.u32 %v1749, 4294901760
    %v1751 = vsub.f32 %v1749, %v1750
    %v1752 = vand.u32 %v1751, 4294901760
    %1753 = vmatmul.mubr.f32.gmra.mrb[0].mxu0 %v1752
    %v1754 = vpop.f32.mrb[0].mxu0
    %v1755 = vadd.f32 0.0, %v1754
    %v1756 = vpop.f32.mrb[0].mxu0
    %1757 = vmatprep.mubr.f32.mxu0 0.0
    %v1758 = vand.u32 %v1627, 4294901760
    %v1759 = vsub.f32 %v1627, %v1758
    %v1760 = vand.u32 %v1759, 4294901760
    %v1761 = vsub.f32 %v1759, %v1760
    %v1762 = vand.u32 %v1761, 4294901760
    %1763 = vmatmul.mubr.f32.gmra.mrb[0].mxu0 %v1762
    %v1764 = vpop.f32.mrb[0].mxu0
    %v1765 = vadd.f32 0.0, %v1764
    %v1766 = vpop.f32.mrb[0].mxu0
    %1767 = vmatprep.mubr.f32.mxu0 0.0
    %v1768 = vand.u32 %v1630, 4294901760
    %v1769 = vsub.f32 %v1630, %v1768
    %v1770 = vand.u32 %v1769, 4294901760
    %v1771 = vsub.f32 %v1769, %v1770
    %v1772 = vand.u32 %v1771, 4294901760
    %1773 = vmatmul.mubr.f32.gmra.mrb[0].mxu0 %v1772
    %v1774 = vpop.f32.mrb[0].mxu0
    %v1775 = vadd.f32 0.0, %v1774
    %v1776 = vpop.f32.mrb[0].mxu0
    %1777 = vmatprep.mubr.f32.mxu0 0.0
    %v1778 = vand.u32 %v1633, 4294901760
    %v1779 = vsub.f32 %v1633, %v1778
    %v1780 = vand.u32 %v1779, 4294901760
    %v1781 = vsub.f32 %v1779, %v1780
    %v1782 = vand.u32 %v1781, 4294901760
    %1783 = vmatmul.mubr.f32.gmra.mrb[0].mxu0 %v1782
    %v1784 = vpop.f32.mrb[0].mxu0
    %v1785 = vadd.f32 0.0, %v1784
    %v1786 = vpop.f32.mrb[0].mxu0
    %1787 = vdwg.mxu0
    %1788 = vmatprep.subr.mxu0 0.0
    %v1789 = vand.u32 %v1588, 4294901760
    %v1790 = vsub.f32 %v1588, %v1789
    %v1791 = vand.u32 %v1790, 4294901760
    %v1792 = vsub.f32 %v1790, %v1791
    %v1793 = vand.u32 %v1792, 4294901760
    %1794 = vmatpush1.msra.mxu0 %v1793
    %1795 = vmatprep.subr.mxu0 0.0
    %v1796 = vand.u32 %v1590, 4294901760
    %v1797 = vsub.f32 %v1590, %v1796
    %v1798 = vand.u32 %v1797, 4294901760
    %v1799 = vsub.f32 %v1797, %v1798
    %v1800 = vand.u32 %v1799, 4294901760
    %1801 = vmatpush1.msra.mxu0 %v1800
    %1802 = vmatprep.subr.mxu0 0.0
    %v1803 = vand.u32 %v1592, 4294901760
    %v1804 = vsub.f32 %v1592, %v1803
    %v1805 = vand.u32 %v1804, 4294901760
    %v1806 = vsub.f32 %v1804, %v1805
    %v1807 = vand.u32 %v1806, 4294901760
    %1808 = vmatpush1.msra.mxu0 %v1807
    %1809 = vmatprep.subr.mxu0 0.0
    %v1810 = vand.u32 %v1594, 4294901760
    %v1811 = vsub.f32 %v1594, %v1810
    %v1812 = vand.u32 %v1811, 4294901760
    %v1813 = vsub.f32 %v1811, %v1812
    %v1814 = vand.u32 %v1813, 4294901760
    %1815 = vmatpush1.msra.mxu0 %v1814
    %1816 = vmatprep.subr.mxu0 0.0
    %v1817 = vand.u32 %v1596, 4294901760
    %v1818 = vsub.f32 %v1596, %v1817
    %v1819 = vand.u32 %v1818, 4294901760
    %v1820 = vsub.f32 %v1818, %v1819
    %v1821 = vand.u32 %v1820, 4294901760
    %1822 = vmatpush1.msra.mxu0 %v1821
    %1823 = vmatprep.subr.mxu0 0.0
    %v1824 = vand.u32 %v1598, 4294901760
    %v1825 = vsub.f32 %v1598, %v1824
    %v1826 = vand.u32 %v1825, 4294901760
    %v1827 = vsub.f32 %v1825, %v1826
    %v1828 = vand.u32 %v1827, 4294901760
    %1829 = vmatpush1.msra.mxu0 %v1828
    %1830 = vmatprep.subr.mxu0 0.0
    %v1831 = vand.u32 %v1600, 4294901760
    %v1832 = vsub.f32 %v1600, %v1831
    %v1833 = vand.u32 %v1832, 4294901760
    %v1834 = vsub.f32 %v1832, %v1833
    %v1835 = vand.u32 %v1834, 4294901760
    %1836 = vmatpush1.msra.mxu0 %v1835
    %1837 = vmatprep.subr.mxu0 0.0
    %v1838 = vand.u32 %v1602, 4294901760
    %v1839 = vsub.f32 %v1602, %v1838
    %v1840 = vand.u32 %v1839, 4294901760
    %v1841 = vsub.f32 %v1839, %v1840
    %v1842 = vand.u32 %v1841, 4294901760
    %1843 = vmatpush1.msra.mxu0 %v1842
    %1844 = vmatprep.subr.mxu0 0.0
    %1845 = vmatpush1.msra.mxu0 0.0
    %1846 = vmatprep.subr.mxu0 0.0
    %1847 = vmatpush1.msra.mxu0 0.0
    %1848 = vmatprep.subr.mxu0 0.0
    %1849 = vmatpush1.msra.mxu0 0.0
    %1850 = vmatprep.subr.mxu0 0.0
    %1851 = vmatpush1.msra.mxu0 0.0
    %1852 = vmatprep.subr.mxu0 0.0
    %1853 = vmatpush1.msra.mxu0 0.0
    %1854 = vmatprep.subr.mxu0 0.0
    %1855 = vmatpush1.msra.mxu0 0.0
    %1856 = vmatprep.subr.mxu0 0.0
    %1857 = vmatpush1.msra.mxu0 0.0
    %1858 = vmatprep.subr.mxu0 0.0
    %1859 = vmatpush1.msra.mxu0 0.0
    %1860 = vmatprep.subr.mxu0 0.0
    %1861 = vmatpush1.msra.mxu0 0.0
    %1862 = vmatprep.subr.mxu0 0.0
    %1863 = vmatpush1.msra.mxu0 0.0
    %1864 = vmatprep.subr.mxu0 0.0
    %1865 = vmatpush1.msra.mxu0 0.0
    %1866 = vmatprep.subr.mxu0 0.0
    %1867 = vmatpush1.msra.mxu0 0.0
    %1868 = vmatprep.subr.mxu0 0.0
    %1869 = vmatpush1.msra.mxu0 0.0
    %1870 = vmatprep.subr.mxu0 0.0
    %1871 = vmatpush1.msra.mxu0 0.0
    %1872 = vmatprep.subr.mxu0 0.0
    %1873 = vmatpush1.msra.mxu0 0.0
    %1874 = vmatprep.subr.mxu0 0.0
    %1875 = vmatpush1.msra.mxu0 0.0
    %1876 = vmatprep.subr.mxu0 0.0
    %1877 = vmatpush1.msra.mxu0 0.0
    %1878 = vmatprep.subr.mxu0 0.0
    %1879 = vmatpush1.msra.mxu0 0.0
    %1880 = vmatprep.subr.mxu0 0.0
    %1881 = vmatpush1.msra.mxu0 0.0
    %1882 = vmatprep.subr.mxu0 0.0
    %1883 = vmatpush1.msra.mxu0 0.0
    %1884 = vmatprep.subr.mxu0 0.0
    %1885 = vmatpush1.msra.mxu0 0.0
    %1886 = vmatprep.subr.mxu0 0.0
    %1887 = vmatpush1.msra.mxu0 0.0
    %1888 = vmatprep.subr.mxu0 0.0
    %1889 = vmatpush1.msra.mxu0 0.0
    %1890 = vmatprep.subr.mxu0 0.0
    %1891 = vmatpush1.msra.mxu0 0.0
    %1892 = vmatprep.mubr.f32.mxu0 0.0
    %v1893 = vand.u32 %v1612, 4294901760
    %1894 = vmatmul.mubr.f32.gmra.mrb[0].mxu0 %v1893
    %v1895 = vpop.f32.mrb[0].mxu0
    %v1896 = vadd.f32 %v1715, %v1895
    %v1897 = vpop.f32.mrb[0].mxu0
    %1898 = vmatprep.mubr.f32.mxu0 0.0
    %v1899 = vand.u32 %v1615, 4294901760
    %1900 = vmatmul.mubr.f32.gmra.mrb[0].mxu0 %v1899
    %v1901 = vpop.f32.mrb[0].mxu0
    %v1902 = vadd.f32 %v1725, %v1901
    %v1903 = vpop.f32.mrb[0].mxu0
    %1904 = vmatprep.mubr.f32.mxu0 0.0
    %v1905 = vand.u32 %v1618, 4294901760
    %1906 = vmatmul.mubr.f32.gmra.mrb[0].mxu0 %v1905
    %v1907 = vpop.f32.mrb[0].mxu0
    %v1908 = vadd.f32 %v1735, %v1907
    %v1909 = vpop.f32.mrb[0].mxu0
    %1910 = vmatprep.mubr.f32.mxu0 0.0
    %v1911 = vand.u32 %v1621, 4294901760
    %1912 = vmatmul.mubr.f32.gmra.mrb[0].mxu0 %v1911
    %v1913 = vpop.f32.mrb[0].mxu0
    %v1914 = vadd.f32 %v1745, %v1913
    %v1915 = vpop.f32.mrb[0].mxu0
    %1916 = vmatprep.mubr.f32.mxu0 0.0
    %v1917 = vand.u32 %v1624, 4294901760
    %1918 = vmatmul.mubr.f32.gmra.mrb[0].mxu0 %v1917
    %v1919 = vpop.f32.mrb[0].mxu0
    %v1920 = vadd.f32 %v1755, %v1919
    %v1921 = vpop.f32.mrb[0].mxu0
    %1922 = vmatprep.mubr.f32.mxu0 0.0
    %v1923 = vand.u32 %v1627, 4294901760
    %1924 = vmatmul.mubr.f32.gmra.mrb[0].mxu0 %v1923
    %v1925 = vpop.f32.mrb[0].mxu0
    %v1926 = vadd.f32 %v1765, %v1925
    %v1927 = vpop.f32.mrb[0].mxu0
    %1928 = vmatprep.mubr.f32.mxu0 0.0
    %v1929 = vand.u32 %v1630, 4294901760
    %1930 = vmatmul.mubr.f32.gmra.mrb[0].mxu0 %v1929
    %v1931 = vpop.f32.mrb[0].mxu0
    %v1932 = vadd.f32 %v1775, %v1931
    %v1933 = vpop.f32.mrb[0].mxu0
    %1934 = vmatprep.mubr.f32.mxu0 0.0
    %v1935 = vand.u32 %v1633, 4294901760
    %1936 = vmatmul.mubr.f32.gmra.mrb[0].mxu0 %v1935
    %v1937 = vpop.f32.mrb[0].mxu0
    %v1938 = vadd.f32 %v1785, %v1937
    %v1939 = vpop.f32.mrb[0].mxu0
    %1940 = vdwg.mxu0
    %1941 = vmatprep.subr.mxu0 0.0
    %v1942 = vand.u32 %v1588, 4294901760
    %v1943 = vsub.f32 %v1588, %v1942
    %1944 = vmatpush1.msra.mxu0 %v1943
    %1945 = vmatprep.subr.mxu0 0.0
    %v1946 = vand.u32 %v1590, 4294901760
    %v1947 = vsub.f32 %v1590, %v1946
    %1948 = vmatpush1.msra.mxu0 %v1947
    %1949 = vmatprep.subr.mxu0 0.0
    %v1950 = vand.u32 %v1592, 4294901760
    %v1951 = vsub.f32 %v1592, %v1950
    %1952 = vmatpush1.msra.mxu0 %v1951
    %1953 = vmatprep.subr.mxu0 0.0
    %v1954 = vand.u32 %v1594, 4294901760
    %v1955 = vsub.f32 %v1594, %v1954
    %1956 = vmatpush1.msra.mxu0 %v1955
    %1957 = vmatprep.subr.mxu0 0.0
    %v1958 = vand.u32 %v1596, 4294901760
    %v1959 = vsub.f32 %v1596, %v1958
    %1960 = vmatpush1.msra.mxu0 %v1959
    %1961 = vmatprep.subr.mxu0 0.0
    %v1962 = vand.u32 %v1598, 4294901760
    %v1963 = vsub.f32 %v1598, %v1962
    %1964 = vmatpush1.msra.mxu0 %v1963
    %1965 = vmatprep.subr.mxu0 0.0
    %v1966 = vand.u32 %v1600, 4294901760
    %v1967 = vsub.f32 %v1600, %v1966
    %1968 = vmatpush1.msra.mxu0 %v1967
    %1969 = vmatprep.subr.mxu0 0.0
    %v1970 = vand.u32 %v1602, 4294901760
    %v1971 = vsub.f32 %v1602, %v1970
    %1972 = vmatpush1.msra.mxu0 %v1971
    %1973 = vmatprep.subr.mxu0 0.0
    %1974 = vmatpush1.msra.mxu0 0.0
    %1975 = vmatprep.subr.mxu0 0.0
    %1976 = vmatpush1.msra.mxu0 0.0
    %1977 = vmatprep.subr.mxu0 0.0
    %1978 = vmatpush1.msra.mxu0 0.0
    %1979 = vmatprep.subr.mxu0 0.0
    %1980 = vmatpush1.msra.mxu0 0.0
    %1981 = vmatprep.subr.mxu0 0.0
    %1982 = vmatpush1.msra.mxu0 0.0
    %1983 = vmatprep.subr.mxu0 0.0
    %1984 = vmatpush1.msra.mxu0 0.0
    %1985 = vmatprep.subr.mxu0 0.0
    %1986 = vmatpush1.msra.mxu0 0.0
    %1987 = vmatprep.subr.mxu0 0.0
    %1988 = vmatpush1.msra.mxu0 0.0
    %1989 = vmatprep.subr.mxu0 0.0
    %1990 = vmatpush1.msra.mxu0 0.0
    %1991 = vmatprep.subr.mxu0 0.0
    %1992 = vmatpush1.msra.mxu0 0.0
    %1993 = vmatprep.subr.mxu0 0.0
    %1994 = vmatpush1.msra.mxu0 0.0
    %1995 = vmatprep.subr.mxu0 0.0
    %1996 = vmatpush1.msra.mxu0 0.0
    %1997 = vmatprep.subr.mxu0 0.0
    %1998 = vmatpush1.msra.mxu0 0.0
    %1999 = vmatprep.subr.mxu0 0.0
    %2000 = vmatpush1.msra.mxu0 0.0
    %2001 = vmatprep.subr.mxu0 0.0
    %2002 = vmatpush1.msra.mxu0 0.0
    %2003 = vmatprep.subr.mxu0 0.0
    %2004 = vmatpush1.msra.mxu0 0.0
    %2005 = vmatprep.subr.mxu0 0.0
    %2006 = vmatpush1.msra.mxu0 0.0
    %2007 = vmatprep.subr.mxu0 0.0
    %2008 = vmatpush1.msra.mxu0 0.0
    %2009 = vmatprep.subr.mxu0 0.0
    %2010 = vmatpush1.msra.mxu0 0.0
    %2011 = vmatprep.subr.mxu0 0.0
    %2012 = vmatpush1.msra.mxu0 0.0
    %2013 = vmatprep.subr.mxu0 0.0
    %2014 = vmatpush1.msra.mxu0 0.0
    %2015 = vmatprep.subr.mxu0 0.0
    %2016 = vmatpush1.msra.mxu0 0.0
    %2017 = vmatprep.subr.mxu0 0.0
    %2018 = vmatpush1.msra.mxu0 0.0
    %2019 = vmatprep.subr.mxu0 0.0
    %2020 = vmatpush1.msra.mxu0 0.0
    %2021 = vmatprep.mubr.f32.mxu0 0.0
    %v2022 = vand.u32 %v1612, 4294901760
    %v2023 = vsub.f32 %v1612, %v2022
    %2024 = vmatmul.mubr.f32.gmra.mrb[0].mxu0 %v2023
    %v2025 = vpop.f32.mrb[0].mxu0
    %v2026 = vadd.f32 %v1896, %v2025
    %v2027 = vpop.f32.mrb[0].mxu0
    %2028 = vmatprep.mubr.f32.mxu0 0.0
    %v2029 = vand.u32 %v1615, 4294901760
    %v2030 = vsub.f32 %v1615, %v2029
    %2031 = vmatmul.mubr.f32.gmra.mrb[0].mxu0 %v2030
    %v2032 = vpop.f32.mrb[0].mxu0
    %v2033 = vadd.f32 %v1902, %v2032
    %v2034 = vpop.f32.mrb[0].mxu0
    %2035 = vmatprep.mubr.f32.mxu0 0.0
    %v2036 = vand.u32 %v1618, 4294901760
    %v2037 = vsub.f32 %v1618, %v2036
    %2038 = vmatmul.mubr.f32.gmra.mrb[0].mxu0 %v2037
    %v2039 = vpop.f32.mrb[0].mxu0
    %v2040 = vadd.f32 %v1908, %v2039
    %v2041 = vpop.f32.mrb[0].mxu0
    %2042 = vmatprep.mubr.f32.mxu0 0.0
    %v2043 = vand.u32 %v1621, 4294901760
    %v2044 = vsub.f32 %v1621, %v2043
    %2045 = vmatmul.mubr.f32.gmra.mrb[0].mxu0 %v2044
    %v2046 = vpop.f32.mrb[0].mxu0
    %v2047 = vadd.f32 %v1914, %v2046
    %v2048 = vpop.f32.mrb[0].mxu0
    %2049 = vmatprep.mubr.f32.mxu0 0.0
    %v2050 = vand.u32 %v1624, 4294901760
    %v2051 = vsub.f32 %v1624, %v2050
    %2052 = vmatmul.mubr.f32.gmra.mrb[0].mxu0 %v2051
    %v2053 = vpop.f32.mrb[0].mxu0
    %v2054 = vadd.f32 %v1920, %v2053
    %v2055 = vpop.f32.mrb[0].mxu0
    %2056 = vmatprep.mubr.f32.mxu0 0.0
    %v2057 = vand.u32 %v1627, 4294901760
    %v2058 = vsub.f32 %v1627, %v2057
    %2059 = vmatmul.mubr.f32.gmra.mrb[0].mxu0 %v2058
    %v2060 = vpop.f32.mrb[0].mxu0
    %v2061 = vadd.f32 %v1926, %v2060
    %v2062 = vpop.f32.mrb[0].mxu0
    %2063 = vmatprep.mubr.f32.mxu0 0.0
    %v2064 = vand.u32 %v1630, 4294901760
    %v2065 = vsub.f32 %v1630, %v2064
    %2066 = vmatmul.mubr.f32.gmra.mrb[0].mxu0 %v2065
    %v2067 = vpop.f32.mrb[0].mxu0
    %v2068 = vadd.f32 %v1932, %v2067
    %v2069 = vpop.f32.mrb[0].mxu0
    %2070 = vmatprep.mubr.f32.mxu0 0.0
    %v2071 = vand.u32 %v1633, 4294901760
    %v2072 = vsub.f32 %v1633, %v2071
    %2073 = vmatmul.mubr.f32.gmra.mrb[0].mxu0 %v2072
    %v2074 = vpop.f32.mrb[0].mxu0
    %v2075 = vadd.f32 %v1938, %v2074
    %v2076 = vpop.f32.mrb[0].mxu0
    %2077 = vdwg.mxu0
    %2078 = vmatprep.subr.mxu0 0.0
    %v2079 = vand.u32 %v1588, 4294901760
    %2080 = vmatpush1.msra.mxu0 %v2079
    %2081 = vmatprep.subr.mxu0 0.0
    %v2082 = vand.u32 %v1590, 4294901760
    %2083 = vmatpush1.msra.mxu0 %v2082
    %2084 = vmatprep.subr.mxu0 0.0
    %v2085 = vand.u32 %v1592, 4294901760
    %2086 = vmatpush1.msra.mxu0 %v2085
    %2087 = vmatprep.subr.mxu0 0.0
    %v2088 = vand.u32 %v1594, 4294901760
    %2089 = vmatpush1.msra.mxu0 %v2088
    %2090 = vmatprep.subr.mxu0 0.0
    %v2091 = vand.u32 %v1596, 4294901760
    %2092 = vmatpush1.msra.mxu0 %v2091
    %2093 = vmatprep.subr.mxu0 0.0
    %v2094 = vand.u32 %v1598, 4294901760
    %2095 = vmatpush1.msra.mxu0 %v2094
    %2096 = vmatprep.subr.mxu0 0.0
    %v2097 = vand.u32 %v1600, 4294901760
    %2098 = vmatpush1.msra.mxu0 %v2097
    %2099 = vmatprep.subr.mxu0 0.0
    %v2100 = vand.u32 %v1602, 4294901760
    %2101 = vmatpush1.msra.mxu0 %v2100
    %2102 = vmatprep.subr.mxu0 0.0
    %2103 = vmatpush1.msra.mxu0 0.0
    %2104 = vmatprep.subr.mxu0 0.0
    %2105 = vmatpush1.msra.mxu0 0.0
    %2106 = vmatprep.subr.mxu0 0.0
    %2107 = vmatpush1.msra.mxu0 0.0
    %2108 = vmatprep.subr.mxu0 0.0
    %2109 = vmatpush1.msra.mxu0 0.0
    %2110 = vmatprep.subr.mxu0 0.0
    %2111 = vmatpush1.msra.mxu0 0.0
    %2112 = vmatprep.subr.mxu0 0.0
    %2113 = vmatpush1.msra.mxu0 0.0
    %2114 = vmatprep.subr.mxu0 0.0
    %2115 = vmatpush1.msra.mxu0 0.0
    %2116 = vmatprep.subr.mxu0 0.0
    %2117 = vmatpush1.msra.mxu0 0.0
    %2118 = vmatprep.subr.mxu0 0.0
    %2119 = vmatpush1.msra.mxu0 0.0
    %2120 = vmatprep.subr.mxu0 0.0
    %2121 = vmatpush1.msra.mxu0 0.0
    %2122 = vmatprep.subr.mxu0 0.0
    %2123 = vmatpush1.msra.mxu0 0.0
    %2124 = vmatprep.subr.mxu0 0.0
    %2125 = vmatpush1.msra.mxu0 0.0
    %2126 = vmatprep.subr.mxu0 0.0
    %2127 = vmatpush1.msra.mxu0 0.0
    %2128 = vmatprep.subr.mxu0 0.0
    %2129 = vmatpush1.msra.mxu0 0.0
    %2130 = vmatprep.subr.mxu0 0.0
    %2131 = vmatpush1.msra.mxu0 0.0
    %2132 = vmatprep.subr.mxu0 0.0
    %2133 = vmatpush1.msra.mxu0 0.0
    %2134 = vmatprep.subr.mxu0 0.0
    %2135 = vmatpush1.msra.mxu0 0.0
    %2136 = vmatprep.subr.mxu0 0.0
    %2137 = vmatpush1.msra.mxu0 0.0
    %2138 = vmatprep.subr.mxu0 0.0
    %2139 = vmatpush1.msra.mxu0 0.0
    %2140 = vmatprep.subr.mxu0 0.0
    %2141 = vmatpush1.msra.mxu0 0.0
    %2142 = vmatprep.subr.mxu0 0.0
    %2143 = vmatpush1.msra.mxu0 0.0
    %2144 = vmatprep.subr.mxu0 0.0
    %2145 = vmatpush1.msra.mxu0 0.0
    %2146 = vmatprep.subr.mxu0 0.0
    %2147 = vmatpush1.msra.mxu0 0.0
    %2148 = vmatprep.subr.mxu0 0.0
    %2149 = vmatpush1.msra.mxu0 0.0
    %2150 = vmatprep.mubr.f32.mxu0 0.0
    %v2151 = vand.u32 %v1612, 4294901760
    %v2152 = vsub.f32 %v1612, %v2151
    %v2153 = vand.u32 %v2152, 4294901760
    %2154 = vmatmul.mubr.f32.gmra.mrb[0].mxu0 %v2153
    %v2155 = vpop.f32.mrb[0].mxu0
    %v2156 = vadd.f32 %v2026, %v2155
    %v2157 = vpop.f32.mrb[0].mxu0
    %2158 = vmatprep.mubr.f32.mxu0 0.0
    %v2159 = vand.u32 %v1615, 4294901760
    %v2160 = vsub.f32 %v1615, %v2159
    %v2161 = vand.u32 %v2160, 4294901760
    %2162 = vmatmul.mubr.f32.gmra.mrb[0].mxu0 %v2161
    %v2163 = vpop.f32.mrb[0].mxu0
    %v2164 = vadd.f32 %v2033, %v2163
    %v2165 = vpop.f32.mrb[0].mxu0
    %2166 = vmatprep.mubr.f32.mxu0 0.0
    %v2167 = vand.u32 %v1618, 4294901760
    %v2168 = vsub.f32 %v1618, %v2167
    %v2169 = vand.u32 %v2168, 4294901760
    %2170 = vmatmul.mubr.f32.gmra.mrb[0].mxu0 %v2169
    %v2171 = vpop.f32.mrb[0].mxu0
    %v2172 = vadd.f32 %v2040, %v2171
    %v2173 = vpop.f32.mrb[0].mxu0
    %2174 = vmatprep.mubr.f32.mxu0 0.0
    %v2175 = vand.u32 %v1621, 4294901760
    %v2176 = vsub.f32 %v1621, %v2175
    %v2177 = vand.u32 %v2176, 4294901760
    %2178 = vmatmul.mubr.f32.gmra.mrb[0].mxu0 %v2177
    %v2179 = vpop.f32.mrb[0].mxu0
    %v2180 = vadd.f32 %v2047, %v2179
    %v2181 = vpop.f32.mrb[0].mxu0
    %2182 = vmatprep.mubr.f32.mxu0 0.0
    %v2183 = vand.u32 %v1624, 4294901760
    %v2184 = vsub.f32 %v1624, %v2183
    %v2185 = vand.u32 %v2184, 4294901760
    %2186 = vmatmul.mubr.f32.gmra.mrb[0].mxu0 %v2185
    %v2187 = vpop.f32.mrb[0].mxu0
    %v2188 = vadd.f32 %v2054, %v2187
    %v2189 = vpop.f32.mrb[0].mxu0
    %2190 = vmatprep.mubr.f32.mxu0 0.0
    %v2191 = vand.u32 %v1627, 4294901760
    %v2192 = vsub.f32 %v1627, %v2191
    %v2193 = vand.u32 %v2192, 4294901760
    %2194 = vmatmul.mubr.f32.gmra.mrb[0].mxu0 %v2193
    %v2195 = vpop.f32.mrb[0].mxu0
    %v2196 = vadd.f32 %v2061, %v2195
    %v2197 = vpop.f32.mrb[0].mxu0
    %2198 = vmatprep.mubr.f32.mxu0 0.0
    %v2199 = vand.u32 %v1630, 4294901760
    %v2200 = vsub.f32 %v1630, %v2199
    %v2201 = vand.u32 %v2200, 4294901760
    %2202 = vmatmul.mubr.f32.gmra.mrb[0].mxu0 %v2201
    %v2203 = vpop.f32.mrb[0].mxu0
    %v2204 = vadd.f32 %v2068, %v2203
    %v2205 = vpop.f32.mrb[0].mxu0
    %2206 = vmatprep.mubr.f32.mxu0 0.0
    %v2207 = vand.u32 %v1633, 4294901760
    %v2208 = vsub.f32 %v1633, %v2207
    %v2209 = vand.u32 %v2208, 4294901760
    %2210 = vmatmul.mubr.f32.gmra.mrb[0].mxu0 %v2209
    %v2211 = vpop.f32.mrb[0].mxu0
    %v2212 = vadd.f32 %v2075, %v2211
    %v2213 = vpop.f32.mrb[0].mxu0
    %2214 = vdwg.mxu0
    %2215 = vmatprep.subr.mxu0 0.0
    %v2216 = vand.u32 %v1588, 4294901760
    %v2217 = vsub.f32 %v1588, %v2216
    %v2218 = vand.u32 %v2217, 4294901760
    %2219 = vmatpush1.msra.mxu0 %v2218
    %2220 = vmatprep.subr.mxu0 0.0
    %v2221 = vand.u32 %v1590, 4294901760
    %v2222 = vsub.f32 %v1590, %v2221
    %v2223 = vand.u32 %v2222, 4294901760
    %2224 = vmatpush1.msra.mxu0 %v2223
    %2225 = vmatprep.subr.mxu0 0.0
    %v2226 = vand.u32 %v1592, 4294901760
    %v2227 = vsub.f32 %v1592, %v2226
    %v2228 = vand.u32 %v2227, 4294901760
    %2229 = vmatpush1.msra.mxu0 %v2228
    %2230 = vmatprep.subr.mxu0 0.0
    %v2231 = vand.u32 %v1594, 4294901760
    %v2232 = vsub.f32 %v1594, %v2231
    %v2233 = vand.u32 %v2232, 4294901760
    %2234 = vmatpush1.msra.mxu0 %v2233
    %2235 = vmatprep.subr.mxu0 0.0
    %v2236 = vand.u32 %v1596, 4294901760
    %v2237 = vsub.f32 %v1596, %v2236
    %v2238 = vand.u32 %v2237, 4294901760
    %2239 = vmatpush1.msra.mxu0 %v2238
    %2240 = vmatprep.subr.mxu0 0.0
    %v2241 = vand.u32 %v1598, 4294901760
    %v2242 = vsub.f32 %v1598, %v2241
    %v2243 = vand.u32 %v2242, 4294901760
    %2244 = vmatpush1.msra.mxu0 %v2243
    %2245 = vmatprep.subr.mxu0 0.0
    %v2246 = vand.u32 %v1600, 4294901760
    %v2247 = vsub.f32 %v1600, %v2246
    %v2248 = vand.u32 %v2247, 4294901760
    %2249 = vmatpush1.msra.mxu0 %v2248
    %2250 = vmatprep.subr.mxu0 0.0
    %v2251 = vand.u32 %v1602, 4294901760
    %v2252 = vsub.f32 %v1602, %v2251
    %v2253 = vand.u32 %v2252, 4294901760
    %2254 = vmatpush1.msra.mxu0 %v2253
    %2255 = vmatprep.subr.mxu0 0.0
    %2256 = vmatpush1.msra.mxu0 0.0
    %2257 = vmatprep.subr.mxu0 0.0
    %2258 = vmatpush1.msra.mxu0 0.0
    %2259 = vmatprep.subr.mxu0 0.0
    %2260 = vmatpush1.msra.mxu0 0.0
    %2261 = vmatprep.subr.mxu0 0.0
    %2262 = vmatpush1.msra.mxu0 0.0
    %2263 = vmatprep.subr.mxu0 0.0
    %2264 = vmatpush1.msra.mxu0 0.0
    %2265 = vmatprep.subr.mxu0 0.0
    %2266 = vmatpush1.msra.mxu0 0.0
    %2267 = vmatprep.subr.mxu0 0.0
    %2268 = vmatpush1.msra.mxu0 0.0
    %2269 = vmatprep.subr.mxu0 0.0
    %2270 = vmatpush1.msra.mxu0 0.0
    %2271 = vmatprep.subr.mxu0 0.0
    %2272 = vmatpush1.msra.mxu0 0.0
    %2273 = vmatprep.subr.mxu0 0.0
    %2274 = vmatpush1.msra.mxu0 0.0
    %2275 = vmatprep.subr.mxu0 0.0
    %2276 = vmatpush1.msra.mxu0 0.0
    %2277 = vmatprep.subr.mxu0 0.0
    %2278 = vmatpush1.msra.mxu0 0.0
    %2279 = vmatprep.subr.mxu0 0.0
    %2280 = vmatpush1.msra.mxu0 0.0
    %2281 = vmatprep.subr.mxu0 0.0
    %2282 = vmatpush1.msra.mxu0 0.0
    %2283 = vmatprep.subr.mxu0 0.0
    %2284 = vmatpush1.msra.mxu0 0.0
    %2285 = vmatprep.subr.mxu0 0.0
    %2286 = vmatpush1.msra.mxu0 0.0
    %2287 = vmatprep.subr.mxu0 0.0
    %2288 = vmatpush1.msra.mxu0 0.0
    %2289 = vmatprep.subr.mxu0 0.0
    %2290 = vmatpush1.msra.mxu0 0.0
    %2291 = vmatprep.subr.mxu0 0.0
    %2292 = vmatpush1.msra.mxu0 0.0
    %2293 = vmatprep.subr.mxu0 0.0
    %2294 = vmatpush1.msra.mxu0 0.0
    %2295 = vmatprep.subr.mxu0 0.0
    %2296 = vmatpush1.msra.mxu0 0.0
    %2297 = vmatprep.subr.mxu0 0.0
    %2298 = vmatpush1.msra.mxu0 0.0
    %2299 = vmatprep.subr.mxu0 0.0
    %2300 = vmatpush1.msra.mxu0 0.0
    %2301 = vmatprep.subr.mxu0 0.0
    %2302 = vmatpush1.msra.mxu0 0.0
    %2303 = vmatprep.mubr.f32.mxu0 0.0
    %v2304 = vand.u32 %v1612, 4294901760
    %2305 = vmatmul.mubr.f32.gmra.mrb[0].mxu0 %v2304
    %v2306 = vpop.f32.mrb[0].mxu0
    %v2307 = vadd.f32 %v2156, %v2306
    %v2308 = vpop.f32.mrb[0].mxu0
    %2309 = vmatprep.mubr.f32.mxu0 0.0
    %v2310 = vand.u32 %v1615, 4294901760
    %2311 = vmatmul.mubr.f32.gmra.mrb[0].mxu0 %v2310
    %v2312 = vpop.f32.mrb[0].mxu0
    %v2313 = vadd.f32 %v2164, %v2312
    %v2314 = vpop.f32.mrb[0].mxu0
    %2315 = vmatprep.mubr.f32.mxu0 0.0
    %v2316 = vand.u32 %v1618, 4294901760
    %2317 = vmatmul.mubr.f32.gmra.mrb[0].mxu0 %v2316
    %v2318 = vpop.f32.mrb[0].mxu0
    %v2319 = vadd.f32 %v2172, %v2318
    %v2320 = vpop.f32.mrb[0].mxu0
    %2321 = vmatprep.mubr.f32.mxu0 0.0
    %v2322 = vand.u32 %v1621, 4294901760
    %2323 = vmatmul.mubr.f32.gmra.mrb[0].mxu0 %v2322
    %v2324 = vpop.f32.mrb[0].mxu0
    %v2325 = vadd.f32 %v2180, %v2324
    %v2326 = vpop.f32.mrb[0].mxu0
    %2327 = vmatprep.mubr.f32.mxu0 0.0
    %v2328 = vand.u32 %v1624, 4294901760
    %2329 = vmatmul.mubr.f32.gmra.mrb[0].mxu0 %v2328
    %v2330 = vpop.f32.mrb[0].mxu0
    %v2331 = vadd.f32 %v2188, %v2330
    %v2332 = vpop.f32.mrb[0].mxu0
    %2333 = vmatprep.mubr.f32.mxu0 0.0
    %v2334 = vand.u32 %v1627, 4294901760
    %2335 = vmatmul.mubr.f32.gmra.mrb[0].mxu0 %v2334
    %v2336 = vpop.f32.mrb[0].mxu0
    %v2337 = vadd.f32 %v2196, %v2336
    %v2338 = vpop.f32.mrb[0].mxu0
    %2339 = vmatprep.mubr.f32.mxu0 0.0
    %v2340 = vand.u32 %v1630, 4294901760
    %2341 = vmatmul.mubr.f32.gmra.mrb[0].mxu0 %v2340
    %v2342 = vpop.f32.mrb[0].mxu0
    %v2343 = vadd.f32 %v2204, %v2342
    %v2344 = vpop.f32.mrb[0].mxu0
    %2345 = vmatprep.mubr.f32.mxu0 0.0
    %v2346 = vand.u32 %v1633, 4294901760
    %2347 = vmatmul.mubr.f32.gmra.mrb[0].mxu0 %v2346
    %v2348 = vpop.f32.mrb[0].mxu0
    %v2349 = vadd.f32 %v2212, %v2348
    %v2350 = vpop.f32.mrb[0].mxu0
    %2351 = vdwg.mxu0
    %2352 = vmatprep.subr.mxu0 0.0
    %v2353 = vand.u32 %v1588, 4294901760
    %2354 = vmatpush1.msra.mxu0 %v2353
    %2355 = vmatprep.subr.mxu0 0.0
    %v2356 = vand.u32 %v1590, 4294901760
    %2357 = vmatpush1.msra.mxu0 %v2356
    %2358 = vmatprep.subr.mxu0 0.0
    %v2359 = vand.u32 %v1592, 4294901760
    %2360 = vmatpush1.msra.mxu0 %v2359
    %2361 = vmatprep.subr.mxu0 0.0
    %v2362 = vand.u32 %v1594, 4294901760
    %2363 = vmatpush1.msra.mxu0 %v2362
    %2364 = vmatprep.subr.mxu0 0.0
    %v2365 = vand.u32 %v1596, 4294901760
    %2366 = vmatpush1.msra.mxu0 %v2365
    %2367 = vmatprep.subr.mxu0 0.0
    %v2368 = vand.u32 %v1598, 4294901760
    %2369 = vmatpush1.msra.mxu0 %v2368
    %2370 = vmatprep.subr.mxu0 0.0
    %v2371 = vand.u32 %v1600, 4294901760
    %2372 = vmatpush1.msra.mxu0 %v2371
    %2373 = vmatprep.subr.mxu0 0.0
    %v2374 = vand.u32 %v1602, 4294901760
    %2375 = vmatpush1.msra.mxu0 %v2374
    %2376 = vmatprep.subr.mxu0 0.0
    %2377 = vmatpush1.msra.mxu0 0.0
    %2378 = vmatprep.subr.mxu0 0.0
    %2379 = vmatpush1.msra.mxu0 0.0
    %2380 = vmatprep.subr.mxu0 0.0
    %2381 = vmatpush1.msra.mxu0 0.0
    %2382 = vmatprep.subr.mxu0 0.0
    %2383 = vmatpush1.msra.mxu0 0.0
    %2384 = vmatprep.subr.mxu0 0.0
    %2385 = vmatpush1.msra.mxu0 0.0
    %2386 = vmatprep.subr.mxu0 0.0
    %2387 = vmatpush1.msra.mxu0 0.0
    %2388 = vmatprep.subr.mxu0 0.0
    %2389 = vmatpush1.msra.mxu0 0.0
    %2390 = vmatprep.subr.mxu0 0.0
    %2391 = vmatpush1.msra.mxu0 0.0
    %2392 = vmatprep.subr.mxu0 0.0
    %2393 = vmatpush1.msra.mxu0 0.0
    %2394 = vmatprep.subr.mxu0 0.0
    %2395 = vmatpush1.msra.mxu0 0.0
    %2396 = vmatprep.subr.mxu0 0.0
    %2397 = vmatpush1.msra.mxu0 0.0
    %2398 = vmatprep.subr.mxu0 0.0
    %2399 = vmatpush1.msra.mxu0 0.0
    %2400 = vmatprep.subr.mxu0 0.0
    %2401 = vmatpush1.msra.mxu0 0.0
    %2402 = vmatprep.subr.mxu0 0.0
    %2403 = vmatpush1.msra.mxu0 0.0
    %2404 = vmatprep.subr.mxu0 0.0
    %2405 = vmatpush1.msra.mxu0 0.0
    %2406 = vmatprep.subr.mxu0 0.0
    %2407 = vmatpush1.msra.mxu0 0.0
    %2408 = vmatprep.subr.mxu0 0.0
    %2409 = vmatpush1.msra.mxu0 0.0
    %2410 = vmatprep.subr.mxu0 0.0
    %2411 = vmatpush1.msra.mxu0 0.0
    %2412 = vmatprep.subr.mxu0 0.0
    %2413 = vmatpush1.msra.mxu0 0.0
    %2414 = vmatprep.subr.mxu0 0.0
    %2415 = vmatpush1.msra.mxu0 0.0
    %2416 = vmatprep.subr.mxu0 0.0
    %2417 = vmatpush1.msra.mxu0 0.0
    %2418 = vmatprep.subr.mxu0 0.0
    %2419 = vmatpush1.msra.mxu0 0.0
    %2420 = vmatprep.subr.mxu0 0.0
    %2421 = vmatpush1.msra.mxu0 0.0
    %2422 = vmatprep.subr.mxu0 0.0
    %2423 = vmatpush1.msra.mxu0 0.0
    %2424 = vmatprep.mubr.f32.mxu0 0.0
    %v2425 = vand.u32 %v1612, 4294901760
    %2426 = vmatmul.mubr.f32.gmra.mrb[0].mxu0 %v2425
    %v2427 = vpop.f32.mrb[0].mxu0
    %v2428 = vadd.f32 %v2307, %v2427
    %v2429 = vpop.f32.mrb[0].mxu0
    %2430 = vmatprep.mubr.f32.mxu0 0.0
    %v2431 = vand.u32 %v1615, 4294901760
    %2432 = vmatmul.mubr.f32.gmra.mrb[0].mxu0 %v2431
    %v2433 = vpop.f32.mrb[0].mxu0
    %v2434 = vadd.f32 %v2313, %v2433
    %v2435 = vpop.f32.mrb[0].mxu0
    %2436 = vmatprep.mubr.f32.mxu0 0.0
    %v2437 = vand.u32 %v1618, 4294901760
    %2438 = vmatmul.mubr.f32.gmra.mrb[0].mxu0 %v2437
    %v2439 = vpop.f32.mrb[0].mxu0
    %v2440 = vadd.f32 %v2319, %v2439
    %v2441 = vpop.f32.mrb[0].mxu0
    %2442 = vmatprep.mubr.f32.mxu0 0.0
    %v2443 = vand.u32 %v1621, 4294901760
    %2444 = vmatmul.mubr.f32.gmra.mrb[0].mxu0 %v2443
    %v2445 = vpop.f32.mrb[0].mxu0
    %v2446 = vadd.f32 %v2325, %v2445
    %v2447 = vpop.f32.mrb[0].mxu0
    %2448 = vmatprep.mubr.f32.mxu0 0.0
    %v2449 = vand.u32 %v1624, 4294901760
    %2450 = vmatmul.mubr.f32.gmra.mrb[0].mxu0 %v2449
    %v2451 = vpop.f32.mrb[0].mxu0
    %v2452 = vadd.f32 %v2331, %v2451
    %v2453 = vpop.f32.mrb[0].mxu0
    %2454 = vmatprep.mubr.f32.mxu0 0.0
    %v2455 = vand.u32 %v1627, 4294901760
    %2456 = vmatmul.mubr.f32.gmra.mrb[0].mxu0 %v2455
    %v2457 = vpop.f32.mrb[0].mxu0
    %v2458 = vadd.f32 %v2337, %v2457
    %v2459 = vpop.f32.mrb[0].mxu0
    %2460 = vmatprep.mubr.f32.mxu0 0.0
    %v2461 = vand.u32 %v1630, 4294901760
    %2462 = vmatmul.mubr.f32.gmra.mrb[0].mxu0 %v2461
    %v2463 = vpop.f32.mrb[0].mxu0
    %v2464 = vadd.f32 %v2343, %v2463
    %v2465 = vpop.f32.mrb[0].mxu0
    %2466 = vmatprep.mubr.f32.mxu0 0.0
    %v2467 = vand.u32 %v1633, 4294901760
    %2468 = vmatmul.mubr.f32.gmra.mrb[0].mxu0 %v2467
    %v2469 = vpop.f32.mrb[0].mxu0
    %v2470 = vadd.f32 %v2349, %v2469
    %v2471 = vpop.f32.mrb[0].mxu0
    %2472 = vdwg.mxu0
    %2475 = vrot.lane.b32.xlu0 %v2440, 8
    %v2476 = vpop.permute.xlu0 %2475
    %2477 = vrot.lane.b32.xlu0 %v2446, 8
    %v2478 = vpop.permute.xlu0 %2477
    %2483 = vrot.lane.b32.xlu0 %v2452, 16
    %v2484 = vpop.permute.xlu0 %2483
    %2485 = vrot.lane.b32.xlu0 %v2458, 16
    %v2486 = vpop.permute.xlu0 %2485
    %2491 = vrot.lane.b32.xlu0 %v2464, 24
    %v2492 = vpop.permute.xlu0 %2491
    %2493 = vrot.lane.b32.xlu0 %v2470, 24
    %v2494 = vpop.permute.xlu0 %2493
    %v2497 = vsel %vm603, %v2428, %v2476
    %v2498 = vsel %vm603, %v2434, %v2478
    %vm2499 = vcmask 130048
    %v2500 = vsel %vm2499, %v2497, %v2484
    %v2501 = vsel %vm2499, %v2498, %v2486
    %vm2502 = vcmask 195584
    %v2503 = vsel %vm2502, %v2500, %v2492
    %v2504 = vsel %vm2502, %v2501, %v2494
    %v2505 = vld [vmem:[%s3] sm:$0xff]
    %v2506 = vld [vmem:[%s3 + $0x8] sm:$0xff]
    %v2507 = vld [vmem:[%s3 + $0x10] sm:$0xff]
    %v2508 = vld [vmem:[%s3 + $0x18] sm:$0xff]
    %v2509 = vlaneseq
    %v2510 = vshrl.u32 %v2509, 7
    %v2511 = vsub.s32 1, %v2510
    %v2512 = vrot.slane %v29, %v2511
    %v2514 = vsel %vm38, %v2503, 0
    %v2517 = vsel %vm38, %v2504, 0
    %2519 = vmatprep.subr.mxu0 0.0
    %v2520 = vand.u32 %v2505, 4294901760
    %2521 = vmatpush1.msra.mxu0 %v2520
    %2522 = vmatprep.subr.mxu0 0.0
    %v2523 = vand.u32 %v2506, 4294901760
    %2524 = vmatpush1.msra.mxu0 %v2523
    %2525 = vmatprep.subr.mxu0 0.0
    %v2526 = vand.u32 %v2507, 4294901760
    %2527 = vmatpush1.msra.mxu0 %v2526
    %2528 = vmatprep.subr.mxu0 0.0
    %v2529 = vand.u32 %v2508, 4294901760
    %2530 = vmatpush1.msra.mxu0 %v2529
    %2531 = vmatprep.subr.mxu0 0.0
    %2532 = vmatpush1.msra.mxu0 0.0
    %2533 = vmatprep.subr.mxu0 0.0
    %2534 = vmatpush1.msra.mxu0 0.0
    %2535 = vmatprep.subr.mxu0 0.0
    %2536 = vmatpush1.msra.mxu0 0.0
    %2537 = vmatprep.subr.mxu0 0.0
    %2538 = vmatpush1.msra.mxu0 0.0
    %2539 = vmatprep.subr.mxu0 0.0
    %2540 = vmatpush1.msra.mxu0 0.0
    %2541 = vmatprep.subr.mxu0 0.0
    %2542 = vmatpush1.msra.mxu0 0.0
    %2543 = vmatprep.subr.mxu0 0.0
    %2544 = vmatpush1.msra.mxu0 0.0
    %2545 = vmatprep.subr.mxu0 0.0
    %2546 = vmatpush1.msra.mxu0 0.0
    %2547 = vmatprep.subr.mxu0 0.0
    %2548 = vmatpush1.msra.mxu0 0.0
    %2549 = vmatprep.subr.mxu0 0.0
    %2550 = vmatpush1.msra.mxu0 0.0
    %2551 = vmatprep.subr.mxu0 0.0
    %2552 = vmatpush1.msra.mxu0 0.0
    %2553 = vmatprep.subr.mxu0 0.0
    %2554 = vmatpush1.msra.mxu0 0.0
    %2555 = vmatprep.subr.mxu0 0.0
    %2556 = vmatpush1.msra.mxu0 0.0
    %2557 = vmatprep.subr.mxu0 0.0
    %2558 = vmatpush1.msra.mxu0 0.0
    %2559 = vmatprep.subr.mxu0 0.0
    %2560 = vmatpush1.msra.mxu0 0.0
    %2561 = vmatprep.subr.mxu0 0.0
    %2562 = vmatpush1.msra.mxu0 0.0
    %2563 = vmatprep.subr.mxu0 0.0
    %2564 = vmatpush1.msra.mxu0 0.0
    %2565 = vmatprep.subr.mxu0 0.0
    %2566 = vmatpush1.msra.mxu0 0.0
    %2567 = vmatprep.subr.mxu0 0.0
    %2568 = vmatpush1.msra.mxu0 0.0
    %2569 = vmatprep.subr.mxu0 0.0
    %2570 = vmatpush1.msra.mxu0 0.0
    %2571 = vmatprep.subr.mxu0 0.0
    %2572 = vmatpush1.msra.mxu0 0.0
    %2573 = vmatprep.subr.mxu0 0.0
    %2574 = vmatpush1.msra.mxu0 0.0
    %2575 = vmatprep.subr.mxu0 0.0
    %2576 = vmatpush1.msra.mxu0 0.0
    %2577 = vmatprep.subr.mxu0 0.0
    %2578 = vmatpush1.msra.mxu0 0.0
    %2579 = vmatprep.subr.mxu0 0.0
    %2580 = vmatpush1.msra.mxu0 0.0
    %2581 = vmatprep.subr.mxu0 0.0
    %2582 = vmatpush1.msra.mxu0 0.0
    %2583 = vmatprep.subr.mxu0 0.0
    %2584 = vmatpush1.msra.mxu0 0.0
    %2585 = vmatprep.subr.mxu0 0.0
    %2586 = vmatpush1.msra.mxu0 0.0
    %2587 = vmatprep.mubr.f32.mxu0 0.0
    %v2588 = vand.u32 %v2514, 4294901760
    %v2589 = vsub.f32 %v2514, %v2588
    %v2590 = vand.u32 %v2589, 4294901760
    %v2591 = vsub.f32 %v2589, %v2590
    %v2592 = vand.u32 %v2591, 4294901760
    %2593 = vmatmul.mubr.f32.gmra.mrb[0].mxu0 %v2592
    %v2594 = vpop.f32.mrb[0].mxu0
    %v2595 = vadd.f32 %v2512, %v2594
    %v2596 = vpop.f32.mrb[0].mxu0
    %2597 = vmatprep.mubr.f32.mxu0 0.0
    %v2598 = vand.u32 %v2517, 4294901760
    %v2599 = vsub.f32 %v2517, %v2598
    %v2600 = vand.u32 %v2599, 4294901760
    %v2601 = vsub.f32 %v2599, %v2600
    %v2602 = vand.u32 %v2601, 4294901760
    %2603 = vmatmul.mubr.f32.gmra.mrb[0].mxu0 %v2602
    %v2604 = vpop.f32.mrb[0].mxu0
    %v2605 = vadd.f32 %v2512, %v2604
    %v2606 = vpop.f32.mrb[0].mxu0
    %2607 = vdwg.mxu0
    %2608 = vmatprep.subr.mxu0 0.0
    %v2609 = vand.u32 %v2505, 4294901760
    %v2610 = vsub.f32 %v2505, %v2609
    %v2611 = vand.u32 %v2610, 4294901760
    %v2612 = vsub.f32 %v2610, %v2611
    %v2613 = vand.u32 %v2612, 4294901760
    %2614 = vmatpush1.msra.mxu0 %v2613
    %2615 = vmatprep.subr.mxu0 0.0
    %v2616 = vand.u32 %v2506, 4294901760
    %v2617 = vsub.f32 %v2506, %v2616
    %v2618 = vand.u32 %v2617, 4294901760
    %v2619 = vsub.f32 %v2617, %v2618
    %v2620 = vand.u32 %v2619, 4294901760
    %2621 = vmatpush1.msra.mxu0 %v2620
    %2622 = vmatprep.subr.mxu0 0.0
    %v2623 = vand.u32 %v2507, 4294901760
    %v2624 = vsub.f32 %v2507, %v2623
    %v2625 = vand.u32 %v2624, 4294901760
    %v2626 = vsub.f32 %v2624, %v2625
    %v2627 = vand.u32 %v2626, 4294901760
    %2628 = vmatpush1.msra.mxu0 %v2627
    %2629 = vmatprep.subr.mxu0 0.0
    %v2630 = vand.u32 %v2508, 4294901760
    %v2631 = vsub.f32 %v2508, %v2630
    %v2632 = vand.u32 %v2631, 4294901760
    %v2633 = vsub.f32 %v2631, %v2632
    %v2634 = vand.u32 %v2633, 4294901760
    %2635 = vmatpush1.msra.mxu0 %v2634
    %2636 = vmatprep.subr.mxu0 0.0
    %2637 = vmatpush1.msra.mxu0 0.0
    %2638 = vmatprep.subr.mxu0 0.0
    %2639 = vmatpush1.msra.mxu0 0.0
    %2640 = vmatprep.subr.mxu0 0.0
    %2641 = vmatpush1.msra.mxu0 0.0
    %2642 = vmatprep.subr.mxu0 0.0
    %2643 = vmatpush1.msra.mxu0 0.0
    %2644 = vmatprep.subr.mxu0 0.0
    %2645 = vmatpush1.msra.mxu0 0.0
    %2646 = vmatprep.subr.mxu0 0.0
    %2647 = vmatpush1.msra.mxu0 0.0
    %2648 = vmatprep.subr.mxu0 0.0
    %2649 = vmatpush1.msra.mxu0 0.0
    %2650 = vmatprep.subr.mxu0 0.0
    %2651 = vmatpush1.msra.mxu0 0.0
    %2652 = vmatprep.subr.mxu0 0.0
    %2653 = vmatpush1.msra.mxu0 0.0
    %2654 = vmatprep.subr.mxu0 0.0
    %2655 = vmatpush1.msra.mxu0 0.0
    %2656 = vmatprep.subr.mxu0 0.0
    %2657 = vmatpush1.msra.mxu0 0.0
    %2658 = vmatprep.subr.mxu0 0.0
    %2659 = vmatpush1.msra.mxu0 0.0
    %2660 = vmatprep.subr.mxu0 0.0
    %2661 = vmatpush1.msra.mxu0 0.0
    %2662 = vmatprep.subr.mxu0 0.0
    %2663 = vmatpush1.msra.mxu0 0.0
    %2664 = vmatprep.subr.mxu0 0.0
    %2665 = vmatpush1.msra.mxu0 0.0
    %2666 = vmatprep.subr.mxu0 0.0
    %2667 = vmatpush1.msra.mxu0 0.0
    %2668 = vmatprep.subr.mxu0 0.0
    %2669 = vmatpush1.msra.mxu0 0.0
    %2670 = vmatprep.subr.mxu0 0.0
    %2671 = vmatpush1.msra.mxu0 0.0
    %2672 = vmatprep.subr.mxu0 0.0
    %2673 = vmatpush1.msra.mxu0 0.0
    %2674 = vmatprep.subr.mxu0 0.0
    %2675 = vmatpush1.msra.mxu0 0.0
    %2676 = vmatprep.subr.mxu0 0.0
    %2677 = vmatpush1.msra.mxu0 0.0
    %2678 = vmatprep.subr.mxu0 0.0
    %2679 = vmatpush1.msra.mxu0 0.0
    %2680 = vmatprep.subr.mxu0 0.0
    %2681 = vmatpush1.msra.mxu0 0.0
    %2682 = vmatprep.subr.mxu0 0.0
    %2683 = vmatpush1.msra.mxu0 0.0
    %2684 = vmatprep.subr.mxu0 0.0
    %2685 = vmatpush1.msra.mxu0 0.0
    %2686 = vmatprep.subr.mxu0 0.0
    %2687 = vmatpush1.msra.mxu0 0.0
    %2688 = vmatprep.subr.mxu0 0.0
    %2689 = vmatpush1.msra.mxu0 0.0
    %2690 = vmatprep.subr.mxu0 0.0
    %2691 = vmatpush1.msra.mxu0 0.0
    %2692 = vmatprep.mubr.f32.mxu0 0.0
    %v2693 = vand.u32 %v2514, 4294901760
    %2694 = vmatmul.mubr.f32.gmra.mrb[0].mxu0 %v2693
    %v2695 = vpop.f32.mrb[0].mxu0
    %v2696 = vadd.f32 %v2595, %v2695
    %v2697 = vpop.f32.mrb[0].mxu0
    %2698 = vmatprep.mubr.f32.mxu0 0.0
    %v2699 = vand.u32 %v2517, 4294901760
    %2700 = vmatmul.mubr.f32.gmra.mrb[0].mxu0 %v2699
    %v2701 = vpop.f32.mrb[0].mxu0
    %v2702 = vadd.f32 %v2605, %v2701
    %v2703 = vpop.f32.mrb[0].mxu0
    %2704 = vdwg.mxu0
    %2705 = vmatprep.subr.mxu0 0.0
    %v2706 = vand.u32 %v2505, 4294901760
    %v2707 = vsub.f32 %v2505, %v2706
    %2708 = vmatpush1.msra.mxu0 %v2707
    %2709 = vmatprep.subr.mxu0 0.0
    %v2710 = vand.u32 %v2506, 4294901760
    %v2711 = vsub.f32 %v2506, %v2710
    %2712 = vmatpush1.msra.mxu0 %v2711
    %2713 = vmatprep.subr.mxu0 0.0
    %v2714 = vand.u32 %v2507, 4294901760
    %v2715 = vsub.f32 %v2507, %v2714
    %2716 = vmatpush1.msra.mxu0 %v2715
    %2717 = vmatprep.subr.mxu0 0.0
    %v2718 = vand.u32 %v2508, 4294901760
    %v2719 = vsub.f32 %v2508, %v2718
    %2720 = vmatpush1.msra.mxu0 %v2719
    %2721 = vmatprep.subr.mxu0 0.0
    %2722 = vmatpush1.msra.mxu0 0.0
    %2723 = vmatprep.subr.mxu0 0.0
    %2724 = vmatpush1.msra.mxu0 0.0
    %2725 = vmatprep.subr.mxu0 0.0
    %2726 = vmatpush1.msra.mxu0 0.0
    %2727 = vmatprep.subr.mxu0 0.0
    %2728 = vmatpush1.msra.mxu0 0.0
    %2729 = vmatprep.subr.mxu0 0.0
    %2730 = vmatpush1.msra.mxu0 0.0
    %2731 = vmatprep.subr.mxu0 0.0
    %2732 = vmatpush1.msra.mxu0 0.0
    %2733 = vmatprep.subr.mxu0 0.0
    %2734 = vmatpush1.msra.mxu0 0.0
    %2735 = vmatprep.subr.mxu0 0.0
    %2736 = vmatpush1.msra.mxu0 0.0
    %2737 = vmatprep.subr.mxu0 0.0
    %2738 = vmatpush1.msra.mxu0 0.0
    %2739 = vmatprep.subr.mxu0 0.0
    %2740 = vmatpush1.msra.mxu0 0.0
    %2741 = vmatprep.subr.mxu0 0.0
    %2742 = vmatpush1.msra.mxu0 0.0
    %2743 = vmatprep.subr.mxu0 0.0
    %2744 = vmatpush1.msra.mxu0 0.0
    %2745 = vmatprep.subr.mxu0 0.0
    %2746 = vmatpush1.msra.mxu0 0.0
    %2747 = vmatprep.subr.mxu0 0.0
    %2748 = vmatpush1.msra.mxu0 0.0
    %2749 = vmatprep.subr.mxu0 0.0
    %2750 = vmatpush1.msra.mxu0 0.0
    %2751 = vmatprep.subr.mxu0 0.0
    %2752 = vmatpush1.msra.mxu0 0.0
    %2753 = vmatprep.subr.mxu0 0.0
    %2754 = vmatpush1.msra.mxu0 0.0
    %2755 = vmatprep.subr.mxu0 0.0
    %2756 = vmatpush1.msra.mxu0 0.0
    %2757 = vmatprep.subr.mxu0 0.0
    %2758 = vmatpush1.msra.mxu0 0.0
    %2759 = vmatprep.subr.mxu0 0.0
    %2760 = vmatpush1.msra.mxu0 0.0
    %2761 = vmatprep.subr.mxu0 0.0
    %2762 = vmatpush1.msra.mxu0 0.0
    %2763 = vmatprep.subr.mxu0 0.0
    %2764 = vmatpush1.msra.mxu0 0.0
    %2765 = vmatprep.subr.mxu0 0.0
    %2766 = vmatpush1.msra.mxu0 0.0
    %2767 = vmatprep.subr.mxu0 0.0
    %2768 = vmatpush1.msra.mxu0 0.0
    %2769 = vmatprep.subr.mxu0 0.0
    %2770 = vmatpush1.msra.mxu0 0.0
    %2771 = vmatprep.subr.mxu0 0.0
    %2772 = vmatpush1.msra.mxu0 0.0
    %2773 = vmatprep.subr.mxu0 0.0
    %2774 = vmatpush1.msra.mxu0 0.0
    %2775 = vmatprep.subr.mxu0 0.0
    %2776 = vmatpush1.msra.mxu0 0.0
    %2777 = vmatprep.mubr.f32.mxu0 0.0
    %v2778 = vand.u32 %v2514, 4294901760
    %v2779 = vsub.f32 %v2514, %v2778
    %2780 = vmatmul.mubr.f32.gmra.mrb[0].mxu0 %v2779
    %v2781 = vpop.f32.mrb[0].mxu0
    %v2782 = vadd.f32 %v2696, %v2781
    %v2783 = vpop.f32.mrb[0].mxu0
    %2784 = vmatprep.mubr.f32.mxu0 0.0
    %v2785 = vand.u32 %v2517, 4294901760
    %v2786 = vsub.f32 %v2517, %v2785
    %2787 = vmatmul.mubr.f32.gmra.mrb[0].mxu0 %v2786
    %v2788 = vpop.f32.mrb[0].mxu0
    %v2789 = vadd.f32 %v2702, %v2788
    %v2790 = vpop.f32.mrb[0].mxu0
    %2791 = vdwg.mxu0
    %2792 = vmatprep.subr.mxu0 0.0
    %v2793 = vand.u32 %v2505, 4294901760
    %2794 = vmatpush1.msra.mxu0 %v2793
    %2795 = vmatprep.subr.mxu0 0.0
    %v2796 = vand.u32 %v2506, 4294901760
    %2797 = vmatpush1.msra.mxu0 %v2796
    %2798 = vmatprep.subr.mxu0 0.0
    %v2799 = vand.u32 %v2507, 4294901760
    %2800 = vmatpush1.msra.mxu0 %v2799
    %2801 = vmatprep.subr.mxu0 0.0
    %v2802 = vand.u32 %v2508, 4294901760
    %2803 = vmatpush1.msra.mxu0 %v2802
    %2804 = vmatprep.subr.mxu0 0.0
    %2805 = vmatpush1.msra.mxu0 0.0
    %2806 = vmatprep.subr.mxu0 0.0
    %2807 = vmatpush1.msra.mxu0 0.0
    %2808 = vmatprep.subr.mxu0 0.0
    %2809 = vmatpush1.msra.mxu0 0.0
    %2810 = vmatprep.subr.mxu0 0.0
    %2811 = vmatpush1.msra.mxu0 0.0
    %2812 = vmatprep.subr.mxu0 0.0
    %2813 = vmatpush1.msra.mxu0 0.0
    %2814 = vmatprep.subr.mxu0 0.0
    %2815 = vmatpush1.msra.mxu0 0.0
    %2816 = vmatprep.subr.mxu0 0.0
    %2817 = vmatpush1.msra.mxu0 0.0
    %2818 = vmatprep.subr.mxu0 0.0
    %2819 = vmatpush1.msra.mxu0 0.0
    %2820 = vmatprep.subr.mxu0 0.0
    %2821 = vmatpush1.msra.mxu0 0.0
    %2822 = vmatprep.subr.mxu0 0.0
    %2823 = vmatpush1.msra.mxu0 0.0
    %2824 = vmatprep.subr.mxu0 0.0
    %2825 = vmatpush1.msra.mxu0 0.0
    %2826 = vmatprep.subr.mxu0 0.0
    %2827 = vmatpush1.msra.mxu0 0.0
    %2828 = vmatprep.subr.mxu0 0.0
    %2829 = vmatpush1.msra.mxu0 0.0
    %2830 = vmatprep.subr.mxu0 0.0
    %2831 = vmatpush1.msra.mxu0 0.0
    %2832 = vmatprep.subr.mxu0 0.0
    %2833 = vmatpush1.msra.mxu0 0.0
    %2834 = vmatprep.subr.mxu0 0.0
    %2835 = vmatpush1.msra.mxu0 0.0
    %2836 = vmatprep.subr.mxu0 0.0
    %2837 = vmatpush1.msra.mxu0 0.0
    %2838 = vmatprep.subr.mxu0 0.0
    %2839 = vmatpush1.msra.mxu0 0.0
    %2840 = vmatprep.subr.mxu0 0.0
    %2841 = vmatpush1.msra.mxu0 0.0
    %2842 = vmatprep.subr.mxu0 0.0
    %2843 = vmatpush1.msra.mxu0 0.0
    %2844 = vmatprep.subr.mxu0 0.0
    %2845 = vmatpush1.msra.mxu0 0.0
    %2846 = vmatprep.subr.mxu0 0.0
    %2847 = vmatpush1.msra.mxu0 0.0
    %2848 = vmatprep.subr.mxu0 0.0
    %2849 = vmatpush1.msra.mxu0 0.0
    %2850 = vmatprep.subr.mxu0 0.0
    %2851 = vmatpush1.msra.mxu0 0.0
    %2852 = vmatprep.subr.mxu0 0.0
    %2853 = vmatpush1.msra.mxu0 0.0
    %2854 = vmatprep.subr.mxu0 0.0
    %2855 = vmatpush1.msra.mxu0 0.0
    %2856 = vmatprep.subr.mxu0 0.0
    %2857 = vmatpush1.msra.mxu0 0.0
    %2858 = vmatprep.subr.mxu0 0.0
    %2859 = vmatpush1.msra.mxu0 0.0
    %2860 = vmatprep.mubr.f32.mxu0 0.0
    %v2861 = vand.u32 %v2514, 4294901760
    %v2862 = vsub.f32 %v2514, %v2861
    %v2863 = vand.u32 %v2862, 4294901760
    %2864 = vmatmul.mubr.f32.gmra.mrb[0].mxu0 %v2863
    %v2865 = vpop.f32.mrb[0].mxu0
    %v2866 = vadd.f32 %v2782, %v2865
    %v2867 = vpop.f32.mrb[0].mxu0
    %2868 = vmatprep.mubr.f32.mxu0 0.0
    %v2869 = vand.u32 %v2517, 4294901760
    %v2870 = vsub.f32 %v2517, %v2869
    %v2871 = vand.u32 %v2870, 4294901760
    %2872 = vmatmul.mubr.f32.gmra.mrb[0].mxu0 %v2871
    %v2873 = vpop.f32.mrb[0].mxu0
    %v2874 = vadd.f32 %v2789, %v2873
    %v2875 = vpop.f32.mrb[0].mxu0
    %2876 = vdwg.mxu0
    %2877 = vmatprep.subr.mxu0 0.0
    %v2878 = vand.u32 %v2505, 4294901760
    %v2879 = vsub.f32 %v2505, %v2878
    %v2880 = vand.u32 %v2879, 4294901760
    %2881 = vmatpush1.msra.mxu0 %v2880
    %2882 = vmatprep.subr.mxu0 0.0
    %v2883 = vand.u32 %v2506, 4294901760
    %v2884 = vsub.f32 %v2506, %v2883
    %v2885 = vand.u32 %v2884, 4294901760
    %2886 = vmatpush1.msra.mxu0 %v2885
    %2887 = vmatprep.subr.mxu0 0.0
    %v2888 = vand.u32 %v2507, 4294901760
    %v2889 = vsub.f32 %v2507, %v2888
    %v2890 = vand.u32 %v2889, 4294901760
    %2891 = vmatpush1.msra.mxu0 %v2890
    %2892 = vmatprep.subr.mxu0 0.0
    %v2893 = vand.u32 %v2508, 4294901760
    %v2894 = vsub.f32 %v2508, %v2893
    %v2895 = vand.u32 %v2894, 4294901760
    %2896 = vmatpush1.msra.mxu0 %v2895
    %2897 = vmatprep.subr.mxu0 0.0
    %2898 = vmatpush1.msra.mxu0 0.0
    %2899 = vmatprep.subr.mxu0 0.0
    %2900 = vmatpush1.msra.mxu0 0.0
    %2901 = vmatprep.subr.mxu0 0.0
    %2902 = vmatpush1.msra.mxu0 0.0
    %2903 = vmatprep.subr.mxu0 0.0
    %2904 = vmatpush1.msra.mxu0 0.0
    %2905 = vmatprep.subr.mxu0 0.0
    %2906 = vmatpush1.msra.mxu0 0.0
    %2907 = vmatprep.subr.mxu0 0.0
    %2908 = vmatpush1.msra.mxu0 0.0
    %2909 = vmatprep.subr.mxu0 0.0
    %2910 = vmatpush1.msra.mxu0 0.0
    %2911 = vmatprep.subr.mxu0 0.0
    %2912 = vmatpush1.msra.mxu0 0.0
    %2913 = vmatprep.subr.mxu0 0.0
    %2914 = vmatpush1.msra.mxu0 0.0
    %2915 = vmatprep.subr.mxu0 0.0
    %2916 = vmatpush1.msra.mxu0 0.0
    %2917 = vmatprep.subr.mxu0 0.0
    %2918 = vmatpush1.msra.mxu0 0.0
    %2919 = vmatprep.subr.mxu0 0.0
    %2920 = vmatpush1.msra.mxu0 0.0
    %2921 = vmatprep.subr.mxu0 0.0
    %2922 = vmatpush1.msra.mxu0 0.0
    %2923 = vmatprep.subr.mxu0 0.0
    %2924 = vmatpush1.msra.mxu0 0.0
    %2925 = vmatprep.subr.mxu0 0.0
    %2926 = vmatpush1.msra.mxu0 0.0
    %2927 = vmatprep.subr.mxu0 0.0
    %2928 = vmatpush1.msra.mxu0 0.0
    %2929 = vmatprep.subr.mxu0 0.0
    %2930 = vmatpush1.msra.mxu0 0.0
    %2931 = vmatprep.subr.mxu0 0.0
    %2932 = vmatpush1.msra.mxu0 0.0
    %2933 = vmatprep.subr.mxu0 0.0
    %2934 = vmatpush1.msra.mxu0 0.0
    %2935 = vmatprep.subr.mxu0 0.0
    %2936 = vmatpush1.msra.mxu0 0.0
    %2937 = vmatprep.subr.mxu0 0.0
    %2938 = vmatpush1.msra.mxu0 0.0
    %2939 = vmatprep.subr.mxu0 0.0
    %2940 = vmatpush1.msra.mxu0 0.0
    %2941 = vmatprep.subr.mxu0 0.0
    %2942 = vmatpush1.msra.mxu0 0.0
    %2943 = vmatprep.subr.mxu0 0.0
    %2944 = vmatpush1.msra.mxu0 0.0
    %2945 = vmatprep.subr.mxu0 0.0
    %2946 = vmatpush1.msra.mxu0 0.0
    %2947 = vmatprep.subr.mxu0 0.0
    %2948 = vmatpush1.msra.mxu0 0.0
    %2949 = vmatprep.subr.mxu0 0.0
    %2950 = vmatpush1.msra.mxu0 0.0
    %2951 = vmatprep.subr.mxu0 0.0
    %2952 = vmatpush1.msra.mxu0 0.0
    %2953 = vmatprep.mubr.f32.mxu0 0.0
    %v2954 = vand.u32 %v2514, 4294901760
    %2955 = vmatmul.mubr.f32.gmra.mrb[0].mxu0 %v2954
    %v2956 = vpop.f32.mrb[0].mxu0
    %v2957 = vadd.f32 %v2866, %v2956
    %v2958 = vpop.f32.mrb[0].mxu0
    %2959 = vmatprep.mubr.f32.mxu0 0.0
    %v2960 = vand.u32 %v2517, 4294901760
    %2961 = vmatmul.mubr.f32.gmra.mrb[0].mxu0 %v2960
    %v2962 = vpop.f32.mrb[0].mxu0
    %v2963 = vadd.f32 %v2874, %v2962
    %v2964 = vpop.f32.mrb[0].mxu0
    %2965 = vdwg.mxu0
    %2966 = vmatprep.subr.mxu0 0.0
    %v2967 = vand.u32 %v2505, 4294901760
    %2968 = vmatpush1.msra.mxu0 %v2967
    %2969 = vmatprep.subr.mxu0 0.0
    %v2970 = vand.u32 %v2506, 4294901760
    %2971 = vmatpush1.msra.mxu0 %v2970
    %2972 = vmatprep.subr.mxu0 0.0
    %v2973 = vand.u32 %v2507, 4294901760
    %2974 = vmatpush1.msra.mxu0 %v2973
    %2975 = vmatprep.subr.mxu0 0.0
    %v2976 = vand.u32 %v2508, 4294901760
    %2977 = vmatpush1.msra.mxu0 %v2976
    %2978 = vmatprep.subr.mxu0 0.0
    %2979 = vmatpush1.msra.mxu0 0.0
    %2980 = vmatprep.subr.mxu0 0.0
    %2981 = vmatpush1.msra.mxu0 0.0
    %2982 = vmatprep.subr.mxu0 0.0
    %2983 = vmatpush1.msra.mxu0 0.0
    %2984 = vmatprep.subr.mxu0 0.0
    %2985 = vmatpush1.msra.mxu0 0.0
    %2986 = vmatprep.subr.mxu0 0.0
    %2987 = vmatpush1.msra.mxu0 0.0
    %2988 = vmatprep.subr.mxu0 0.0
    %2989 = vmatpush1.msra.mxu0 0.0
    %2990 = vmatprep.subr.mxu0 0.0
    %2991 = vmatpush1.msra.mxu0 0.0
    %2992 = vmatprep.subr.mxu0 0.0
    %2993 = vmatpush1.msra.mxu0 0.0
    %2994 = vmatprep.subr.mxu0 0.0
    %2995 = vmatpush1.msra.mxu0 0.0
    %2996 = vmatprep.subr.mxu0 0.0
    %2997 = vmatpush1.msra.mxu0 0.0
    %2998 = vmatprep.subr.mxu0 0.0
    %2999 = vmatpush1.msra.mxu0 0.0
    %3000 = vmatprep.subr.mxu0 0.0
    %3001 = vmatpush1.msra.mxu0 0.0
    %3002 = vmatprep.subr.mxu0 0.0
    %3003 = vmatpush1.msra.mxu0 0.0
    %3004 = vmatprep.subr.mxu0 0.0
    %3005 = vmatpush1.msra.mxu0 0.0
    %3006 = vmatprep.subr.mxu0 0.0
    %3007 = vmatpush1.msra.mxu0 0.0
    %3008 = vmatprep.subr.mxu0 0.0
    %3009 = vmatpush1.msra.mxu0 0.0
    %3010 = vmatprep.subr.mxu0 0.0
    %3011 = vmatpush1.msra.mxu0 0.0
    %3012 = vmatprep.subr.mxu0 0.0
    %3013 = vmatpush1.msra.mxu0 0.0
    %3014 = vmatprep.subr.mxu0 0.0
    %3015 = vmatpush1.msra.mxu0 0.0
    %3016 = vmatprep.subr.mxu0 0.0
    %3017 = vmatpush1.msra.mxu0 0.0
    %3018 = vmatprep.subr.mxu0 0.0
    %3019 = vmatpush1.msra.mxu0 0.0
    %3020 = vmatprep.subr.mxu0 0.0
    %3021 = vmatpush1.msra.mxu0 0.0
    %3022 = vmatprep.subr.mxu0 0.0
    %3023 = vmatpush1.msra.mxu0 0.0
    %3024 = vmatprep.subr.mxu0 0.0
    %3025 = vmatpush1.msra.mxu0 0.0
    %3026 = vmatprep.subr.mxu0 0.0
    %3027 = vmatpush1.msra.mxu0 0.0
    %3028 = vmatprep.subr.mxu0 0.0
    %3029 = vmatpush1.msra.mxu0 0.0
    %3030 = vmatprep.subr.mxu0 0.0
    %3031 = vmatpush1.msra.mxu0 0.0
    %3032 = vmatprep.subr.mxu0 0.0
    %3033 = vmatpush1.msra.mxu0 0.0
    %3034 = vmatprep.mubr.f32.mxu0 0.0
    %v3035 = vand.u32 %v2514, 4294901760
    %3036 = vmatmul.mubr.f32.gmra.mrb[0].mxu0 %v3035
    %v3037 = vpop.f32.mrb[0].mxu0
    %v3038 = vadd.f32 %v2957, %v3037
    %v3039 = vpop.f32.mrb[0].mxu0
    %3040 = vmatprep.mubr.f32.mxu0 0.0
    %v3041 = vand.u32 %v2517, 4294901760
    %3042 = vmatmul.mubr.f32.gmra.mrb[0].mxu0 %v3041
    %v3043 = vpop.f32.mrb[0].mxu0
    %v3044 = vadd.f32 %v2963, %v3043
    %v3045 = vpop.f32.mrb[0].mxu0
    %3046 = vdwg.mxu0
    %v3047 = vadd.f32 %v27, %v3038
    %v3048 = vadd.f32 %v28, %v3044
    %v3049 = vsel %vm38, %v3047, 0.0
    %3050 = vadd.xlane.f32.xlu0 %v3049
    %v3051 = vpop.xlane.xlu0 %3050
    %v3052 = vsel %vm38, %v3048, 0.0
    %3053 = vadd.xlane.f32.xlu0 %v3052
    %v3054 = vpop.xlane.xlu0 %3053
    %v3055 = vrcp.pop 32.0
    %v3056 = vmul.f32 %v3051, %v3055
    %v3057 = vmul.f32 %v3054, %v3055
    %v3058 = vsub.f32 %v3047, %v3056
    %v3059 = vsub.f32 %v3048, %v3057
    %v3060 = vmul.f32 %v3058, %v3058
    %v3061 = vmul.f32 %v3059, %v3059
    %v3062 = vsel %vm38, %v3060, 0.0
    %3063 = vadd.xlane.f32.xlu0 %v3062
    %v3064 = vpop.xlane.xlu0 %3063
    %v3065 = vsel %vm38, %v3061, 0.0
    %3066 = vadd.xlane.f32.xlu0 %v3065
    %v3067 = vpop.xlane.xlu0 %3066
    %v3068 = vmul.f32 %v3064, %v3055
    %v3069 = vmul.f32 %v3067, %v3055
    %v3070 = vadd.f32 %v3068, 1e-05
    %v3071 = vadd.f32 %v3069, 1e-05
    %v3072 = vrsqrt.pop %v3070
    %v3073 = vrsqrt.pop %v3071
    %v3074 = vmul.f32 %v3058, %v3072
    %v3075 = vmul.f32 %v3059, %v3073
    %v3076 = vlaneseq
    %v3077 = vshrl.u32 %v3076, 7
    %v3078 = vsub.s32 4, %v3077
    %v3079 = vrot.slane %v29, %v3078
    %v3080 = vmul.f32 %v3074, %v3079
    %v3081 = vmul.f32 %v3075, %v3079
    %v3082 = vlaneseq
    %v3083 = vshrl.u32 %v3082, 7
    %v3084 = vsub.s32 5, %v3083
    %v3085 = vrot.slane %v29, %v3084
    %v3086 = vadd.f32 %v3080, %v3085
    %v3087 = vadd.f32 %v3081, %v3085
    %v3088 = vld [vmem:[%s4] sm:$0xff]
    %v3089 = vld [vmem:[%s4 + $0x8] sm:$0xff]
    %v3090 = vld [vmem:[%s4 + $0x10] sm:$0xff]
    %v3091 = vld [vmem:[%s4 + $0x18] sm:$0xff]
    %v3092 = vlaneseq
    %v3093 = vshrl.u32 %v3092, 7
    %v3094 = vsub.s32 2, %v3093
    %v3095 = vrot.slane %v29, %v3094
    %v3097 = vsel %vm38, %v3086, 0
    %v3100 = vsel %vm38, %v3087, 0
    %3102 = vmatprep.subr.mxu0 0.0
    %v3103 = vand.u32 %v3088, 4294901760
    %3104 = vmatpush1.msra.mxu0 %v3103
    %3105 = vmatprep.subr.mxu0 0.0
    %v3106 = vand.u32 %v3089, 4294901760
    %3107 = vmatpush1.msra.mxu0 %v3106
    %3108 = vmatprep.subr.mxu0 0.0
    %v3109 = vand.u32 %v3090, 4294901760
    %3110 = vmatpush1.msra.mxu0 %v3109
    %3111 = vmatprep.subr.mxu0 0.0
    %v3112 = vand.u32 %v3091, 4294901760
    %3113 = vmatpush1.msra.mxu0 %v3112
    %3114 = vmatprep.subr.mxu0 0.0
    %3115 = vmatpush1.msra.mxu0 0.0
    %3116 = vmatprep.subr.mxu0 0.0
    %3117 = vmatpush1.msra.mxu0 0.0
    %3118 = vmatprep.subr.mxu0 0.0
    %3119 = vmatpush1.msra.mxu0 0.0
    %3120 = vmatprep.subr.mxu0 0.0
    %3121 = vmatpush1.msra.mxu0 0.0
    %3122 = vmatprep.subr.mxu0 0.0
    %3123 = vmatpush1.msra.mxu0 0.0
    %3124 = vmatprep.subr.mxu0 0.0
    %3125 = vmatpush1.msra.mxu0 0.0
    %3126 = vmatprep.subr.mxu0 0.0
    %3127 = vmatpush1.msra.mxu0 0.0
    %3128 = vmatprep.subr.mxu0 0.0
    %3129 = vmatpush1.msra.mxu0 0.0
    %3130 = vmatprep.subr.mxu0 0.0
    %3131 = vmatpush1.msra.mxu0 0.0
    %3132 = vmatprep.subr.mxu0 0.0
    %3133 = vmatpush1.msra.mxu0 0.0
    %3134 = vmatprep.subr.mxu0 0.0
    %3135 = vmatpush1.msra.mxu0 0.0
    %3136 = vmatprep.subr.mxu0 0.0
    %3137 = vmatpush1.msra.mxu0 0.0
    %3138 = vmatprep.subr.mxu0 0.0
    %3139 = vmatpush1.msra.mxu0 0.0
    %3140 = vmatprep.subr.mxu0 0.0
    %3141 = vmatpush1.msra.mxu0 0.0
    %3142 = vmatprep.subr.mxu0 0.0
    %3143 = vmatpush1.msra.mxu0 0.0
    %3144 = vmatprep.subr.mxu0 0.0
    %3145 = vmatpush1.msra.mxu0 0.0
    %3146 = vmatprep.subr.mxu0 0.0
    %3147 = vmatpush1.msra.mxu0 0.0
    %3148 = vmatprep.subr.mxu0 0.0
    %3149 = vmatpush1.msra.mxu0 0.0
    %3150 = vmatprep.subr.mxu0 0.0
    %3151 = vmatpush1.msra.mxu0 0.0
    %3152 = vmatprep.subr.mxu0 0.0
    %3153 = vmatpush1.msra.mxu0 0.0
    %3154 = vmatprep.subr.mxu0 0.0
    %3155 = vmatpush1.msra.mxu0 0.0
    %3156 = vmatprep.subr.mxu0 0.0
    %3157 = vmatpush1.msra.mxu0 0.0
    %3158 = vmatprep.subr.mxu0 0.0
    %3159 = vmatpush1.msra.mxu0 0.0
    %3160 = vmatprep.subr.mxu0 0.0
    %3161 = vmatpush1.msra.mxu0 0.0
    %3162 = vmatprep.subr.mxu0 0.0
    %3163 = vmatpush1.msra.mxu0 0.0
    %3164 = vmatprep.subr.mxu0 0.0
    %3165 = vmatpush1.msra.mxu0 0.0
    %3166 = vmatprep.subr.mxu0 0.0
    %3167 = vmatpush1.msra.mxu0 0.0
    %3168 = vmatprep.subr.mxu0 0.0
    %3169 = vmatpush1.msra.mxu0 0.0
    %3170 = vmatprep.mubr.f32.mxu0 0.0
    %v3171 = vand.u32 %v3097, 4294901760
    %v3172 = vsub.f32 %v3097, %v3171
    %v3173 = vand.u32 %v3172, 4294901760
    %v3174 = vsub.f32 %v3172, %v3173
    %v3175 = vand.u32 %v3174, 4294901760
    %3176 = vmatmul.mubr.f32.gmra.mrb[0].mxu0 %v3175
    %v3177 = vpop.f32.mrb[0].mxu0
    %v3178 = vadd.f32 %v3095, %v3177
    %v3179 = vpop.f32.mrb[0].mxu0
    %3180 = vmatprep.mubr.f32.mxu0 0.0
    %v3181 = vand.u32 %v3100, 4294901760
    %v3182 = vsub.f32 %v3100, %v3181
    %v3183 = vand.u32 %v3182, 4294901760
    %v3184 = vsub.f32 %v3182, %v3183
    %v3185 = vand.u32 %v3184, 4294901760
    %3186 = vmatmul.mubr.f32.gmra.mrb[0].mxu0 %v3185
    %v3187 = vpop.f32.mrb[0].mxu0
    %v3188 = vadd.f32 %v3095, %v3187
    %v3189 = vpop.f32.mrb[0].mxu0
    %3190 = vdwg.mxu0
    %3191 = vmatprep.subr.mxu0 0.0
    %v3192 = vand.u32 %v3088, 4294901760
    %v3193 = vsub.f32 %v3088, %v3192
    %v3194 = vand.u32 %v3193, 4294901760
    %v3195 = vsub.f32 %v3193, %v3194
    %v3196 = vand.u32 %v3195, 4294901760
    %3197 = vmatpush1.msra.mxu0 %v3196
    %3198 = vmatprep.subr.mxu0 0.0
    %v3199 = vand.u32 %v3089, 4294901760
    %v3200 = vsub.f32 %v3089, %v3199
    %v3201 = vand.u32 %v3200, 4294901760
    %v3202 = vsub.f32 %v3200, %v3201
    %v3203 = vand.u32 %v3202, 4294901760
    %3204 = vmatpush1.msra.mxu0 %v3203
    %3205 = vmatprep.subr.mxu0 0.0
    %v3206 = vand.u32 %v3090, 4294901760
    %v3207 = vsub.f32 %v3090, %v3206
    %v3208 = vand.u32 %v3207, 4294901760
    %v3209 = vsub.f32 %v3207, %v3208
    %v3210 = vand.u32 %v3209, 4294901760
    %3211 = vmatpush1.msra.mxu0 %v3210
    %3212 = vmatprep.subr.mxu0 0.0
    %v3213 = vand.u32 %v3091, 4294901760
    %v3214 = vsub.f32 %v3091, %v3213
    %v3215 = vand.u32 %v3214, 4294901760
    %v3216 = vsub.f32 %v3214, %v3215
    %v3217 = vand.u32 %v3216, 4294901760
    %3218 = vmatpush1.msra.mxu0 %v3217
    %3219 = vmatprep.subr.mxu0 0.0
    %3220 = vmatpush1.msra.mxu0 0.0
    %3221 = vmatprep.subr.mxu0 0.0
    %3222 = vmatpush1.msra.mxu0 0.0
    %3223 = vmatprep.subr.mxu0 0.0
    %3224 = vmatpush1.msra.mxu0 0.0
    %3225 = vmatprep.subr.mxu0 0.0
    %3226 = vmatpush1.msra.mxu0 0.0
    %3227 = vmatprep.subr.mxu0 0.0
    %3228 = vmatpush1.msra.mxu0 0.0
    %3229 = vmatprep.subr.mxu0 0.0
    %3230 = vmatpush1.msra.mxu0 0.0
    %3231 = vmatprep.subr.mxu0 0.0
    %3232 = vmatpush1.msra.mxu0 0.0
    %3233 = vmatprep.subr.mxu0 0.0
    %3234 = vmatpush1.msra.mxu0 0.0
    %3235 = vmatprep.subr.mxu0 0.0
    %3236 = vmatpush1.msra.mxu0 0.0
    %3237 = vmatprep.subr.mxu0 0.0
    %3238 = vmatpush1.msra.mxu0 0.0
    %3239 = vmatprep.subr.mxu0 0.0
    %3240 = vmatpush1.msra.mxu0 0.0
    %3241 = vmatprep.subr.mxu0 0.0
    %3242 = vmatpush1.msra.mxu0 0.0
    %3243 = vmatprep.subr.mxu0 0.0
    %3244 = vmatpush1.msra.mxu0 0.0
    %3245 = vmatprep.subr.mxu0 0.0
    %3246 = vmatpush1.msra.mxu0 0.0
    %3247 = vmatprep.subr.mxu0 0.0
    %3248 = vmatpush1.msra.mxu0 0.0
    %3249 = vmatprep.subr.mxu0 0.0
    %3250 = vmatpush1.msra.mxu0 0.0
    %3251 = vmatprep.subr.mxu0 0.0
    %3252 = vmatpush1.msra.mxu0 0.0
    %3253 = vmatprep.subr.mxu0 0.0
    %3254 = vmatpush1.msra.mxu0 0.0
    %3255 = vmatprep.subr.mxu0 0.0
    %3256 = vmatpush1.msra.mxu0 0.0
    %3257 = vmatprep.subr.mxu0 0.0
    %3258 = vmatpush1.msra.mxu0 0.0
    %3259 = vmatprep.subr.mxu0 0.0
    %3260 = vmatpush1.msra.mxu0 0.0
    %3261 = vmatprep.subr.mxu0 0.0
    %3262 = vmatpush1.msra.mxu0 0.0
    %3263 = vmatprep.subr.mxu0 0.0
    %3264 = vmatpush1.msra.mxu0 0.0
    %3265 = vmatprep.subr.mxu0 0.0
    %3266 = vmatpush1.msra.mxu0 0.0
    %3267 = vmatprep.subr.mxu0 0.0
    %3268 = vmatpush1.msra.mxu0 0.0
    %3269 = vmatprep.subr.mxu0 0.0
    %3270 = vmatpush1.msra.mxu0 0.0
    %3271 = vmatprep.subr.mxu0 0.0
    %3272 = vmatpush1.msra.mxu0 0.0
    %3273 = vmatprep.subr.mxu0 0.0
    %3274 = vmatpush1.msra.mxu0 0.0
    %3275 = vmatprep.mubr.f32.mxu0 0.0
    %v3276 = vand.u32 %v3097, 4294901760
    %3277 = vmatmul.mubr.f32.gmra.mrb[0].mxu0 %v3276
    %v3278 = vpop.f32.mrb[0].mxu0
    %v3279 = vadd.f32 %v3178, %v3278
    %v3280 = vpop.f32.mrb[0].mxu0
    %3281 = vmatprep.mubr.f32.mxu0 0.0
    %v3282 = vand.u32 %v3100, 4294901760
    %3283 = vmatmul.mubr.f32.gmra.mrb[0].mxu0 %v3282
    %v3284 = vpop.f32.mrb[0].mxu0
    %v3285 = vadd.f32 %v3188, %v3284
    %v3286 = vpop.f32.mrb[0].mxu0
    %3287 = vdwg.mxu0
    %3288 = vmatprep.subr.mxu0 0.0
    %v3289 = vand.u32 %v3088, 4294901760
    %v3290 = vsub.f32 %v3088, %v3289
    %3291 = vmatpush1.msra.mxu0 %v3290
    %3292 = vmatprep.subr.mxu0 0.0
    %v3293 = vand.u32 %v3089, 4294901760
    %v3294 = vsub.f32 %v3089, %v3293
    %3295 = vmatpush1.msra.mxu0 %v3294
    %3296 = vmatprep.subr.mxu0 0.0
    %v3297 = vand.u32 %v3090, 4294901760
    %v3298 = vsub.f32 %v3090, %v3297
    %3299 = vmatpush1.msra.mxu0 %v3298
    %3300 = vmatprep.subr.mxu0 0.0
    %v3301 = vand.u32 %v3091, 4294901760
    %v3302 = vsub.f32 %v3091, %v3301
    %3303 = vmatpush1.msra.mxu0 %v3302
    %3304 = vmatprep.subr.mxu0 0.0
    %3305 = vmatpush1.msra.mxu0 0.0
    %3306 = vmatprep.subr.mxu0 0.0
    %3307 = vmatpush1.msra.mxu0 0.0
    %3308 = vmatprep.subr.mxu0 0.0
    %3309 = vmatpush1.msra.mxu0 0.0
    %3310 = vmatprep.subr.mxu0 0.0
    %3311 = vmatpush1.msra.mxu0 0.0
    %3312 = vmatprep.subr.mxu0 0.0
    %3313 = vmatpush1.msra.mxu0 0.0
    %3314 = vmatprep.subr.mxu0 0.0
    %3315 = vmatpush1.msra.mxu0 0.0
    %3316 = vmatprep.subr.mxu0 0.0
    %3317 = vmatpush1.msra.mxu0 0.0
    %3318 = vmatprep.subr.mxu0 0.0
    %3319 = vmatpush1.msra.mxu0 0.0
    %3320 = vmatprep.subr.mxu0 0.0
    %3321 = vmatpush1.msra.mxu0 0.0
    %3322 = vmatprep.subr.mxu0 0.0
    %3323 = vmatpush1.msra.mxu0 0.0
    %3324 = vmatprep.subr.mxu0 0.0
    %3325 = vmatpush1.msra.mxu0 0.0
    %3326 = vmatprep.subr.mxu0 0.0
    %3327 = vmatpush1.msra.mxu0 0.0
    %3328 = vmatprep.subr.mxu0 0.0
    %3329 = vmatpush1.msra.mxu0 0.0
    %3330 = vmatprep.subr.mxu0 0.0
    %3331 = vmatpush1.msra.mxu0 0.0
    %3332 = vmatprep.subr.mxu0 0.0
    %3333 = vmatpush1.msra.mxu0 0.0
    %3334 = vmatprep.subr.mxu0 0.0
    %3335 = vmatpush1.msra.mxu0 0.0
    %3336 = vmatprep.subr.mxu0 0.0
    %3337 = vmatpush1.msra.mxu0 0.0
    %3338 = vmatprep.subr.mxu0 0.0
    %3339 = vmatpush1.msra.mxu0 0.0
    %3340 = vmatprep.subr.mxu0 0.0
    %3341 = vmatpush1.msra.mxu0 0.0
    %3342 = vmatprep.subr.mxu0 0.0
    %3343 = vmatpush1.msra.mxu0 0.0
    %3344 = vmatprep.subr.mxu0 0.0
    %3345 = vmatpush1.msra.mxu0 0.0
    %3346 = vmatprep.subr.mxu0 0.0
    %3347 = vmatpush1.msra.mxu0 0.0
    %3348 = vmatprep.subr.mxu0 0.0
    %3349 = vmatpush1.msra.mxu0 0.0
    %3350 = vmatprep.subr.mxu0 0.0
    %3351 = vmatpush1.msra.mxu0 0.0
    %3352 = vmatprep.subr.mxu0 0.0
    %3353 = vmatpush1.msra.mxu0 0.0
    %3354 = vmatprep.subr.mxu0 0.0
    %3355 = vmatpush1.msra.mxu0 0.0
    %3356 = vmatprep.subr.mxu0 0.0
    %3357 = vmatpush1.msra.mxu0 0.0
    %3358 = vmatprep.subr.mxu0 0.0
    %3359 = vmatpush1.msra.mxu0 0.0
    %3360 = vmatprep.mubr.f32.mxu0 0.0
    %v3361 = vand.u32 %v3097, 4294901760
    %v3362 = vsub.f32 %v3097, %v3361
    %3363 = vmatmul.mubr.f32.gmra.mrb[0].mxu0 %v3362
    %v3364 = vpop.f32.mrb[0].mxu0
    %v3365 = vadd.f32 %v3279, %v3364
    %v3366 = vpop.f32.mrb[0].mxu0
    %3367 = vmatprep.mubr.f32.mxu0 0.0
    %v3368 = vand.u32 %v3100, 4294901760
    %v3369 = vsub.f32 %v3100, %v3368
    %3370 = vmatmul.mubr.f32.gmra.mrb[0].mxu0 %v3369
    %v3371 = vpop.f32.mrb[0].mxu0
    %v3372 = vadd.f32 %v3285, %v3371
    %v3373 = vpop.f32.mrb[0].mxu0
    %3374 = vdwg.mxu0
    %3375 = vmatprep.subr.mxu0 0.0
    %v3376 = vand.u32 %v3088, 4294901760
    %3377 = vmatpush1.msra.mxu0 %v3376
    %3378 = vmatprep.subr.mxu0 0.0
    %v3379 = vand.u32 %v3089, 4294901760
    %3380 = vmatpush1.msra.mxu0 %v3379
    %3381 = vmatprep.subr.mxu0 0.0
    %v3382 = vand.u32 %v3090, 4294901760
    %3383 = vmatpush1.msra.mxu0 %v3382
    %3384 = vmatprep.subr.mxu0 0.0
    %v3385 = vand.u32 %v3091, 4294901760
    %3386 = vmatpush1.msra.mxu0 %v3385
    %3387 = vmatprep.subr.mxu0 0.0
    %3388 = vmatpush1.msra.mxu0 0.0
    %3389 = vmatprep.subr.mxu0 0.0
    %3390 = vmatpush1.msra.mxu0 0.0
    %3391 = vmatprep.subr.mxu0 0.0
    %3392 = vmatpush1.msra.mxu0 0.0
    %3393 = vmatprep.subr.mxu0 0.0
    %3394 = vmatpush1.msra.mxu0 0.0
    %3395 = vmatprep.subr.mxu0 0.0
    %3396 = vmatpush1.msra.mxu0 0.0
    %3397 = vmatprep.subr.mxu0 0.0
    %3398 = vmatpush1.msra.mxu0 0.0
    %3399 = vmatprep.subr.mxu0 0.0
    %3400 = vmatpush1.msra.mxu0 0.0
    %3401 = vmatprep.subr.mxu0 0.0
    %3402 = vmatpush1.msra.mxu0 0.0
    %3403 = vmatprep.subr.mxu0 0.0
    %3404 = vmatpush1.msra.mxu0 0.0
    %3405 = vmatprep.subr.mxu0 0.0
    %3406 = vmatpush1.msra.mxu0 0.0
    %3407 = vmatprep.subr.mxu0 0.0
    %3408 = vmatpush1.msra.mxu0 0.0
    %3409 = vmatprep.subr.mxu0 0.0
    %3410 = vmatpush1.msra.mxu0 0.0
    %3411 = vmatprep.subr.mxu0 0.0
    %3412 = vmatpush1.msra.mxu0 0.0
    %3413 = vmatprep.subr.mxu0 0.0
    %3414 = vmatpush1.msra.mxu0 0.0
    %3415 = vmatprep.subr.mxu0 0.0
    %3416 = vmatpush1.msra.mxu0 0.0
    %3417 = vmatprep.subr.mxu0 0.0
    %3418 = vmatpush1.msra.mxu0 0.0
    %3419 = vmatprep.subr.mxu0 0.0
    %3420 = vmatpush1.msra.mxu0 0.0
    %3421 = vmatprep.subr.mxu0 0.0
    %3422 = vmatpush1.msra.mxu0 0.0
    %3423 = vmatprep.subr.mxu0 0.0
    %3424 = vmatpush1.msra.mxu0 0.0
    %3425 = vmatprep.subr.mxu0 0.0
    %3426 = vmatpush1.msra.mxu0 0.0
    %3427 = vmatprep.subr.mxu0 0.0
    %3428 = vmatpush1.msra.mxu0 0.0
    %3429 = vmatprep.subr.mxu0 0.0
    %3430 = vmatpush1.msra.mxu0 0.0
    %3431 = vmatprep.subr.mxu0 0.0
    %3432 = vmatpush1.msra.mxu0 0.0
    %3433 = vmatprep.subr.mxu0 0.0
    %3434 = vmatpush1.msra.mxu0 0.0
    %3435 = vmatprep.subr.mxu0 0.0
    %3436 = vmatpush1.msra.mxu0 0.0
    %3437 = vmatprep.subr.mxu0 0.0
    %3438 = vmatpush1.msra.mxu0 0.0
    %3439 = vmatprep.subr.mxu0 0.0
    %3440 = vmatpush1.msra.mxu0 0.0
    %3441 = vmatprep.subr.mxu0 0.0
    %3442 = vmatpush1.msra.mxu0 0.0
    %3443 = vmatprep.mubr.f32.mxu0 0.0
    %v3444 = vand.u32 %v3097, 4294901760
    %v3445 = vsub.f32 %v3097, %v3444
    %v3446 = vand.u32 %v3445, 4294901760
    %3447 = vmatmul.mubr.f32.gmra.mrb[0].mxu0 %v3446
    %v3448 = vpop.f32.mrb[0].mxu0
    %v3449 = vadd.f32 %v3365, %v3448
    %v3450 = vpop.f32.mrb[0].mxu0
    %3451 = vmatprep.mubr.f32.mxu0 0.0
    %v3452 = vand.u32 %v3100, 4294901760
    %v3453 = vsub.f32 %v3100, %v3452
    %v3454 = vand.u32 %v3453, 4294901760
    %3455 = vmatmul.mubr.f32.gmra.mrb[0].mxu0 %v3454
    %v3456 = vpop.f32.mrb[0].mxu0
    %v3457 = vadd.f32 %v3372, %v3456
    %v3458 = vpop.f32.mrb[0].mxu0
    %3459 = vdwg.mxu0
    %3460 = vmatprep.subr.mxu0 0.0
    %v3461 = vand.u32 %v3088, 4294901760
    %v3462 = vsub.f32 %v3088, %v3461
    %v3463 = vand.u32 %v3462, 4294901760
    %3464 = vmatpush1.msra.mxu0 %v3463
    %3465 = vmatprep.subr.mxu0 0.0
    %v3466 = vand.u32 %v3089, 4294901760
    %v3467 = vsub.f32 %v3089, %v3466
    %v3468 = vand.u32 %v3467, 4294901760
    %3469 = vmatpush1.msra.mxu0 %v3468
    %3470 = vmatprep.subr.mxu0 0.0
    %v3471 = vand.u32 %v3090, 4294901760
    %v3472 = vsub.f32 %v3090, %v3471
    %v3473 = vand.u32 %v3472, 4294901760
    %3474 = vmatpush1.msra.mxu0 %v3473
    %3475 = vmatprep.subr.mxu0 0.0
    %v3476 = vand.u32 %v3091, 4294901760
    %v3477 = vsub.f32 %v3091, %v3476
    %v3478 = vand.u32 %v3477, 4294901760
    %3479 = vmatpush1.msra.mxu0 %v3478
    %3480 = vmatprep.subr.mxu0 0.0
    %3481 = vmatpush1.msra.mxu0 0.0
    %3482 = vmatprep.subr.mxu0 0.0
    %3483 = vmatpush1.msra.mxu0 0.0
    %3484 = vmatprep.subr.mxu0 0.0
    %3485 = vmatpush1.msra.mxu0 0.0
    %3486 = vmatprep.subr.mxu0 0.0
    %3487 = vmatpush1.msra.mxu0 0.0
    %3488 = vmatprep.subr.mxu0 0.0
    %3489 = vmatpush1.msra.mxu0 0.0
    %3490 = vmatprep.subr.mxu0 0.0
    %3491 = vmatpush1.msra.mxu0 0.0
    %3492 = vmatprep.subr.mxu0 0.0
    %3493 = vmatpush1.msra.mxu0 0.0
    %3494 = vmatprep.subr.mxu0 0.0
    %3495 = vmatpush1.msra.mxu0 0.0
    %3496 = vmatprep.subr.mxu0 0.0
    %3497 = vmatpush1.msra.mxu0 0.0
    %3498 = vmatprep.subr.mxu0 0.0
    %3499 = vmatpush1.msra.mxu0 0.0
    %3500 = vmatprep.subr.mxu0 0.0
    %3501 = vmatpush1.msra.mxu0 0.0
    %3502 = vmatprep.subr.mxu0 0.0
    %3503 = vmatpush1.msra.mxu0 0.0
    %3504 = vmatprep.subr.mxu0 0.0
    %3505 = vmatpush1.msra.mxu0 0.0
    %3506 = vmatprep.subr.mxu0 0.0
    %3507 = vmatpush1.msra.mxu0 0.0
    %3508 = vmatprep.subr.mxu0 0.0
    %3509 = vmatpush1.msra.mxu0 0.0
    %3510 = vmatprep.subr.mxu0 0.0
    %3511 = vmatpush1.msra.mxu0 0.0
    %3512 = vmatprep.subr.mxu0 0.0
    %3513 = vmatpush1.msra.mxu0 0.0
    %3514 = vmatprep.subr.mxu0 0.0
    %3515 = vmatpush1.msra.mxu0 0.0
    %3516 = vmatprep.subr.mxu0 0.0
    %3517 = vmatpush1.msra.mxu0 0.0
    %3518 = vmatprep.subr.mxu0 0.0
    %3519 = vmatpush1.msra.mxu0 0.0
    %3520 = vmatprep.subr.mxu0 0.0
    %3521 = vmatpush1.msra.mxu0 0.0
    %3522 = vmatprep.subr.mxu0 0.0
    %3523 = vmatpush1.msra.mxu0 0.0
    %3524 = vmatprep.subr.mxu0 0.0
    %3525 = vmatpush1.msra.mxu0 0.0
    %3526 = vmatprep.subr.mxu0 0.0
    %3527 = vmatpush1.msra.mxu0 0.0
    %3528 = vmatprep.subr.mxu0 0.0
    %3529 = vmatpush1.msra.mxu0 0.0
    %3530 = vmatprep.subr.mxu0 0.0
    %3531 = vmatpush1.msra.mxu0 0.0
    %3532 = vmatprep.subr.mxu0 0.0
    %3533 = vmatpush1.msra.mxu0 0.0
    %3534 = vmatprep.subr.mxu0 0.0
    %3535 = vmatpush1.msra.mxu0 0.0
    %3536 = vmatprep.mubr.f32.mxu0 0.0
    %v3537 = vand.u32 %v3097, 4294901760
    %3538 = vmatmul.mubr.f32.gmra.mrb[0].mxu0 %v3537
    %v3539 = vpop.f32.mrb[0].mxu0
    %v3540 = vadd.f32 %v3449, %v3539
    %v3541 = vpop.f32.mrb[0].mxu0
    %3542 = vmatprep.mubr.f32.mxu0 0.0
    %v3543 = vand.u32 %v3100, 4294901760
    %3544 = vmatmul.mubr.f32.gmra.mrb[0].mxu0 %v3543
    %v3545 = vpop.f32.mrb[0].mxu0
    %v3546 = vadd.f32 %v3457, %v3545
    %v3547 = vpop.f32.mrb[0].mxu0
    %3548 = vdwg.mxu0
    %3549 = vmatprep.subr.mxu0 0.0
    %v3550 = vand.u32 %v3088, 4294901760
    %3551 = vmatpush1.msra.mxu0 %v3550
    %3552 = vmatprep.subr.mxu0 0.0
    %v3553 = vand.u32 %v3089, 4294901760
    %3554 = vmatpush1.msra.mxu0 %v3553
    %3555 = vmatprep.subr.mxu0 0.0
    %v3556 = vand.u32 %v3090, 4294901760
    %3557 = vmatpush1.msra.mxu0 %v3556
    %3558 = vmatprep.subr.mxu0 0.0
    %v3559 = vand.u32 %v3091, 4294901760
    %3560 = vmatpush1.msra.mxu0 %v3559
    %3561 = vmatprep.subr.mxu0 0.0
    %3562 = vmatpush1.msra.mxu0 0.0
    %3563 = vmatprep.subr.mxu0 0.0
    %3564 = vmatpush1.msra.mxu0 0.0
    %3565 = vmatprep.subr.mxu0 0.0
    %3566 = vmatpush1.msra.mxu0 0.0
    %3567 = vmatprep.subr.mxu0 0.0
    %3568 = vmatpush1.msra.mxu0 0.0
    %3569 = vmatprep.subr.mxu0 0.0
    %3570 = vmatpush1.msra.mxu0 0.0
    %3571 = vmatprep.subr.mxu0 0.0
    %3572 = vmatpush1.msra.mxu0 0.0
    %3573 = vmatprep.subr.mxu0 0.0
    %3574 = vmatpush1.msra.mxu0 0.0
    %3575 = vmatprep.subr.mxu0 0.0
    %3576 = vmatpush1.msra.mxu0 0.0
    %3577 = vmatprep.subr.mxu0 0.0
    %3578 = vmatpush1.msra.mxu0 0.0
    %3579 = vmatprep.subr.mxu0 0.0
    %3580 = vmatpush1.msra.mxu0 0.0
    %3581 = vmatprep.subr.mxu0 0.0
    %3582 = vmatpush1.msra.mxu0 0.0
    %3583 = vmatprep.subr.mxu0 0.0
    %3584 = vmatpush1.msra.mxu0 0.0
    %3585 = vmatprep.subr.mxu0 0.0
    %3586 = vmatpush1.msra.mxu0 0.0
    %3587 = vmatprep.subr.mxu0 0.0
    %3588 = vmatpush1.msra.mxu0 0.0
    %3589 = vmatprep.subr.mxu0 0.0
    %3590 = vmatpush1.msra.mxu0 0.0
    %3591 = vmatprep.subr.mxu0 0.0
    %3592 = vmatpush1.msra.mxu0 0.0
    %3593 = vmatprep.subr.mxu0 0.0
    %3594 = vmatpush1.msra.mxu0 0.0
    %3595 = vmatprep.subr.mxu0 0.0
    %3596 = vmatpush1.msra.mxu0 0.0
    %3597 = vmatprep.subr.mxu0 0.0
    %3598 = vmatpush1.msra.mxu0 0.0
    %3599 = vmatprep.subr.mxu0 0.0
    %3600 = vmatpush1.msra.mxu0 0.0
    %3601 = vmatprep.subr.mxu0 0.0
    %3602 = vmatpush1.msra.mxu0 0.0
    %3603 = vmatprep.subr.mxu0 0.0
    %3604 = vmatpush1.msra.mxu0 0.0
    %3605 = vmatprep.subr.mxu0 0.0
    %3606 = vmatpush1.msra.mxu0 0.0
    %3607 = vmatprep.subr.mxu0 0.0
    %3608 = vmatpush1.msra.mxu0 0.0
    %3609 = vmatprep.subr.mxu0 0.0
    %3610 = vmatpush1.msra.mxu0 0.0
    %3611 = vmatprep.subr.mxu0 0.0
    %3612 = vmatpush1.msra.mxu0 0.0
    %3613 = vmatprep.subr.mxu0 0.0
    %3614 = vmatpush1.msra.mxu0 0.0
    %3615 = vmatprep.subr.mxu0 0.0
    %3616 = vmatpush1.msra.mxu0 0.0
    %3617 = vmatprep.mubr.f32.mxu0 0.0
    %v3618 = vand.u32 %v3097, 4294901760
    %3619 = vmatmul.mubr.f32.gmra.mrb[0].mxu0 %v3618
    %v3620 = vpop.f32.mrb[0].mxu0
    %v3621 = vadd.f32 %v3540, %v3620
    %v3622 = vpop.f32.mrb[0].mxu0
    %3623 = vmatprep.mubr.f32.mxu0 0.0
    %v3624 = vand.u32 %v3100, 4294901760
    %3625 = vmatmul.mubr.f32.gmra.mrb[0].mxu0 %v3624
    %v3626 = vpop.f32.mrb[0].mxu0
    %v3627 = vadd.f32 %v3546, %v3626
    %v3628 = vpop.f32.mrb[0].mxu0
    %3629 = vdwg.mxu0
    %v3630 = vmax.f32 %v3621, 0.0
    %v3631 = vmax.f32 %v3627, 0.0
    %v3632 = vld [vmem:[%s5] sm:$0xff]
    %v3633 = vld [vmem:[%s5 + $0x8] sm:$0xff]
    %v3634 = vld [vmem:[%s5 + $0x10] sm:$0xff]
    %v3635 = vld [vmem:[%s5 + $0x18] sm:$0xff]
    %v3636 = vld [vmem:[%s5 + $0x20] sm:$0xff]
    %v3637 = vld [vmem:[%s5 + $0x28] sm:$0xff]
    %v3638 = vld [vmem:[%s5 + $0x30] sm:$0xff]
    %v3639 = vld [vmem:[%s5 + $0x38] sm:$0xff]
    %v3640 = vlaneseq
    %v3641 = vshrl.u32 %v3640, 7
    %v3642 = vsub.s32 3, %v3641
    %v3643 = vrot.slane %v29, %v3642
    %v3645 = vsel %vm1498, %v3630, 0
    %v3648 = vsel %vm1498, %v3631, 0
    %3650 = vmatprep.subr.mxu0 0.0
    %v3651 = vand.u32 %v3632, 4294901760
    %3652 = vmatpush1.msra.mxu0 %v3651
    %3653 = vmatprep.subr.mxu0 0.0
    %v3654 = vand.u32 %v3633, 4294901760
    %3655 = vmatpush1.msra.mxu0 %v3654
    %3656 = vmatprep.subr.mxu0 0.0
    %v3657 = vand.u32 %v3634, 4294901760
    %3658 = vmatpush1.msra.mxu0 %v3657
    %3659 = vmatprep.subr.mxu0 0.0
    %v3660 = vand.u32 %v3635, 4294901760
    %3661 = vmatpush1.msra.mxu0 %v3660
    %3662 = vmatprep.subr.mxu0 0.0
    %v3663 = vand.u32 %v3636, 4294901760
    %3664 = vmatpush1.msra.mxu0 %v3663
    %3665 = vmatprep.subr.mxu0 0.0
    %v3666 = vand.u32 %v3637, 4294901760
    %3667 = vmatpush1.msra.mxu0 %v3666
    %3668 = vmatprep.subr.mxu0 0.0
    %v3669 = vand.u32 %v3638, 4294901760
    %3670 = vmatpush1.msra.mxu0 %v3669
    %3671 = vmatprep.subr.mxu0 0.0
    %v3672 = vand.u32 %v3639, 4294901760
    %3673 = vmatpush1.msra.mxu0 %v3672
    %3674 = vmatprep.subr.mxu0 0.0
    %3675 = vmatpush1.msra.mxu0 0.0
    %3676 = vmatprep.subr.mxu0 0.0
    %3677 = vmatpush1.msra.mxu0 0.0
    %3678 = vmatprep.subr.mxu0 0.0
    %3679 = vmatpush1.msra.mxu0 0.0
    %3680 = vmatprep.subr.mxu0 0.0
    %3681 = vmatpush1.msra.mxu0 0.0
    %3682 = vmatprep.subr.mxu0 0.0
    %3683 = vmatpush1.msra.mxu0 0.0
    %3684 = vmatprep.subr.mxu0 0.0
    %3685 = vmatpush1.msra.mxu0 0.0
    %3686 = vmatprep.subr.mxu0 0.0
    %3687 = vmatpush1.msra.mxu0 0.0
    %3688 = vmatprep.subr.mxu0 0.0
    %3689 = vmatpush1.msra.mxu0 0.0
    %3690 = vmatprep.subr.mxu0 0.0
    %3691 = vmatpush1.msra.mxu0 0.0
    %3692 = vmatprep.subr.mxu0 0.0
    %3693 = vmatpush1.msra.mxu0 0.0
    %3694 = vmatprep.subr.mxu0 0.0
    %3695 = vmatpush1.msra.mxu0 0.0
    %3696 = vmatprep.subr.mxu0 0.0
    %3697 = vmatpush1.msra.mxu0 0.0
    %3698 = vmatprep.subr.mxu0 0.0
    %3699 = vmatpush1.msra.mxu0 0.0
    %3700 = vmatprep.subr.mxu0 0.0
    %3701 = vmatpush1.msra.mxu0 0.0
    %3702 = vmatprep.subr.mxu0 0.0
    %3703 = vmatpush1.msra.mxu0 0.0
    %3704 = vmatprep.subr.mxu0 0.0
    %3705 = vmatpush1.msra.mxu0 0.0
    %3706 = vmatprep.subr.mxu0 0.0
    %3707 = vmatpush1.msra.mxu0 0.0
    %3708 = vmatprep.subr.mxu0 0.0
    %3709 = vmatpush1.msra.mxu0 0.0
    %3710 = vmatprep.subr.mxu0 0.0
    %3711 = vmatpush1.msra.mxu0 0.0
    %3712 = vmatprep.subr.mxu0 0.0
    %3713 = vmatpush1.msra.mxu0 0.0
    %3714 = vmatprep.subr.mxu0 0.0
    %3715 = vmatpush1.msra.mxu0 0.0
    %3716 = vmatprep.subr.mxu0 0.0
    %3717 = vmatpush1.msra.mxu0 0.0
    %3718 = vmatprep.subr.mxu0 0.0
    %3719 = vmatpush1.msra.mxu0 0.0
    %3720 = vmatprep.subr.mxu0 0.0
    %3721 = vmatpush1.msra.mxu0 0.0
    %3722 = vmatprep.mubr.f32.mxu0 0.0
    %v3723 = vand.u32 %v3645, 4294901760
    %v3724 = vsub.f32 %v3645, %v3723
    %v3725 = vand.u32 %v3724, 4294901760
    %v3726 = vsub.f32 %v3724, %v3725
    %v3727 = vand.u32 %v3726, 4294901760
    %3728 = vmatmul.mubr.f32.gmra.mrb[0].mxu0 %v3727
    %v3729 = vpop.f32.mrb[0].mxu0
    %v3730 = vadd.f32 %v3643, %v3729
    %v3731 = vpop.f32.mrb[0].mxu0
    %3732 = vmatprep.mubr.f32.mxu0 0.0
    %v3733 = vand.u32 %v3648, 4294901760
    %v3734 = vsub.f32 %v3648, %v3733
    %v3735 = vand.u32 %v3734, 4294901760
    %v3736 = vsub.f32 %v3734, %v3735
    %v3737 = vand.u32 %v3736, 4294901760
    %3738 = vmatmul.mubr.f32.gmra.mrb[0].mxu0 %v3737
    %v3739 = vpop.f32.mrb[0].mxu0
    %v3740 = vadd.f32 %v3643, %v3739
    %v3741 = vpop.f32.mrb[0].mxu0
    %3742 = vdwg.mxu0
    %3743 = vmatprep.subr.mxu0 0.0
    %v3744 = vand.u32 %v3632, 4294901760
    %v3745 = vsub.f32 %v3632, %v3744
    %v3746 = vand.u32 %v3745, 4294901760
    %v3747 = vsub.f32 %v3745, %v3746
    %v3748 = vand.u32 %v3747, 4294901760
    %3749 = vmatpush1.msra.mxu0 %v3748
    %3750 = vmatprep.subr.mxu0 0.0
    %v3751 = vand.u32 %v3633, 4294901760
    %v3752 = vsub.f32 %v3633, %v3751
    %v3753 = vand.u32 %v3752, 4294901760
    %v3754 = vsub.f32 %v3752, %v3753
    %v3755 = vand.u32 %v3754, 4294901760
    %3756 = vmatpush1.msra.mxu0 %v3755
    %3757 = vmatprep.subr.mxu0 0.0
    %v3758 = vand.u32 %v3634, 4294901760
    %v3759 = vsub.f32 %v3634, %v3758
    %v3760 = vand.u32 %v3759, 4294901760
    %v3761 = vsub.f32 %v3759, %v3760
    %v3762 = vand.u32 %v3761, 4294901760
    %3763 = vmatpush1.msra.mxu0 %v3762
    %3764 = vmatprep.subr.mxu0 0.0
    %v3765 = vand.u32 %v3635, 4294901760
    %v3766 = vsub.f32 %v3635, %v3765
    %v3767 = vand.u32 %v3766, 4294901760
    %v3768 = vsub.f32 %v3766, %v3767
    %v3769 = vand.u32 %v3768, 4294901760
    %3770 = vmatpush1.msra.mxu0 %v3769
    %3771 = vmatprep.subr.mxu0 0.0
    %v3772 = vand.u32 %v3636, 4294901760
    %v3773 = vsub.f32 %v3636, %v3772
    %v3774 = vand.u32 %v3773, 4294901760
    %v3775 = vsub.f32 %v3773, %v3774
    %v3776 = vand.u32 %v3775, 4294901760
    %3777 = vmatpush1.msra.mxu0 %v3776
    %3778 = vmatprep.subr.mxu0 0.0
    %v3779 = vand.u32 %v3637, 4294901760
    %v3780 = vsub.f32 %v3637, %v3779
    %v3781 = vand.u32 %v3780, 4294901760
    %v3782 = vsub.f32 %v3780, %v3781
    %v3783 = vand.u32 %v3782, 4294901760
    %3784 = vmatpush1.msra.mxu0 %v3783
    %3785 = vmatprep.subr.mxu0 0.0
    %v3786 = vand.u32 %v3638, 4294901760
    %v3787 = vsub.f32 %v3638, %v3786
    %v3788 = vand.u32 %v3787, 4294901760
    %v3789 = vsub.f32 %v3787, %v3788
    %v3790 = vand.u32 %v3789, 4294901760
    %3791 = vmatpush1.msra.mxu0 %v3790
    %3792 = vmatprep.subr.mxu0 0.0
    %v3793 = vand.u32 %v3639, 4294901760
    %v3794 = vsub.f32 %v3639, %v3793
    %v3795 = vand.u32 %v3794, 4294901760
    %v3796 = vsub.f32 %v3794, %v3795
    %v3797 = vand.u32 %v3796, 4294901760
    %3798 = vmatpush1.msra.mxu0 %v3797
    %3799 = vmatprep.subr.mxu0 0.0
    %3800 = vmatpush1.msra.mxu0 0.0
    %3801 = vmatprep.subr.mxu0 0.0
    %3802 = vmatpush1.msra.mxu0 0.0
    %3803 = vmatprep.subr.mxu0 0.0
    %3804 = vmatpush1.msra.mxu0 0.0
    %3805 = vmatprep.subr.mxu0 0.0
    %3806 = vmatpush1.msra.mxu0 0.0
    %3807 = vmatprep.subr.mxu0 0.0
    %3808 = vmatpush1.msra.mxu0 0.0
    %3809 = vmatprep.subr.mxu0 0.0
    %3810 = vmatpush1.msra.mxu0 0.0
    %3811 = vmatprep.subr.mxu0 0.0
    %3812 = vmatpush1.msra.mxu0 0.0
    %3813 = vmatprep.subr.mxu0 0.0
    %3814 = vmatpush1.msra.mxu0 0.0
    %3815 = vmatprep.subr.mxu0 0.0
    %3816 = vmatpush1.msra.mxu0 0.0
    %3817 = vmatprep.subr.mxu0 0.0
    %3818 = vmatpush1.msra.mxu0 0.0
    %3819 = vmatprep.subr.mxu0 0.0
    %3820 = vmatpush1.msra.mxu0 0.0
    %3821 = vmatprep.subr.mxu0 0.0
    %3822 = vmatpush1.msra.mxu0 0.0
    %3823 = vmatprep.subr.mxu0 0.0
    %3824 = vmatpush1.msra.mxu0 0.0
    %3825 = vmatprep.subr.mxu0 0.0
    %3826 = vmatpush1.msra.mxu0 0.0
    %3827 = vmatprep.subr.mxu0 0.0
    %3828 = vmatpush1.msra.mxu0 0.0
    %3829 = vmatprep.subr.mxu0 0.0
    %3830 = vmatpush1.msra.mxu0 0.0
    %3831 = vmatprep.subr.mxu0 0.0
    %3832 = vmatpush1.msra.mxu0 0.0
    %3833 = vmatprep.subr.mxu0 0.0
    %3834 = vmatpush1.msra.mxu0 0.0
    %3835 = vmatprep.subr.mxu0 0.0
    %3836 = vmatpush1.msra.mxu0 0.0
    %3837 = vmatprep.subr.mxu0 0.0
    %3838 = vmatpush1.msra.mxu0 0.0
    %3839 = vmatprep.subr.mxu0 0.0
    %3840 = vmatpush1.msra.mxu0 0.0
    %3841 = vmatprep.subr.mxu0 0.0
    %3842 = vmatpush1.msra.mxu0 0.0
    %3843 = vmatprep.subr.mxu0 0.0
    %3844 = vmatpush1.msra.mxu0 0.0
    %3845 = vmatprep.subr.mxu0 0.0
    %3846 = vmatpush1.msra.mxu0 0.0
    %3847 = vmatprep.mubr.f32.mxu0 0.0
    %v3848 = vand.u32 %v3645, 4294901760
    %3849 = vmatmul.mubr.f32.gmra.mrb[0].mxu0 %v3848
    %v3850 = vpop.f32.mrb[0].mxu0
    %v3851 = vadd.f32 %v3730, %v3850
    %v3852 = vpop.f32.mrb[0].mxu0
    %3853 = vmatprep.mubr.f32.mxu0 0.0
    %v3854 = vand.u32 %v3648, 4294901760
    %3855 = vmatmul.mubr.f32.gmra.mrb[0].mxu0 %v3854
    %v3856 = vpop.f32.mrb[0].mxu0
    %v3857 = vadd.f32 %v3740, %v3856
    %v3858 = vpop.f32.mrb[0].mxu0
    %3859 = vdwg.mxu0
    %3860 = vmatprep.subr.mxu0 0.0
    %v3861 = vand.u32 %v3632, 4294901760
    %v3862 = vsub.f32 %v3632, %v3861
    %3863 = vmatpush1.msra.mxu0 %v3862
    %3864 = vmatprep.subr.mxu0 0.0
    %v3865 = vand.u32 %v3633, 4294901760
    %v3866 = vsub.f32 %v3633, %v3865
    %3867 = vmatpush1.msra.mxu0 %v3866
    %3868 = vmatprep.subr.mxu0 0.0
    %v3869 = vand.u32 %v3634, 4294901760
    %v3870 = vsub.f32 %v3634, %v3869
    %3871 = vmatpush1.msra.mxu0 %v3870
    %3872 = vmatprep.subr.mxu0 0.0
    %v3873 = vand.u32 %v3635, 4294901760
    %v3874 = vsub.f32 %v3635, %v3873
    %3875 = vmatpush1.msra.mxu0 %v3874
    %3876 = vmatprep.subr.mxu0 0.0
    %v3877 = vand.u32 %v3636, 4294901760
    %v3878 = vsub.f32 %v3636, %v3877
    %3879 = vmatpush1.msra.mxu0 %v3878
    %3880 = vmatprep.subr.mxu0 0.0
    %v3881 = vand.u32 %v3637, 4294901760
    %v3882 = vsub.f32 %v3637, %v3881
    %3883 = vmatpush1.msra.mxu0 %v3882
    %3884 = vmatprep.subr.mxu0 0.0
    %v3885 = vand.u32 %v3638, 4294901760
    %v3886 = vsub.f32 %v3638, %v3885
    %3887 = vmatpush1.msra.mxu0 %v3886
    %3888 = vmatprep.subr.mxu0 0.0
    %v3889 = vand.u32 %v3639, 4294901760
    %v3890 = vsub.f32 %v3639, %v3889
    %3891 = vmatpush1.msra.mxu0 %v3890
    %3892 = vmatprep.subr.mxu0 0.0
    %3893 = vmatpush1.msra.mxu0 0.0
    %3894 = vmatprep.subr.mxu0 0.0
    %3895 = vmatpush1.msra.mxu0 0.0
    %3896 = vmatprep.subr.mxu0 0.0
    %3897 = vmatpush1.msra.mxu0 0.0
    %3898 = vmatprep.subr.mxu0 0.0
    %3899 = vmatpush1.msra.mxu0 0.0
    %3900 = vmatprep.subr.mxu0 0.0
    %3901 = vmatpush1.msra.mxu0 0.0
    %3902 = vmatprep.subr.mxu0 0.0
    %3903 = vmatpush1.msra.mxu0 0.0
    %3904 = vmatprep.subr.mxu0 0.0
    %3905 = vmatpush1.msra.mxu0 0.0
    %3906 = vmatprep.subr.mxu0 0.0
    %3907 = vmatpush1.msra.mxu0 0.0
    %3908 = vmatprep.subr.mxu0 0.0
    %3909 = vmatpush1.msra.mxu0 0.0
    %3910 = vmatprep.subr.mxu0 0.0
    %3911 = vmatpush1.msra.mxu0 0.0
    %3912 = vmatprep.subr.mxu0 0.0
    %3913 = vmatpush1.msra.mxu0 0.0
    %3914 = vmatprep.subr.mxu0 0.0
    %3915 = vmatpush1.msra.mxu0 0.0
    %3916 = vmatprep.subr.mxu0 0.0
    %3917 = vmatpush1.msra.mxu0 0.0
    %3918 = vmatprep.subr.mxu0 0.0
    %3919 = vmatpush1.msra.mxu0 0.0
    %3920 = vmatprep.subr.mxu0 0.0
    %3921 = vmatpush1.msra.mxu0 0.0
    %3922 = vmatprep.subr.mxu0 0.0
    %3923 = vmatpush1.msra.mxu0 0.0
    %3924 = vmatprep.subr.mxu0 0.0
    %3925 = vmatpush1.msra.mxu0 0.0
    %3926 = vmatprep.subr.mxu0 0.0
    %3927 = vmatpush1.msra.mxu0 0.0
    %3928 = vmatprep.subr.mxu0 0.0
    %3929 = vmatpush1.msra.mxu0 0.0
    %3930 = vmatprep.subr.mxu0 0.0
    %3931 = vmatpush1.msra.mxu0 0.0
    %3932 = vmatprep.subr.mxu0 0.0
    %3933 = vmatpush1.msra.mxu0 0.0
    %3934 = vmatprep.subr.mxu0 0.0
    %3935 = vmatpush1.msra.mxu0 0.0
    %3936 = vmatprep.subr.mxu0 0.0
    %3937 = vmatpush1.msra.mxu0 0.0
    %3938 = vmatprep.subr.mxu0 0.0
    %3939 = vmatpush1.msra.mxu0 0.0
    %3940 = vmatprep.mubr.f32.mxu0 0.0
    %v3941 = vand.u32 %v3645, 4294901760
    %v3942 = vsub.f32 %v3645, %v3941
    %3943 = vmatmul.mubr.f32.gmra.mrb[0].mxu0 %v3942
    %v3944 = vpop.f32.mrb[0].mxu0
    %v3945 = vadd.f32 %v3851, %v3944
    %v3946 = vpop.f32.mrb[0].mxu0
    %3947 = vmatprep.mubr.f32.mxu0 0.0
    %v3948 = vand.u32 %v3648, 4294901760
    %v3949 = vsub.f32 %v3648, %v3948
    %3950 = vmatmul.mubr.f32.gmra.mrb[0].mxu0 %v3949
    %v3951 = vpop.f32.mrb[0].mxu0
    %v3952 = vadd.f32 %v3857, %v3951
    %v3953 = vpop.f32.mrb[0].mxu0
    %3954 = vdwg.mxu0
    %3955 = vmatprep.subr.mxu0 0.0
    %v3956 = vand.u32 %v3632, 4294901760
    %3957 = vmatpush1.msra.mxu0 %v3956
    %3958 = vmatprep.subr.mxu0 0.0
    %v3959 = vand.u32 %v3633, 4294901760
    %3960 = vmatpush1.msra.mxu0 %v3959
    %3961 = vmatprep.subr.mxu0 0.0
    %v3962 = vand.u32 %v3634, 4294901760
    %3963 = vmatpush1.msra.mxu0 %v3962
    %3964 = vmatprep.subr.mxu0 0.0
    %v3965 = vand.u32 %v3635, 4294901760
    %3966 = vmatpush1.msra.mxu0 %v3965
    %3967 = vmatprep.subr.mxu0 0.0
    %v3968 = vand.u32 %v3636, 4294901760
    %3969 = vmatpush1.msra.mxu0 %v3968
    %3970 = vmatprep.subr.mxu0 0.0
    %v3971 = vand.u32 %v3637, 4294901760
    %3972 = vmatpush1.msra.mxu0 %v3971
    %3973 = vmatprep.subr.mxu0 0.0
    %v3974 = vand.u32 %v3638, 4294901760
    %3975 = vmatpush1.msra.mxu0 %v3974
    %3976 = vmatprep.subr.mxu0 0.0
    %v3977 = vand.u32 %v3639, 4294901760
    %3978 = vmatpush1.msra.mxu0 %v3977
    %3979 = vmatprep.subr.mxu0 0.0
    %3980 = vmatpush1.msra.mxu0 0.0
    %3981 = vmatprep.subr.mxu0 0.0
    %3982 = vmatpush1.msra.mxu0 0.0
    %3983 = vmatprep.subr.mxu0 0.0
    %3984 = vmatpush1.msra.mxu0 0.0
    %3985 = vmatprep.subr.mxu0 0.0
    %3986 = vmatpush1.msra.mxu0 0.0
    %3987 = vmatprep.subr.mxu0 0.0
    %3988 = vmatpush1.msra.mxu0 0.0
    %3989 = vmatprep.subr.mxu0 0.0
    %3990 = vmatpush1.msra.mxu0 0.0
    %3991 = vmatprep.subr.mxu0 0.0
    %3992 = vmatpush1.msra.mxu0 0.0
    %3993 = vmatprep.subr.mxu0 0.0
    %3994 = vmatpush1.msra.mxu0 0.0
    %3995 = vmatprep.subr.mxu0 0.0
    %3996 = vmatpush1.msra.mxu0 0.0
    %3997 = vmatprep.subr.mxu0 0.0
    %3998 = vmatpush1.msra.mxu0 0.0
    %3999 = vmatprep.subr.mxu0 0.0
    %4000 = vmatpush1.msra.mxu0 0.0
    %4001 = vmatprep.subr.mxu0 0.0
    %4002 = vmatpush1.msra.mxu0 0.0
    %4003 = vmatprep.subr.mxu0 0.0
    %4004 = vmatpush1.msra.mxu0 0.0
    %4005 = vmatprep.subr.mxu0 0.0
    %4006 = vmatpush1.msra.mxu0 0.0
    %4007 = vmatprep.subr.mxu0 0.0
    %4008 = vmatpush1.msra.mxu0 0.0
    %4009 = vmatprep.subr.mxu0 0.0
    %4010 = vmatpush1.msra.mxu0 0.0
    %4011 = vmatprep.subr.mxu0 0.0
    %4012 = vmatpush1.msra.mxu0 0.0
    %4013 = vmatprep.subr.mxu0 0.0
    %4014 = vmatpush1.msra.mxu0 0.0
    %4015 = vmatprep.subr.mxu0 0.0
    %4016 = vmatpush1.msra.mxu0 0.0
    %4017 = vmatprep.subr.mxu0 0.0
    %4018 = vmatpush1.msra.mxu0 0.0
    %4019 = vmatprep.subr.mxu0 0.0
    %4020 = vmatpush1.msra.mxu0 0.0
    %4021 = vmatprep.subr.mxu0 0.0
    %4022 = vmatpush1.msra.mxu0 0.0
    %4023 = vmatprep.subr.mxu0 0.0
    %4024 = vmatpush1.msra.mxu0 0.0
    %4025 = vmatprep.subr.mxu0 0.0
    %4026 = vmatpush1.msra.mxu0 0.0
    %4027 = vmatprep.mubr.f32.mxu0 0.0
    %v4028 = vand.u32 %v3645, 4294901760
    %v4029 = vsub.f32 %v3645, %v4028
    %v4030 = vand.u32 %v4029, 4294901760
    %4031 = vmatmul.mubr.f32.gmra.mrb[0].mxu0 %v4030
    %v4032 = vpop.f32.mrb[0].mxu0
    %v4033 = vadd.f32 %v3945, %v4032
    %v4034 = vpop.f32.mrb[0].mxu0
    %4035 = vmatprep.mubr.f32.mxu0 0.0
    %v4036 = vand.u32 %v3648, 4294901760
    %v4037 = vsub.f32 %v3648, %v4036
    %v4038 = vand.u32 %v4037, 4294901760
    %4039 = vmatmul.mubr.f32.gmra.mrb[0].mxu0 %v4038
    %v4040 = vpop.f32.mrb[0].mxu0
    %v4041 = vadd.f32 %v3952, %v4040
    %v4042 = vpop.f32.mrb[0].mxu0
    %4043 = vdwg.mxu0
    %4044 = vmatprep.subr.mxu0 0.0
    %v4045 = vand.u32 %v3632, 4294901760
    %v4046 = vsub.f32 %v3632, %v4045
    %v4047 = vand.u32 %v4046, 4294901760
    %4048 = vmatpush1.msra.mxu0 %v4047
    %4049 = vmatprep.subr.mxu0 0.0
    %v4050 = vand.u32 %v3633, 4294901760
    %v4051 = vsub.f32 %v3633, %v4050
    %v4052 = vand.u32 %v4051, 4294901760
    %4053 = vmatpush1.msra.mxu0 %v4052
    %4054 = vmatprep.subr.mxu0 0.0
    %v4055 = vand.u32 %v3634, 4294901760
    %v4056 = vsub.f32 %v3634, %v4055
    %v4057 = vand.u32 %v4056, 4294901760
    %4058 = vmatpush1.msra.mxu0 %v4057
    %4059 = vmatprep.subr.mxu0 0.0
    %v4060 = vand.u32 %v3635, 4294901760
    %v4061 = vsub.f32 %v3635, %v4060
    %v4062 = vand.u32 %v4061, 4294901760
    %4063 = vmatpush1.msra.mxu0 %v4062
    %4064 = vmatprep.subr.mxu0 0.0
    %v4065 = vand.u32 %v3636, 4294901760
    %v4066 = vsub.f32 %v3636, %v4065
    %v4067 = vand.u32 %v4066, 4294901760
    %4068 = vmatpush1.msra.mxu0 %v4067
    %4069 = vmatprep.subr.mxu0 0.0
    %v4070 = vand.u32 %v3637, 4294901760
    %v4071 = vsub.f32 %v3637, %v4070
    %v4072 = vand.u32 %v4071, 4294901760
    %4073 = vmatpush1.msra.mxu0 %v4072
    %4074 = vmatprep.subr.mxu0 0.0
    %v4075 = vand.u32 %v3638, 4294901760
    %v4076 = vsub.f32 %v3638, %v4075
    %v4077 = vand.u32 %v4076, 4294901760
    %4078 = vmatpush1.msra.mxu0 %v4077
    %4079 = vmatprep.subr.mxu0 0.0
    %v4080 = vand.u32 %v3639, 4294901760
    %v4081 = vsub.f32 %v3639, %v4080
    %v4082 = vand.u32 %v4081, 4294901760
    %4083 = vmatpush1.msra.mxu0 %v4082
    %4084 = vmatprep.subr.mxu0 0.0
    %4085 = vmatpush1.msra.mxu0 0.0
    %4086 = vmatprep.subr.mxu0 0.0
    %4087 = vmatpush1.msra.mxu0 0.0
    %4088 = vmatprep.subr.mxu0 0.0
    %4089 = vmatpush1.msra.mxu0 0.0
    %4090 = vmatprep.subr.mxu0 0.0
    %4091 = vmatpush1.msra.mxu0 0.0
    %4092 = vmatprep.subr.mxu0 0.0
    %4093 = vmatpush1.msra.mxu0 0.0
    %4094 = vmatprep.subr.mxu0 0.0
    %4095 = vmatpush1.msra.mxu0 0.0
    %4096 = vmatprep.subr.mxu0 0.0
    %4097 = vmatpush1.msra.mxu0 0.0
    %4098 = vmatprep.subr.mxu0 0.0
    %4099 = vmatpush1.msra.mxu0 0.0
    %4100 = vmatprep.subr.mxu0 0.0
    %4101 = vmatpush1.msra.mxu0 0.0
    %4102 = vmatprep.subr.mxu0 0.0
    %4103 = vmatpush1.msra.mxu0 0.0
    %4104 = vmatprep.subr.mxu0 0.0
    %4105 = vmatpush1.msra.mxu0 0.0
    %4106 = vmatprep.subr.mxu0 0.0
    %4107 = vmatpush1.msra.mxu0 0.0
    %4108 = vmatprep.subr.mxu0 0.0
    %4109 = vmatpush1.msra.mxu0 0.0
    %4110 = vmatprep.subr.mxu0 0.0
    %4111 = vmatpush1.msra.mxu0 0.0
    %4112 = vmatprep.subr.mxu0 0.0
    %4113 = vmatpush1.msra.mxu0 0.0
    %4114 = vmatprep.subr.mxu0 0.0
    %4115 = vmatpush1.msra.mxu0 0.0
    %4116 = vmatprep.subr.mxu0 0.0
    %4117 = vmatpush1.msra.mxu0 0.0
    %4118 = vmatprep.subr.mxu0 0.0
    %4119 = vmatpush1.msra.mxu0 0.0
    %4120 = vmatprep.subr.mxu0 0.0
    %4121 = vmatpush1.msra.mxu0 0.0
    %4122 = vmatprep.subr.mxu0 0.0
    %4123 = vmatpush1.msra.mxu0 0.0
    %4124 = vmatprep.subr.mxu0 0.0
    %4125 = vmatpush1.msra.mxu0 0.0
    %4126 = vmatprep.subr.mxu0 0.0
    %4127 = vmatpush1.msra.mxu0 0.0
    %4128 = vmatprep.subr.mxu0 0.0
    %4129 = vmatpush1.msra.mxu0 0.0
    %4130 = vmatprep.subr.mxu0 0.0
    %4131 = vmatpush1.msra.mxu0 0.0
    %4132 = vmatprep.mubr.f32.mxu0 0.0
    %v4133 = vand.u32 %v3645, 4294901760
    %4134 = vmatmul.mubr.f32.gmra.mrb[0].mxu0 %v4133
    %v4135 = vpop.f32.mrb[0].mxu0
    %v4136 = vadd.f32 %v4033, %v4135
    %v4137 = vpop.f32.mrb[0].mxu0
    %4138 = vmatprep.mubr.f32.mxu0 0.0
    %v4139 = vand.u32 %v3648, 4294901760
    %4140 = vmatmul.mubr.f32.gmra.mrb[0].mxu0 %v4139
    %v4141 = vpop.f32.mrb[0].mxu0
    %v4142 = vadd.f32 %v4041, %v4141
    %v4143 = vpop.f32.mrb[0].mxu0
    %4144 = vdwg.mxu0
    %4145 = vmatprep.subr.mxu0 0.0
    %v4146 = vand.u32 %v3632, 4294901760
    %4147 = vmatpush1.msra.mxu0 %v4146
    %4148 = vmatprep.subr.mxu0 0.0
    %v4149 = vand.u32 %v3633, 4294901760
    %4150 = vmatpush1.msra.mxu0 %v4149
    %4151 = vmatprep.subr.mxu0 0.0
    %v4152 = vand.u32 %v3634, 4294901760
    %4153 = vmatpush1.msra.mxu0 %v4152
    %4154 = vmatprep.subr.mxu0 0.0
    %v4155 = vand.u32 %v3635, 4294901760
    %4156 = vmatpush1.msra.mxu0 %v4155
    %4157 = vmatprep.subr.mxu0 0.0
    %v4158 = vand.u32 %v3636, 4294901760
    %4159 = vmatpush1.msra.mxu0 %v4158
    %4160 = vmatprep.subr.mxu0 0.0
    %v4161 = vand.u32 %v3637, 4294901760
    %4162 = vmatpush1.msra.mxu0 %v4161
    %4163 = vmatprep.subr.mxu0 0.0
    %v4164 = vand.u32 %v3638, 4294901760
    %4165 = vmatpush1.msra.mxu0 %v4164
    %4166 = vmatprep.subr.mxu0 0.0
    %v4167 = vand.u32 %v3639, 4294901760
    %4168 = vmatpush1.msra.mxu0 %v4167
    %4169 = vmatprep.subr.mxu0 0.0
    %4170 = vmatpush1.msra.mxu0 0.0
    %4171 = vmatprep.subr.mxu0 0.0
    %4172 = vmatpush1.msra.mxu0 0.0
    %4173 = vmatprep.subr.mxu0 0.0
    %4174 = vmatpush1.msra.mxu0 0.0
    %4175 = vmatprep.subr.mxu0 0.0
    %4176 = vmatpush1.msra.mxu0 0.0
    %4177 = vmatprep.subr.mxu0 0.0
    %4178 = vmatpush1.msra.mxu0 0.0
    %4179 = vmatprep.subr.mxu0 0.0
    %4180 = vmatpush1.msra.mxu0 0.0
    %4181 = vmatprep.subr.mxu0 0.0
    %4182 = vmatpush1.msra.mxu0 0.0
    %4183 = vmatprep.subr.mxu0 0.0
    %4184 = vmatpush1.msra.mxu0 0.0
    %4185 = vmatprep.subr.mxu0 0.0
    %4186 = vmatpush1.msra.mxu0 0.0
    %4187 = vmatprep.subr.mxu0 0.0
    %4188 = vmatpush1.msra.mxu0 0.0
    %4189 = vmatprep.subr.mxu0 0.0
    %4190 = vmatpush1.msra.mxu0 0.0
    %4191 = vmatprep.subr.mxu0 0.0
    %4192 = vmatpush1.msra.mxu0 0.0
    %4193 = vmatprep.subr.mxu0 0.0
    %4194 = vmatpush1.msra.mxu0 0.0
    %4195 = vmatprep.subr.mxu0 0.0
    %4196 = vmatpush1.msra.mxu0 0.0
    %4197 = vmatprep.subr.mxu0 0.0
    %4198 = vmatpush1.msra.mxu0 0.0
    %4199 = vmatprep.subr.mxu0 0.0
    %4200 = vmatpush1.msra.mxu0 0.0
    %4201 = vmatprep.subr.mxu0 0.0
    %4202 = vmatpush1.msra.mxu0 0.0
    %4203 = vmatprep.subr.mxu0 0.0
    %4204 = vmatpush1.msra.mxu0 0.0
    %4205 = vmatprep.subr.mxu0 0.0
    %4206 = vmatpush1.msra.mxu0 0.0
    %4207 = vmatprep.subr.mxu0 0.0
    %4208 = vmatpush1.msra.mxu0 0.0
    %4209 = vmatprep.subr.mxu0 0.0
    %4210 = vmatpush1.msra.mxu0 0.0
    %4211 = vmatprep.subr.mxu0 0.0
    %4212 = vmatpush1.msra.mxu0 0.0
    %4213 = vmatprep.subr.mxu0 0.0
    %4214 = vmatpush1.msra.mxu0 0.0
    %4215 = vmatprep.subr.mxu0 0.0
    %4216 = vmatpush1.msra.mxu0 0.0
    %4217 = vmatprep.mubr.f32.mxu0 0.0
    %v4218 = vand.u32 %v3645, 4294901760
    %4219 = vmatmul.mubr.f32.gmra.mrb[0].mxu0 %v4218
    %v4220 = vpop.f32.mrb[0].mxu0
    %v4221 = vadd.f32 %v4136, %v4220
    %v4222 = vpop.f32.mrb[0].mxu0
    %4223 = vmatprep.mubr.f32.mxu0 0.0
    %v4224 = vand.u32 %v3648, 4294901760
    %4225 = vmatmul.mubr.f32.gmra.mrb[0].mxu0 %v4224
    %v4226 = vpop.f32.mrb[0].mxu0
    %v4227 = vadd.f32 %v4142, %v4226
    %v4228 = vpop.f32.mrb[0].mxu0
    %4229 = vdwg.mxu0
    %v4230 = vadd.f32 %v3086, %v4221
    %v4231 = vadd.f32 %v3087, %v4227
    %v4232 = vsel %vm38, %v4230, 0.0
    %4233 = vadd.xlane.f32.xlu0 %v4232
    %v4234 = vpop.xlane.xlu0 %4233
    %v4235 = vsel %vm38, %v4231, 0.0
    %4236 = vadd.xlane.f32.xlu0 %v4235
    %v4237 = vpop.xlane.xlu0 %4236
    %v4238 = vmul.f32 %v4234, %v3055
    %v4239 = vmul.f32 %v4237, %v3055
    %v4240 = vsub.f32 %v4230, %v4238
    %v4241 = vsub.f32 %v4231, %v4239
    %v4242 = vmul.f32 %v4240, %v4240
    %v4243 = vmul.f32 %v4241, %v4241
    %v4244 = vsel %vm38, %v4242, 0.0
    %4245 = vadd.xlane.f32.xlu0 %v4244
    %v4246 = vpop.xlane.xlu0 %4245
    %v4247 = vsel %vm38, %v4243, 0.0
    %4248 = vadd.xlane.f32.xlu0 %v4247
    %v4249 = vpop.xlane.xlu0 %4248
    %v4250 = vmul.f32 %v4246, %v3055
    %v4251 = vmul.f32 %v4249, %v3055
    %v4252 = vadd.f32 %v4250, 1e-05
    %v4253 = vadd.f32 %v4251, 1e-05
    %v4254 = vrsqrt.pop %v4252
    %v4255 = vrsqrt.pop %v4253
    %v4256 = vmul.f32 %v4240, %v4254
    %v4257 = vmul.f32 %v4241, %v4255
    %v4258 = vlaneseq
    %v4259 = vshrl.u32 %v4258, 7
    %v4260 = vsub.s32 6, %v4259
    %v4261 = vrot.slane %v29, %v4260
    %v4262 = vmul.f32 %v4256, %v4261
    %v4263 = vmul.f32 %v4257, %v4261
    %v4264 = vlaneseq
    %v4265 = vshrl.u32 %v4264, 7
    %v4266 = vsub.s32 7, %v4265
    %v4267 = vrot.slane %v29, %v4266
    %v4268 = vadd.f32 %v4262, %v4267
    %v4269 = vadd.f32 %v4263, %v4267
    %4270 = vst.msk [vmem:[#allocation2] sm:$0xff] %vm38, %v4268
    %4271 = vst.msk [vmem:[#allocation2 + $0x8] sm:$0xff] %vm38, %v4269
    // Predicated region
    $region30: #{encoder_layer.1} parent=1 // pred_check
      _
    $region31: #{encoder_layer.1} parent=1 // pred_check_branch
      %4273 = sbr.rel (0) target = $region33
    $region32: #{encoder_layer.1} parent=1 // pred_region
      %s4275 = ssub.s32 256, 256
      %4276 = vsyncadd [#allocation3], %s4275
      %s4277 = sshll.u32 [#allocation2], 4
      %s4278 = int_to_ptr.vmem [resolvable:$true] %s4277
      %4283 = dma.vmem_to_hbm [thread:$0]  %s4278, 256, %s7, [#allocation3], 128, 128, 8
    $region33: #{encoder_layer.1} parent=1 // pred_fallthru
      _
    // Predicated region
    $region34: #{encoder_layer.1} parent=1 // pred_check
      _
    $region35: #{encoder_layer.1} parent=1 // pred_check_branch
      %4285 = sbr.rel (0) target = $region37
    $region36: #{encoder_layer.1} parent=1 // pred_region
      %4286 = dma.done [#allocation3], 256
    $region37: #{encoder_layer.1} parent=1 // pred_fallthru
      _
    %4287 = vsyncpa [#allocation3], 1

</llo_original>
